<compile_context>
chip_gen: v7x
topology: tpu7x:2x2x1
jax: 0.10.0
libtpu: 0.0.40
codegen_flags: <defaults>
</compile_context>

<pallas_src>
import functools

import jax
import jax.numpy as jnp
from jax import lax
from jax.experimental import pallas as pl
from jax.experimental.pallas import tpu as pltpu


def _make_resblock_kernel(H, W, WP, C, block_b, res_scale, mm_dtype):
    HWP = H * WP
    M = block_b * HWP

    def kernel(x_ref, w1_ref, b1_ref, w2_ref, b2_ref, o_ref, pad_ref, col_ref):
        # ---- stage input into the zero-bordered padded scratch (per image) ----
        zrow = jnp.zeros((1, WP, C), mm_dtype)
        zband = jnp.zeros((H, WP - W, C), mm_dtype)
        for bb in range(block_b):
            pad_ref[bb, 0:1, :, :] = zrow                     # top zero row
            pad_ref[bb, H + 1:H + 2, :, :] = zrow             # bottom zero row
            pad_ref[bb, 1:H + 1, W:WP, :] = zband             # right zero band
            pad_ref[bb, 1:H + 1, 0:W, :] = x_ref[bb].astype(mm_dtype)

        def conv3x3(w_ref):
            # im2col with K-concat over ky only: whole-row bands, every slice
            # sublane-aligned (WP % 8 == 0) -> no per-tap relayout copies.
            for bb in range(block_b):
                for ky in range(3):
                    band = pad_ref[bb, ky:ky + H, :, :].reshape(HWP, C)
                    col_ref[bb * HWP:(bb + 1) * HWP,
                            ky * C:(ky + 1) * C] = band
            # One MXU matmul per conv; K-reduction accumulates inside the MXU.
            z = jnp.dot(col_ref[...], w_ref[...],
                        preferred_element_type=jnp.float32)    # (M, 3C) f32
            # kx combine: shift-after-matmul (XLU roll + VPU adds). The zero
            # right-pad column makes the circular wrap exact at x=0 / x=W-1.
            acc = pltpu.roll(z[:, 0:C], shift=1, axis=0)                 # kx=0
            acc = acc + z[:, C:2 * C]                                    # kx=1
            acc = acc + pltpu.roll(z[:, 2 * C:3 * C], shift=M - 1, axis=0)  # kx=2
            return acc                                          # (M, C) f32

        # ---- conv1 + bias + ReLU -> staged back into the padded scratch ----
        acc1 = conv3x3(w1_ref)
        for bb in range(block_b):
            mid = acc1[bb * HWP:(bb + 1) * HWP].reshape(H, WP, C)[:, 0:W, :]
            mid = jnp.maximum(mid + b1_ref[...], 0.0)
            pad_ref[bb, 1:H + 1, 0:W, :] = mid.astype(mm_dtype)
            # rows 0/H+1 and columns W..WP-1 are untouched -> still zero.

        # ---- conv2 + bias + residual epilogue (f32) ----
        acc2 = conv3x3(w2_ref)
        for bb in range(block_b):
            out = acc2[bb * HWP:(bb + 1) * HWP].reshape(H, WP, C)[:, 0:W, :]
            out = out + b2_ref[...]
            if res_scale != 1.0:
                out = out * res_scale
            o_ref[bb] = (out + x_ref[bb]).astype(o_ref.dtype)

    return kernel


def resblock_forward(params, x, *, res_scale=1.0, use_bf16_matmul=True,
                     block_b=1):
    """ResBlock forward. x: (B, C, H, W) NCHW float32 -> (B, C, H, W)."""
    B, C, H, W = x.shape
    if B % block_b != 0:
        raise ValueError(f"block_b={block_b} must divide B={B}")
    # padded width: >= W+1 (one shared zero column for both side taps) and a
    # multiple of 8 sublanes so band reshapes are layout-preserving.
    WP = ((W + 1 + 7) // 8) * 8

    x_nhwc = jnp.transpose(x, (0, 2, 3, 1))
    mm_dtype = jnp.bfloat16 if use_bf16_matmul else jnp.float32

    # HWIO (3,3,Cin,Cout) -> (ky*Cin, kx*Cout): a single (3C,3C) matrix per conv
    # covers all nine taps (kx resolved post-matmul via roll).
    def pack(w):
        return jnp.transpose(w, (0, 2, 1, 3)).reshape(3 * C, 3 * C).astype(mm_dtype)

    w1 = pack(params['w1'])
    w2 = pack(params['w2'])
    b1 = params['b1'].reshape(1, C).astype(jnp.float32)
    b2 = params['b2'].reshape(1, C).astype(jnp.float32)

    kernel = _make_resblock_kernel(H, W, WP, C, block_b, float(res_scale),
                                   mm_dtype)
    out = pl.pallas_call(
        kernel,
        out_shape=jax.ShapeDtypeStruct((B, H, W, C), jnp.float32),
        grid=(B // block_b,),
        in_specs=[
            pl.BlockSpec((block_b, H, W, C), lambda b: (b, 0, 0, 0)),   # x
            pl.BlockSpec((3 * C, 3 * C), lambda b: (0, 0)),             # w1 resident
            pl.BlockSpec((1, C), lambda b: (0, 0)),                     # b1
            pl.BlockSpec((3 * C, 3 * C), lambda b: (0, 0)),             # w2 resident
            pl.BlockSpec((1, C), lambda b: (0, 0)),                     # b2
        ],
        out_specs=pl.BlockSpec((block_b, H, W, C), lambda b: (b, 0, 0, 0)),
        scratch_shapes=[
            pltpu.VMEM((block_b, H + 2, WP, C), mm_dtype),      # zero-bordered x/mid
            pltpu.VMEM((block_b * H * WP, 3 * C), mm_dtype),    # im2col (ky-concat)
        ],
        compiler_params=pltpu.CompilerParams(
            dimension_semantics=("parallel",)),
    )(x_nhwc, w1, b1, w2, b2)
    return jnp.transpose(out, (0, 3, 1, 2))


# ---------------------------------------------------------------------------
# Pure-JAX reference (PyTorch semantics) for correctness checking.
# ---------------------------------------------------------------------------
def resblock_reference(params, x, res_scale=1.0):
    w1 = jnp.transpose(params['w1'], (3, 2, 0, 1))   # HWIO -> OIHW
    w2 = jnp.transpose(params['w2'], (3, 2, 0, 1))
    dn = ('NCHW', 'OIHW', 'NCHW')
    y = lax.conv_general_dilated(x, w1, (1, 1), ((1, 1), (1, 1)),
                                 dimension_numbers=dn)
    y = y + params['b1'][None, :, None, None]
    y = jnp.maximum(y, 0.0)
    y = lax.conv_general_dilated(y, w2, (1, 1), ((1, 1), (1, 1)),
                                 dimension_numbers=dn)
    y = y + params['b2'][None, :, None, None]
    return y * res_scale + x


def init_params(key, nf):
    k1, k2, k3, k4 = jax.random.split(key, 4)
    return {
        'w1': (0.05 * jax.random.normal(k1, (3, 3, nf, nf))).astype(jnp.float32),
        'b1': (0.10 * jax.random.normal(k2, (nf,))).astype(jnp.float32),
        'w2': (0.05 * jax.random.normal(k3, (3, 3, nf, nf))).astype(jnp.float32),
        'b2': (0.10 * jax.random.normal(k4, (nf,))).astype(jnp.float32),
    }


if __name__ == "__main__":
    B, C, H, W = 2, 64, 16, 16           # nf = 64 channels, 16x16 spatial
    key = jax.random.PRNGKey(0)
    kin, kp = jax.random.split(key)
    x = jax.random.normal(kin, (B, C, H, W), jnp.float32)
    params = init_params(kp, C)

    # Default path: bf16 MXU operands, f32 accumulate + f32 epilogue.
    fwd_bf16 = jax.jit(functools.partial(resblock_forward, res_scale=1.0,
                                         use_bf16_matmul=True, block_b=1))
    out = jax.block_until_ready(fwd_bf16(params, x))
    assert out.shape == (B, C, H, W), out.shape
    assert bool(jnp.all(jnp.isfinite(out)))
    ref = resblock_reference(params, x, 1.0)
    err = float(jnp.max(jnp.abs(out - ref)))
    assert jnp.allclose(out, ref, rtol=5e-2, atol=5e-2), err

    # f32-operand path (closer to the PyTorch f32 reference), non-unit res_scale.
    fwd_f32 = jax.jit(functools.partial(resblock_forward, res_scale=0.3,
                                        use_bf16_matmul=False, block_b=1))
    out32 = jax.block_until_ready(fwd_f32(params, x))
    ref32 = resblock_reference(params, x, 0.3)
    err32 = float(jnp.max(jnp.abs(out32 - ref32)))
    assert jnp.allclose(out32, ref32, rtol=2e-3, atol=2e-3), err32

    # Batch-fused path (block_b images folded into the matmul M dimension).
    fwd_blk = jax.jit(functools.partial(resblock_forward, res_scale=1.0,
                                        use_bf16_matmul=True, block_b=2))
    outb = jax.block_until_ready(fwd_blk(params, x))
    errb = float(jnp.max(jnp.abs(outb - ref)))
    assert jnp.allclose(outb, ref, rtol=5e-2, atol=5e-2), errb

    print("KERNEL_OK")
</pallas_src>

<mosaic_0001>
module attributes {stable_mosaic.version = 11 : i64} {
  func.func @kernel(%arg0: i32, %arg1: memref<1x16x16x64xf32, #tpu.memory_space<vmem>>, %arg2: memref<192x192xbf16, #tpu.memory_space<vmem>>, %arg3: memref<1x64xf32, #tpu.memory_space<vmem>>, %arg4: memref<192x192xbf16, #tpu.memory_space<vmem>>, %arg5: memref<1x64xf32, #tpu.memory_space<vmem>>, %arg6: memref<1x16x16x64xf32, #tpu.memory_space<vmem>>, %arg7: memref<1x18x24x64xbf16, #tpu.memory_space<vmem>>, %arg8: memref<384x192xbf16, #tpu.memory_space<vmem>>) attributes {dimension_semantics = [#tpu.dimension_semantics<parallel>], iteration_bounds = array<i64: 2>, scalar_prefetch = 0 : i64, scratch_operands = 2 : i64, tpu.core_type = #tpu.core_type<tc>, window_params = [{transform_indices = @transform_0, window_bounds = array<i64: 1, 16, 16, 64>}, {pipeline_mode = #tpu.pipeline_mode<synchronous>, transform_indices = @transform_1, window_bounds = array<i64: 192, 192>}, {pipeline_mode = #tpu.pipeline_mode<synchronous>, transform_indices = @transform_2, window_bounds = array<i64: 1, 64>}, {pipeline_mode = #tpu.pipeline_mode<synchronous>, transform_indices = @transform_3, window_bounds = array<i64: 192, 192>}, {pipeline_mode = #tpu.pipeline_mode<synchronous>, transform_indices = @transform_4, window_bounds = array<i64: 1, 64>}, {transform_indices = @transform_5, window_bounds = array<i64: 1, 16, 16, 64>}]} {
    %cst = arith.constant 0.000000e+00 : bf16
    %0 = vector.broadcast %cst : bf16 to vector<1x24x64xbf16>
    %cst_0 = arith.constant 0.000000e+00 : bf16
    %1 = vector.broadcast %cst_0 : bf16 to vector<16x8x64xbf16>
    %c0 = arith.constant 0 : index
    %c0_1 = arith.constant 0 : index
    %c0_2 = arith.constant 0 : index
    %c0_3 = arith.constant 0 : index
    %2 = vector.load %arg7[%c0, %c0_1, %c0_2, %c0_3] : memref<1x18x24x64xbf16, #tpu.memory_space<vmem>>, vector<1x1x24x64xbf16>
    %3 = vector.shape_cast %2 : vector<1x1x24x64xbf16> to vector<1x24x64xbf16>
    %4 = vector.shape_cast %0 : vector<1x24x64xbf16> to vector<1x1x24x64xbf16>
    tpu.vector_store %arg7[%c0, %c0_1, %c0_2, %c0_3], %4 {strides = array<i32>} : memref<1x18x24x64xbf16, #tpu.memory_space<vmem>>, vector<1x1x24x64xbf16>,
    %c0_4 = arith.constant 0 : index
    %c17 = arith.constant 17 : index
    %c0_5 = arith.constant 0 : index
    %c0_6 = arith.constant 0 : index
    %5 = vector.load %arg7[%c0_4, %c17, %c0_5, %c0_6] : memref<1x18x24x64xbf16, #tpu.memory_space<vmem>>, vector<1x1x24x64xbf16>
    %6 = vector.shape_cast %5 : vector<1x1x24x64xbf16> to vector<1x24x64xbf16>
    %7 = vector.shape_cast %0 : vector<1x24x64xbf16> to vector<1x1x24x64xbf16>
    tpu.vector_store %arg7[%c0_4, %c17, %c0_5, %c0_6], %7 {strides = array<i32>} : memref<1x18x24x64xbf16, #tpu.memory_space<vmem>>, vector<1x1x24x64xbf16>,
    %c0_7 = arith.constant 0 : index
    %c1 = arith.constant 1 : index
    %c16 = arith.constant 16 : index
    %c0_8 = arith.constant 0 : index
    %8 = vector.load %arg7[%c0_7, %c1, %c16, %c0_8] : memref<1x18x24x64xbf16, #tpu.memory_space<vmem>>, vector<1x16x8x64xbf16>
    %9 = vector.shape_cast %8 : vector<1x16x8x64xbf16> to vector<16x8x64xbf16>
    %10 = vector.shape_cast %1 : vector<16x8x64xbf16> to vector<1x16x8x64xbf16>
    tpu.vector_store %arg7[%c0_7, %c1, %c16, %c0_8], %10 {strides = array<i32>} : memref<1x18x24x64xbf16, #tpu.memory_space<vmem>>, vector<1x16x8x64xbf16>,
    %c0_9 = arith.constant 0 : index
    %c0_10 = arith.constant 0 : index
    %c0_11 = arith.constant 0 : index
    %c0_12 = arith.constant 0 : index
    %11 = vector.load %arg1[%c0_9, %c0_10, %c0_11, %c0_12] : memref<1x16x16x64xf32, #tpu.memory_space<vmem>>, vector<1x16x16x64xf32>
    %12 = vector.shape_cast %11 : vector<1x16x16x64xf32> to vector<16x16x64xf32>
    %13 = arith.truncf %12 : vector<16x16x64xf32> to vector<16x16x64xbf16>
    %c0_13 = arith.constant 0 : index
    %c1_14 = arith.constant 1 : index
    %c0_15 = arith.constant 0 : index
    %c0_16 = arith.constant 0 : index
    %14 = vector.load %arg7[%c0_13, %c1_14, %c0_15, %c0_16] : memref<1x18x24x64xbf16, #tpu.memory_space<vmem>>, vector<1x16x16x64xbf16>
    %15 = vector.shape_cast %14 : vector<1x16x16x64xbf16> to vector<16x16x64xbf16>
    %16 = vector.shape_cast %13 : vector<16x16x64xbf16> to vector<1x16x16x64xbf16>
    tpu.vector_store %arg7[%c0_13, %c1_14, %c0_15, %c0_16], %16 {strides = array<i32>} : memref<1x18x24x64xbf16, #tpu.memory_space<vmem>>, vector<1x16x16x64xbf16>,
    %c0_17 = arith.constant 0 : index
    %c0_18 = arith.constant 0 : index
    %c0_19 = arith.constant 0 : index
    %c0_20 = arith.constant 0 : index
    %17 = vector.load %arg7[%c0_17, %c0_18, %c0_19, %c0_20] : memref<1x18x24x64xbf16, #tpu.memory_space<vmem>>, vector<1x16x24x64xbf16>
    %18 = vector.shape_cast %17 : vector<1x16x24x64xbf16> to vector<16x24x64xbf16>
    %19 = vector.shape_cast %18 : vector<16x24x64xbf16> to vector<384x64xbf16>
    %c0_21 = arith.constant 0 : index
    %c0_22 = arith.constant 0 : index
    %20 = vector.load %arg8[%c0_21, %c0_22] : memref<384x192xbf16, #tpu.memory_space<vmem>>, vector<384x64xbf16>
    tpu.vector_store %arg8[%c0_21, %c0_22], %19 {strides = array<i32>} : memref<384x192xbf16, #tpu.memory_space<vmem>>, vector<384x64xbf16>,
    %c0_23 = arith.constant 0 : index
    %c1_24 = arith.constant 1 : index
    %c0_25 = arith.constant 0 : index
    %c0_26 = arith.constant 0 : index
    %21 = vector.load %arg7[%c0_23, %c1_24, %c0_25, %c0_26] : memref<1x18x24x64xbf16, #tpu.memory_space<vmem>>, vector<1x16x24x64xbf16>
    %22 = vector.shape_cast %21 : vector<1x16x24x64xbf16> to vector<16x24x64xbf16>
    %23 = vector.shape_cast %22 : vector<16x24x64xbf16> to vector<384x64xbf16>
    %c0_27 = arith.constant 0 : index
    %c64 = arith.constant 64 : index
    %24 = vector.load %arg8[%c0_27, %c64] : memref<384x192xbf16, #tpu.memory_space<vmem>>, vector<384x64xbf16>
    tpu.vector_store %arg8[%c0_27, %c64], %23 {strides = array<i32>} : memref<384x192xbf16, #tpu.memory_space<vmem>>, vector<384x64xbf16>,
    %c0_28 = arith.constant 0 : index
    %c2 = arith.constant 2 : index
    %c0_29 = arith.constant 0 : index
    %c0_30 = arith.constant 0 : index
    %25 = vector.load %arg7[%c0_28, %c2, %c0_29, %c0_30] : memref<1x18x24x64xbf16, #tpu.memory_space<vmem>>, vector<1x16x24x64xbf16>
    %26 = vector.shape_cast %25 : vector<1x16x24x64xbf16> to vector<16x24x64xbf16>
    %27 = vector.shape_cast %26 : vector<16x24x64xbf16> to vector<384x64xbf16>
    %c0_31 = arith.constant 0 : index
    %c128 = arith.constant 128 : index
    %28 = vector.load %arg8[%c0_31, %c128] : memref<384x192xbf16, #tpu.memory_space<vmem>>, vector<384x64xbf16>
    tpu.vector_store %arg8[%c0_31, %c128], %27 {strides = array<i32>} : memref<384x192xbf16, #tpu.memory_space<vmem>>, vector<384x64xbf16>,
    %c0_32 = arith.constant 0 : index
    %c0_33 = arith.constant 0 : index
    %29 = vector.load %arg8[%c0_32, %c0_33] : memref<384x192xbf16, #tpu.memory_space<vmem>>, vector<384x192xbf16>
    %c0_34 = arith.constant 0 : index
    %c0_35 = arith.constant 0 : index
    %30 = vector.load %arg2[%c0_34, %c0_35] : memref<192x192xbf16, #tpu.memory_space<vmem>>, vector<192x192xbf16>
    %cst_36 = arith.constant dense<0.000000e+00> : vector<384x192xf32>
    %31 = tpu.matmul %29, %30, %cst_36 {dimension_numbers = #tpu.dot_dimension_numbers<[1], [0], [0], [1], [0, 0, 1, 1], [], []>} : vector<384x192xbf16>, vector<192x192xbf16>, vector<384x192xf32> -> vector<384x192xf32>
    %32 = vector.extract_strided_slice %31 {offsets = [0, 0], sizes = [384, 64], strides = [1, 1]} : vector<384x192xf32> to vector<384x64xf32>
    %c1_i32 = arith.constant 1 : i32
    %33 = tpu.dynamic_rotate %32 by %c1_i32 dim 0 : vector<384x64xf32>, i32 -> vector<384x64xf32>
    %34 = vector.extract_strided_slice %31 {offsets = [0, 64], sizes = [384, 64], strides = [1, 1]} : vector<384x192xf32> to vector<384x64xf32>
    %35 = arith.addf %33, %34 : vector<384x64xf32>
    %36 = vector.extract_strided_slice %31 {offsets = [0, 128], sizes = [384, 64], strides = [1, 1]} : vector<384x192xf32> to vector<384x64xf32>
    %c383_i32 = arith.constant 383 : i32
    %37 = tpu.dynamic_rotate %36 by %c383_i32 dim 0 : vector<384x64xf32>, i32 -> vector<384x64xf32>
    %38 = arith.addf %35, %37 : vector<384x64xf32>
    %39 = vector.shape_cast %38 : vector<384x64xf32> to vector<16x24x64xf32>
    %40 = vector.extract_strided_slice %39 {offsets = [0, 0, 0], sizes = [16, 16, 64], strides = [1, 1, 1]} : vector<16x24x64xf32> to vector<16x16x64xf32>
    %c0_37 = arith.constant 0 : index
    %c0_38 = arith.constant 0 : index
    %41 = vector.load %arg3[%c0_37, %c0_38] : memref<1x64xf32, #tpu.memory_space<vmem>>, vector<1x64xf32>
    %42 = vector.shape_cast %41 : vector<1x64xf32> to vector<1x1x64xf32>
    %43 = vector.broadcast %42 : vector<1x1x64xf32> to vector<16x16x64xf32>
    %44 = arith.addf %40, %43 : vector<16x16x64xf32>
    %cst_39 = arith.constant 0.000000e+00 : f32
    %45 = vector.broadcast %cst_39 : f32 to vector<16x16x64xf32>
    %46 = arith.maximumf %44, %45 : vector<16x16x64xf32>
    %47 = arith.truncf %46 : vector<16x16x64xf32> to vector<16x16x64xbf16>
    %c0_40 = arith.constant 0 : index
    %c1_41 = arith.constant 1 : index
    %c0_42 = arith.constant 0 : index
    %c0_43 = arith.constant 0 : index
    %48 = vector.load %arg7[%c0_40, %c1_41, %c0_42, %c0_43] : memref<1x18x24x64xbf16, #tpu.memory_space<vmem>>, vector<1x16x16x64xbf16>
    %49 = vector.shape_cast %48 : vector<1x16x16x64xbf16> to vector<16x16x64xbf16>
    %50 = vector.shape_cast %47 : vector<16x16x64xbf16> to vector<1x16x16x64xbf16>
    tpu.vector_store %arg7[%c0_40, %c1_41, %c0_42, %c0_43], %50 {strides = array<i32>} : memref<1x18x24x64xbf16, #tpu.memory_space<vmem>>, vector<1x16x16x64xbf16>,
    %c0_44 = arith.constant 0 : index
    %c0_45 = arith.constant 0 : index
    %c0_46 = arith.constant 0 : index
    %c0_47 = arith.constant 0 : index
    %51 = vector.load %arg7[%c0_44, %c0_45, %c0_46, %c0_47] : memref<1x18x24x64xbf16, #tpu.memory_space<vmem>>, vector<1x16x24x64xbf16>
    %52 = vector.shape_cast %51 : vector<1x16x24x64xbf16> to vector<16x24x64xbf16>
    %53 = vector.shape_cast %52 : vector<16x24x64xbf16> to vector<384x64xbf16>
    %c0_48 = arith.constant 0 : index
    %c0_49 = arith.constant 0 : index
    %54 = vector.load %arg8[%c0_48, %c0_49] : memref<384x192xbf16, #tpu.memory_space<vmem>>, vector<384x64xbf16>
    tpu.vector_store %arg8[%c0_48, %c0_49], %53 {strides = array<i32>} : memref<384x192xbf16, #tpu.memory_space<vmem>>, vector<384x64xbf16>,
    %c0_50 = arith.constant 0 : index
    %c1_51 = arith.constant 1 : index
    %c0_52 = arith.constant 0 : index
    %c0_53 = arith.constant 0 : index
    %55 = vector.load %arg7[%c0_50, %c1_51, %c0_52, %c0_53] : memref<1x18x24x64xbf16, #tpu.memory_space<vmem>>, vector<1x16x24x64xbf16>
    %56 = vector.shape_cast %55 : vector<1x16x24x64xbf16> to vector<16x24x64xbf16>
    %57 = vector.shape_cast %56 : vector<16x24x64xbf16> to vector<384x64xbf16>
    %c0_54 = arith.constant 0 : index
    %c64_55 = arith.constant 64 : index
    %58 = vector.load %arg8[%c0_54, %c64_55] : memref<384x192xbf16, #tpu.memory_space<vmem>>, vector<384x64xbf16>
    tpu.vector_store %arg8[%c0_54, %c64_55], %57 {strides = array<i32>} : memref<384x192xbf16, #tpu.memory_space<vmem>>, vector<384x64xbf16>,
    %c0_56 = arith.constant 0 : index
    %c2_57 = arith.constant 2 : index
    %c0_58 = arith.constant 0 : index
    %c0_59 = arith.constant 0 : index
    %59 = vector.load %arg7[%c0_56, %c2_57, %c0_58, %c0_59] : memref<1x18x24x64xbf16, #tpu.memory_space<vmem>>, vector<1x16x24x64xbf16>
    %60 = vector.shape_cast %59 : vector<1x16x24x64xbf16> to vector<16x24x64xbf16>
    %61 = vector.shape_cast %60 : vector<16x24x64xbf16> to vector<384x64xbf16>
    %c0_60 = arith.constant 0 : index
    %c128_61 = arith.constant 128 : index
    %62 = vector.load %arg8[%c0_60, %c128_61] : memref<384x192xbf16, #tpu.memory_space<vmem>>, vector<384x64xbf16>
    tpu.vector_store %arg8[%c0_60, %c128_61], %61 {strides = array<i32>} : memref<384x192xbf16, #tpu.memory_space<vmem>>, vector<384x64xbf16>,
    %c0_62 = arith.constant 0 : index
    %c0_63 = arith.constant 0 : index
    %63 = vector.load %arg8[%c0_62, %c0_63] : memref<384x192xbf16, #tpu.memory_space<vmem>>, vector<384x192xbf16>
    %c0_64 = arith.constant 0 : index
    %c0_65 = arith.constant 0 : index
    %64 = vector.load %arg4[%c0_64, %c0_65] : memref<192x192xbf16, #tpu.memory_space<vmem>>, vector<192x192xbf16>
    %cst_66 = arith.constant dense<0.000000e+00> : vector<384x192xf32>
    %65 = tpu.matmul %63, %64, %cst_66 {dimension_numbers = #tpu.dot_dimension_numbers<[1], [0], [0], [1], [0, 0, 1, 1], [], []>} : vector<384x192xbf16>, vector<192x192xbf16>, vector<384x192xf32> -> vector<384x192xf32>
    %66 = vector.extract_strided_slice %65 {offsets = [0, 0], sizes = [384, 64], strides = [1, 1]} : vector<384x192xf32> to vector<384x64xf32>
    %c1_i32_67 = arith.constant 1 : i32
    %67 = tpu.dynamic_rotate %66 by %c1_i32_67 dim 0 : vector<384x64xf32>, i32 -> vector<384x64xf32>
    %68 = vector.extract_strided_slice %65 {offsets = [0, 64], sizes = [384, 64], strides = [1, 1]} : vector<384x192xf32> to vector<384x64xf32>
    %69 = arith.addf %67, %68 : vector<384x64xf32>
    %70 = vector.extract_strided_slice %65 {offsets = [0, 128], sizes = [384, 64], strides = [1, 1]} : vector<384x192xf32> to vector<384x64xf32>
    %c383_i32_68 = arith.constant 383 : i32
    %71 = tpu.dynamic_rotate %70 by %c383_i32_68 dim 0 : vector<384x64xf32>, i32 -> vector<384x64xf32>
    %72 = arith.addf %69, %71 : vector<384x64xf32>
    %73 = vector.shape_cast %72 : vector<384x64xf32> to vector<16x24x64xf32>
    %74 = vector.extract_strided_slice %73 {offsets = [0, 0, 0], sizes = [16, 16, 64], strides = [1, 1, 1]} : vector<16x24x64xf32> to vector<16x16x64xf32>
    %c0_69 = arith.constant 0 : index
    %c0_70 = arith.constant 0 : index
    %75 = vector.load %arg5[%c0_69, %c0_70] : memref<1x64xf32, #tpu.memory_space<vmem>>, vector<1x64xf32>
    %76 = vector.shape_cast %75 : vector<1x64xf32> to vector<1x1x64xf32>
    %77 = vector.broadcast %76 : vector<1x1x64xf32> to vector<16x16x64xf32>
    %78 = arith.addf %74, %77 : vector<16x16x64xf32>
    %c0_71 = arith.constant 0 : index
    %c0_72 = arith.constant 0 : index
    %c0_73 = arith.constant 0 : index
    %c0_74 = arith.constant 0 : index
    %79 = vector.load %arg1[%c0_71, %c0_72, %c0_73, %c0_74] : memref<1x16x16x64xf32, #tpu.memory_space<vmem>>, vector<1x16x16x64xf32>
    %80 = vector.shape_cast %79 : vector<1x16x16x64xf32> to vector<16x16x64xf32>
    %81 = arith.addf %78, %80 : vector<16x16x64xf32>
    %c0_75 = arith.constant 0 : index
    %c0_76 = arith.constant 0 : index
    %c0_77 = arith.constant 0 : index
    %c0_78 = arith.constant 0 : index
    %82 = vector.load %arg6[%c0_75, %c0_76, %c0_77, %c0_78] : memref<1x16x16x64xf32, #tpu.memory_space<vmem>>, vector<1x16x16x64xf32>
    %83 = vector.shape_cast %82 : vector<1x16x16x64xf32> to vector<16x16x64xf32>
    %84 = vector.shape_cast %81 : vector<16x16x64xf32> to vector<1x16x16x64xf32>
    tpu.vector_store %arg6[%c0_75, %c0_76, %c0_77, %c0_78], %84 {strides = array<i32>} : memref<1x16x16x64xf32, #tpu.memory_space<vmem>>, vector<1x16x16x64xf32>,
    return
  }
  func.func @transform_0(%arg0: i32) -> (i32, i32, i32, i32) {
    %c0_i32 = arith.constant 0 : i32
    %c0_i32_0 = arith.constant 0 : i32
    %c0_i32_1 = arith.constant 0 : i32
    %c0_i32_2 = arith.constant 0 : i32
    return %arg0, %c0_i32, %c0_i32_0, %c0_i32_1 : i32, i32, i32, i32
  }
  func.func @transform_1(%arg0: i32) -> (i32, i32) {
    %c0_i32 = arith.constant 0 : i32
    %c0_i32_0 = arith.constant 0 : i32
    %c0_i32_1 = arith.constant 0 : i32
    return %c0_i32, %c0_i32_0 : i32, i32
  }
  func.func @transform_2(%arg0: i32) -> (i32, i32) {
    %c0_i32 = arith.constant 0 : i32
    %c0_i32_0 = arith.constant 0 : i32
    %c0_i32_1 = arith.constant 0 : i32
    return %c0_i32, %c0_i32_0 : i32, i32
  }
  func.func @transform_3(%arg0: i32) -> (i32, i32) {
    %c0_i32 = arith.constant 0 : i32
    %c0_i32_0 = arith.constant 0 : i32
    %c0_i32_1 = arith.constant 0 : i32
    return %c0_i32, %c0_i32_0 : i32, i32
  }
  func.func @transform_4(%arg0: i32) -> (i32, i32) {
    %c0_i32 = arith.constant 0 : i32
    %c0_i32_0 = arith.constant 0 : i32
    %c0_i32_1 = arith.constant 0 : i32
    return %c0_i32, %c0_i32_0 : i32, i32
  }
  func.func @transform_5(%arg0: i32) -> (i32, i32, i32, i32) {
    %c0_i32 = arith.constant 0 : i32
    %c0_i32_0 = arith.constant 0 : i32
    %c0_i32_1 = arith.constant 0 : i32
    %c0_i32_2 = arith.constant 0 : i32
    return %arg0, %c0_i32, %c0_i32_0, %c0_i32_1 : i32, i32, i32, i32
  }
}

</mosaic_0001>

<llo_original>
// kernel: resblock_forward.1
$region0: #{resblock_forward.1}
  #allocation0 [shape = 'u32[]', space=smem, size = 0x4, offset = 0x4, fixed_abs, tag = 'smem constant byte address 0x4 - core index']
  #allocation1 [shape = 'u32[144,128]{1,0:T(1,128)}', space=vmem, size = 0x12000, scoped, tag = 'internal scratch']
  #allocation2 [shape = 'bf16[1,18,24,64]{3,2,1,0:T(8,128)(2,1)}', space=vmem, size = 0x1b000, scoped, tag = 'scratch operand']
  #allocation3 [shape = 'bf16[384,192]{1,0:T(16,128)(2,1)}', space=vmem, size = 0x30000, scoped, tag = 'scratch operand']
  %s0 = inlined_call_operand.vmem [shape: f32[2,16,16,64], index: 0, kind: input, shape index: {}]
  %s1 = inlined_call_operand.vmem [shape: bf16[192,192], index: 1, kind: input, shape index: {}]
  %s2 = inlined_call_operand.vmem [shape: f32[1,64], index: 2, kind: input, shape index: {}]
  %s3 = inlined_call_operand.vmem [shape: bf16[192,192], index: 3, kind: input, shape index: {}]
  %s4 = inlined_call_operand.vmem [shape: f32[1,64], index: 4, kind: input, shape index: {}]
  %s5 = inlined_call_operand.hbm [shape: f32[2,16,16,64], index: 5, kind: output, shape index: {}]
  %s6 = sld [smem:[#allocation0]]
  $region53: #{resblock_forward.1} parent=0
    _
  %s8 = ssub.s32 1, %s6
  %s9 = scalar_select 0, %s8, %s6
  $region1: #{resblock_forward.1} parent=0
    #allocation4 [shape = 'u8[262144]{0}', space=vmem, size = 0x40000, scoped, tag = 'output window, operand 0']
    #allocation5 [shape = 's32[2]{0}', space=sflag, size = 0x8, scoped, tag = 'scoped memory for resblock_forward.1']
    %10 = vsyncpa [#allocation5], 0
    %s11 = scalar_lea.sflag [#allocation5], 1
    %12 = vsyncpa %s11, 0
    loop: start=0, step=1, limit=4
    $region2: #{resblock_forward.1} parent=1 // loop_pre_header
      _
    $region3: #{resblock_forward.1} parent=1 // loop_header
      %s14 = sphi 0, %s18
      %p15 = scmp.ge.s32.totalorder %s14, 4
      %s24 = sphi 0, %s26
      %s27 = sphi 0, %s24
      %s28 = sphi 0, %s27
      %s44 = sphi 0, %s28
      %s48 = sphi 0, %s48
      %s50 = sphi 0, %s48
      %s51 = sphi 0, %s50
      %s65 = sphi 0, %s51
      %s69 = sphi 0, %s69
      %s71 = sphi 0, %s69
      %s72 = sphi 0, %s71
      %s86 = sphi 0, %s72
      %s90 = sphi 0, %s90
      %s92 = sphi 0, %s90
      %s93 = sphi 0, %s92
      %s107 = sphi 0, %s93
      %s111 = sphi 0, %s111
      %s113 = sphi 0, %s111
      %s114 = sphi 0, %s113
      %s128 = sphi 0, %s114
      %s134 = sphi 0, %s136
      %s137 = sphi 0, %s134
      %s138 = sphi 0, %s137
      %s154 = sphi 0, %s138
    $region4: #{resblock_forward.1} parent=1 // loop_header_branch
      %17 = sbr.rel (%p15) target = $region8
    $region5: #{resblock_forward.1} parent=1 // loop_body
      %s19 = ssub.s32 %s14, 1
      %s20 = ssub.s32 %s14, 2
      %s21 = sadd.s32 %s14, 1
      %s22 = ssub.s32 %s14, %s21
      %p23 = scmp.eq.s32.totalorder %s22, 0
      %s25 = sadd.s32 %s24, 1
      %s26 = scalar_select %p23, %s24, %s25
      %p29 = pneg %p23
      %p30 = scmp.eq.s32.totalorder %s14, 1
      %p31 = por %p29, %p30
      %p32 = scmp.ne.s32.totalorder %s24, %s27
      %p33 = scmp.eq.s32.totalorder %s14, 0
      %p34 = por %p32, %p33
      %p35 = scmp.ne.s32.totalorder %s24, %s27
      %p36 = scmp.eq.s32.totalorder %s19, 1
      %p37 = por %p35, %p36
      %p38 = scmp.ne.s32.totalorder %s27, %s28
      %p39 = scmp.eq.s32.totalorder %s19, 0
      %p40 = por %p38, %p39
      %p41 = scmp.ne.s32.totalorder %s27, %s28
      %p42 = scmp.eq.s32.totalorder %s20, 1
      %p43 = por %p41, %p42
      %p45 = scmp.ne.s32.totalorder %s28, %s44
      %p46 = scmp.eq.s32.totalorder %s20, 0
      %p47 = por %p45, %p46
      %s49 = sadd.s32 %s48, 1
      %p52 = scmp.eq.s32.totalorder %s14, 1
      %p53 = scmp.ne.s32.totalorder %s48, %s50
      %p54 = scmp.eq.s32.totalorder %s14, 0
      %p55 = por %p53, %p54
      %p56 = scmp.ne.s32.totalorder %s48, %s50
      %p57 = scmp.eq.s32.totalorder %s19, 1
      %p58 = por %p56, %p57
      %p59 = scmp.ne.s32.totalorder %s50, %s51
      %p60 = scmp.eq.s32.totalorder %s19, 0
      %p61 = por %p59, %p60
      %p62 = scmp.ne.s32.totalorder %s50, %s51
      %p63 = scmp.eq.s32.totalorder %s20, 1
      %p64 = por %p62, %p63
      %p66 = scmp.ne.s32.totalorder %s51, %s65
      %p67 = scmp.eq.s32.totalorder %s20, 0
      %p68 = por %p66, %p67
      %s70 = sadd.s32 %s69, 1
      %p73 = scmp.eq.s32.totalorder %s14, 1
      %p74 = scmp.ne.s32.totalorder %s69, %s71
      %p75 = scmp.eq.s32.totalorder %s14, 0
      %p76 = por %p74, %p75
      %p77 = scmp.ne.s32.totalorder %s69, %s71
      %p78 = scmp.eq.s32.totalorder %s19, 1
      %p79 = por %p77, %p78
      %p80 = scmp.ne.s32.totalorder %s71, %s72
      %p81 = scmp.eq.s32.totalorder %s19, 0
      %p82 = por %p80, %p81
      %p83 = scmp.ne.s32.totalorder %s71, %s72
      %p84 = scmp.eq.s32.totalorder %s20, 1
      %p85 = por %p83, %p84
      %p87 = scmp.ne.s32.totalorder %s72, %s86
      %p88 = scmp.eq.s32.totalorder %s20, 0
      %p89 = por %p87, %p88
      %s91 = sadd.s32 %s90, 1
      %p94 = scmp.eq.s32.totalorder %s14, 1
      %p95 = scmp.ne.s32.totalorder %s90, %s92
      %p96 = scmp.eq.s32.totalorder %s14, 0
      %p97 = por %p95, %p96
      %p98 = scmp.ne.s32.totalorder %s90, %s92
      %p99 = scmp.eq.s32.totalorder %s19, 1
      %p100 = por %p98, %p99
      %p101 = scmp.ne.s32.totalorder %s92, %s93
      %p102 = scmp.eq.s32.totalorder %s19, 0
      %p103 = por %p101, %p102
      %p104 = scmp.ne.s32.totalorder %s92, %s93
      %p105 = scmp.eq.s32.totalorder %s20, 1
      %p106 = por %p104, %p105
      %p108 = scmp.ne.s32.totalorder %s93, %s107
      %p109 = scmp.eq.s32.totalorder %s20, 0
      %p110 = por %p108, %p109
      %s112 = sadd.s32 %s111, 1
      %p115 = scmp.eq.s32.totalorder %s14, 1
      %p116 = scmp.ne.s32.totalorder %s111, %s113
      %p117 = scmp.eq.s32.totalorder %s14, 0
      %p118 = por %p116, %p117
      %p119 = scmp.ne.s32.totalorder %s111, %s113
      %p120 = scmp.eq.s32.totalorder %s19, 1
      %p121 = por %p119, %p120
      %p122 = scmp.ne.s32.totalorder %s113, %s114
      %p123 = scmp.eq.s32.totalorder %s19, 0
      %p124 = por %p122, %p123
      %p125 = scmp.ne.s32.totalorder %s113, %s114
      %p126 = scmp.eq.s32.totalorder %s20, 1
      %p127 = por %p125, %p126
      %p129 = scmp.ne.s32.totalorder %s114, %s128
      %p130 = scmp.eq.s32.totalorder %s20, 0
      %p131 = por %p129, %p130
      %s132 = ssub.s32 %s14, %s21
      %p133 = scmp.eq.s32.totalorder %s132, 0
      %s135 = sadd.s32 %s134, 1
      %s136 = scalar_select %p133, %s134, %s135
      %p139 = pneg %p133
      %p140 = scmp.eq.s32.totalorder %s14, 1
      %p141 = por %p139, %p140
      %p142 = scmp.ne.s32.totalorder %s134, %s137
      %p143 = scmp.eq.s32.totalorder %s14, 0
      %p144 = por %p142, %p143
      %p145 = scmp.ne.s32.totalorder %s134, %s137
      %p146 = scmp.eq.s32.totalorder %s19, 1
      %p147 = por %p145, %p146
      %p148 = scmp.ne.s32.totalorder %s137, %s138
      %p149 = scmp.eq.s32.totalorder %s19, 0
      %p150 = por %p148, %p149
      %p151 = scmp.ne.s32.totalorder %s137, %s138
      %p152 = scmp.eq.s32.totalorder %s20, 1
      %p153 = por %p151, %p152
      %p155 = scmp.ne.s32.totalorder %s138, %s154
      %p156 = scmp.eq.s32.totalorder %s20, 0
      %p157 = por %p155, %p156
      %p158 = scmp.le.s32.totalorder 1, %s14
      %p159 = scmp.lt.s32.totalorder %s14, 3
      %p160 = pnand %p158, %p159
      %p161 = pneg %p160
      // Predicated region
      $region9: #{resblock_forward.1} parent=5 // pred_check
        _
      $region10: #{resblock_forward.1} parent=5 // pred_check_branch
        %163 = sbr.rel (%p160) target = $region12
      $region11: #{resblock_forward.1} parent=5 // pred_region
        %s164 = ssub.s32 %s14, 1
        // Predicated region
        $region13: #{resblock_forward.1} parent=11 // pred_check
          %p165 = pneg %p61
        $region14: #{resblock_forward.1} parent=11 // pred_check_branch
          %167 = sbr.rel (%p165) target = $region16
        $region15: #{resblock_forward.1} parent=11 // pred_region
          _
        $region16: #{resblock_forward.1} parent=11 // pred_fallthru
          _
        // Predicated region
        $region17: #{resblock_forward.1} parent=11 // pred_check
          %p168 = pneg %p82
        $region18: #{resblock_forward.1} parent=11 // pred_check_branch
          %170 = sbr.rel (%p168) target = $region20
        $region19: #{resblock_forward.1} parent=11 // pred_region
          _
        $region20: #{resblock_forward.1} parent=11 // pred_fallthru
          _
        // Predicated region
        $region21: #{resblock_forward.1} parent=11 // pred_check
          %p171 = pneg %p103
        $region22: #{resblock_forward.1} parent=11 // pred_check_branch
          %173 = sbr.rel (%p171) target = $region24
        $region23: #{resblock_forward.1} parent=11 // pred_region
          _
        $region24: #{resblock_forward.1} parent=11 // pred_fallthru
          _
        // Predicated region
        $region25: #{resblock_forward.1} parent=11 // pred_check
          %p174 = pneg %p124
        $region26: #{resblock_forward.1} parent=11 // pred_check_branch
          %176 = sbr.rel (%p174) target = $region28
        $region27: #{resblock_forward.1} parent=11 // pred_region
          _
        $region28: #{resblock_forward.1} parent=11 // pred_fallthru
          _
      $region12: #{resblock_forward.1} parent=5 // pred_fallthru
        _
      %p177 = scmp.lt.s32.totalorder %s14, 2
      // Predicated region
      $region29: #{resblock_forward.1} parent=5 // pred_check
        %p178 = pneg %p177
      $region30: #{resblock_forward.1} parent=5 // pred_check_branch
        %180 = sbr.rel (%p178) target = $region32
      $region31: #{resblock_forward.1} parent=5 // pred_region
        // Predicated region
        $region33: #{resblock_forward.1} parent=31 // pred_check
          %p181 = pneg %p34
        $region34: #{resblock_forward.1} parent=31 // pred_check_branch
          %183 = sbr.rel (%p181) target = $region36
        $region35: #{resblock_forward.1} parent=31 // pred_region
          %p184 = scmp.lt.s32.totalorder %s14, 1
          %s185 = scalar_select %p184, %s14, 1
          %s186 = smul.addr %s185, 32
          %s187 = smul.addr %s186, 8
          %s188 = scalar_lea.vmem %s0, %s187
        $region36: #{resblock_forward.1} parent=31 // pred_fallthru
          _
      $region32: #{resblock_forward.1} parent=5 // pred_fallthru
        _
      %p189 = scmp.le.s32.totalorder 1, %s14
      %p190 = scmp.lt.s32.totalorder %s14, 3
      %p191 = pnand %p189, %p190
      %p192 = pneg %p191
      // Predicated region
      $region37: #{resblock_forward.1} parent=5 // pred_check
        _
      $region38: #{resblock_forward.1} parent=5 // pred_check_branch
        %194 = sbr.rel (%p191) target = $region40
      $region39: #{resblock_forward.1} parent=5 // pred_region
        %s195 = ssub.s32 %s14, 1
        %p196 = scmp.lt.s32.totalorder %s19, 1
        %s197 = scalar_select %p196, %s19, 1
        %s198 = smul.addr %s197, 32
        %s199 = smul.addr %s198, 8
        %s200 = scalar_lea.vmem %s0, %s199
        %p201 = pneg %p40
        %p202 = pneg %p37
        %p203 = pneg %p61
        %p204 = pneg %p58
        %p205 = pneg %p82
        %p206 = pneg %p79
        %p207 = pneg %p103
        %p208 = pneg %p100
        %p209 = pneg %p124
        %p210 = pneg %p121
        %p211 = pneg %p150
        %p212 = pneg %p147
        %s213 = sand.u32 %s137, 1
        %s214 = scalar_lea.sflag [#allocation5], %s213
        %s215 = sand.u32 %s137, 1
        %s216 = smul.addr %s215, 256
        %s217 = scalar_lea.vmem [#allocation4], %s216
        %p218 = scmp.lt.s32.totalorder %s19, 1
        %s219 = scalar_select %p218, %s19, 1
        %s220 = smul.addr %s219, 32
        %s221 = smul.addr %s220, 8
        %s222 = scalar_lea.vmem %s0, %s221
        %vm224 = vcmask 519168
        %225 = vst.msk [vmem:[#allocation2] sm:$0xf] %vm224, 0
        %226 = vst.msk [vmem:[#allocation2 + $0x4] sm:$0xf] %vm224, 0
        %227 = vst.msk [vmem:[#allocation2 + $0x8] sm:$0xf] %vm224, 0
        %s228 = scalar_lea.vmem [#allocation2], 204
        %229 = vst.msk [vmem:[%s228] sm:$0xf] %vm224, 0
        %230 = vst.msk [vmem:[%s228 + $0x4] sm:$0xf] %vm224, 0
        %231 = vst.msk [vmem:[%s228 + $0x8] sm:$0xf] %vm224, 0
        %s232 = scalar_lea.vmem [#allocation2], 12
        %233 = vst.msk [vmem:[%s232 + $0x8] sm:$0xf] %vm224, 0
        %234 = vst.msk [vmem:[%s232 + $0x14] sm:$0xf] %vm224, 0
        %235 = vst.msk [vmem:[%s232 + $0x20] sm:$0xf] %vm224, 0
        %236 = vst.msk [vmem:[%s232 + $0x2c] sm:$0xf] %vm224, 0
        %237 = vst.msk [vmem:[%s232 + $0x38] sm:$0xf] %vm224, 0
        %238 = vst.msk [vmem:[%s232 + $0x44] sm:$0xf] %vm224, 0
        %239 = vst.msk [vmem:[%s232 + $0x50] sm:$0xf] %vm224, 0
        %240 = vst.msk [vmem:[%s232 + $0x5c] sm:$0xf] %vm224, 0
        %241 = vst.msk [vmem:[%s232 + $0x68] sm:$0xf] %vm224, 0
        %242 = vst.msk [vmem:[%s232 + $0x74] sm:$0xf] %vm224, 0
        %243 = vst.msk [vmem:[%s232 + $0x80] sm:$0xf] %vm224, 0
        %244 = vst.msk [vmem:[%s232 + $0x8c] sm:$0xf] %vm224, 0
        %245 = vst.msk [vmem:[%s232 + $0x98] sm:$0xf] %vm224, 0
        %246 = vst.msk [vmem:[%s232 + $0xa4] sm:$0xf] %vm224, 0
        %247 = vst.msk [vmem:[%s232 + $0xb0] sm:$0xf] %vm224, 0
        %248 = vst.msk [vmem:[%s232 + $0xbc] sm:$0xf] %vm224, 0
        %v249 = vld [vmem:[%s222] sm:$0xff]
        %v250 = vld [vmem:[%s222 + $0x8] sm:$0xff]
        %v251 = vld [vmem:[%s222 + $0x10] sm:$0xff]
        %v252 = vld [vmem:[%s222 + $0x18] sm:$0xff]
        %v253 = vld [vmem:[%s222 + $0x20] sm:$0xff]
        %v254 = vld [vmem:[%s222 + $0x28] sm:$0xff]
        %v255 = vld [vmem:[%s222 + $0x30] sm:$0xff]
        %v256 = vld [vmem:[%s222 + $0x38] sm:$0xff]
        %v257 = vld [vmem:[%s222 + $0x40] sm:$0xff]
        %v258 = vld [vmem:[%s222 + $0x48] sm:$0xff]
        %v259 = vld [vmem:[%s222 + $0x50] sm:$0xff]
        %v260 = vld [vmem:[%s222 + $0x58] sm:$0xff]
        %v261 = vld [vmem:[%s222 + $0x60] sm:$0xff]
        %v262 = vld [vmem:[%s222 + $0x68] sm:$0xff]
        %v263 = vld [vmem:[%s222 + $0x70] sm:$0xff]
        %v264 = vld [vmem:[%s222 + $0x78] sm:$0xff]
        %v265 = vld [vmem:[%s222 + $0x80] sm:$0xff]
        %v266 = vld [vmem:[%s222 + $0x88] sm:$0xff]
        %v267 = vld [vmem:[%s222 + $0x90] sm:$0xff]
        %v268 = vld [vmem:[%s222 + $0x98] sm:$0xff]
        %v269 = vld [vmem:[%s222 + $0xa0] sm:$0xff]
        %v270 = vld [vmem:[%s222 + $0xa8] sm:$0xff]
        %v271 = vld [vmem:[%s222 + $0xb0] sm:$0xff]
        %v272 = vld [vmem:[%s222 + $0xb8] sm:$0xff]
        %v273 = vld [vmem:[%s222 + $0xc0] sm:$0xff]
        %v274 = vld [vmem:[%s222 + $0xc8] sm:$0xff]
        %v275 = vld [vmem:[%s222 + $0xd0] sm:$0xff]
        %v276 = vld [vmem:[%s222 + $0xd8] sm:$0xff]
        %v277 = vld [vmem:[%s222 + $0xe0] sm:$0xff]
        %v278 = vld [vmem:[%s222 + $0xe8] sm:$0xff]
        %v279 = vld [vmem:[%s222 + $0xf0] sm:$0xff]
        %v280 = vld [vmem:[%s222 + $0xf8] sm:$0xff]
        %v281 = vpack.c.bf16 %v250, %v249
        %v282 = vpack.c.bf16 %v252, %v251
        %v283 = vpack.c.bf16 %v254, %v253
        %v284 = vpack.c.bf16 %v256, %v255
        %v285 = vpack.c.bf16 %v258, %v257
        %v286 = vpack.c.bf16 %v260, %v259
        %v287 = vpack.c.bf16 %v262, %v261
        %v288 = vpack.c.bf16 %v264, %v263
        %v289 = vpack.c.bf16 %v266, %v265
        %v290 = vpack.c.bf16 %v268, %v267
        %v291 = vpack.c.bf16 %v270, %v269
        %v292 = vpack.c.bf16 %v272, %v271
        %v293 = vpack.c.bf16 %v274, %v273
        %v294 = vpack.c.bf16 %v276, %v275
        %v295 = vpack.c.bf16 %v278, %v277
        %v296 = vpack.c.bf16 %v280, %v279
        %v313 = vunpack.c.l.b16 %v281
        %v314 = vunpack.c.h.b16 %v281
        %v315 = vunpack.c.l.b16 %v282
        %v316 = vunpack.c.h.b16 %v282
        %v317 = vunpack.c.l.b16 %v283
        %v318 = vunpack.c.h.b16 %v283
        %v319 = vunpack.c.l.b16 %v284
        %v320 = vunpack.c.h.b16 %v284
        %v321 = vunpack.c.l.b16 %v285
        %v322 = vunpack.c.h.b16 %v285
        %v323 = vunpack.c.l.b16 %v286
        %v324 = vunpack.c.h.b16 %v286
        %v325 = vunpack.c.l.b16 %v287
        %v326 = vunpack.c.h.b16 %v287
        %v327 = vunpack.c.l.b16 %v288
        %v328 = vunpack.c.h.b16 %v288
        %v329 = vunpack.c.l.b16 %v289
        %v330 = vunpack.c.h.b16 %v289
        %v331 = vunpack.c.l.b16 %v290
        %v332 = vunpack.c.h.b16 %v290
        %v333 = vunpack.c.l.b16 %v291
        %v334 = vunpack.c.h.b16 %v291
        %v335 = vunpack.c.l.b16 %v292
        %v336 = vunpack.c.h.b16 %v292
        %v337 = vunpack.c.l.b16 %v293
        %v338 = vunpack.c.h.b16 %v293
        %v339 = vunpack.c.l.b16 %v294
        %v340 = vunpack.c.h.b16 %v294
        %v341 = vunpack.c.l.b16 %v295
        %v342 = vunpack.c.h.b16 %v295
        %v343 = vunpack.c.l.b16 %v296
        %v344 = vunpack.c.h.b16 %v296
        %v345 = vpack.c.b16 %v313, %v313
        %v346 = vpack.c.b16 %v314, %v314
        %v347 = vpack.c.b16 %v315, %v315
        %v348 = vpack.c.b16 %v316, %v316
        %v349 = vpack.c.b16 %v317, %v317
        %v350 = vpack.c.b16 %v318, %v318
        %v351 = vpack.c.b16 %v319, %v319
        %v352 = vpack.c.b16 %v320, %v320
        %v353 = vpack.c.b16 %v321, %v321
        %v354 = vpack.c.b16 %v322, %v322
        %v355 = vpack.c.b16 %v323, %v323
        %v356 = vpack.c.b16 %v324, %v324
        %v357 = vpack.c.b16 %v325, %v325
        %v358 = vpack.c.b16 %v326, %v326
        %v359 = vpack.c.b16 %v327, %v327
        %v360 = vpack.c.b16 %v328, %v328
        %v361 = vpack.c.b16 %v329, %v329
        %v362 = vpack.c.b16 %v330, %v330
        %v363 = vpack.c.b16 %v331, %v331
        %v364 = vpack.c.b16 %v332, %v332
        %v365 = vpack.c.b16 %v333, %v333
        %v366 = vpack.c.b16 %v334, %v334
        %v367 = vpack.c.b16 %v335, %v335
        %v368 = vpack.c.b16 %v336, %v336
        %v369 = vpack.c.b16 %v337, %v337
        %v370 = vpack.c.b16 %v338, %v338
        %v371 = vpack.c.b16 %v339, %v339
        %v372 = vpack.c.b16 %v340, %v340
        %v373 = vpack.c.b16 %v341, %v341
        %v374 = vpack.c.b16 %v342, %v342
        %v375 = vpack.c.b16 %v343, %v343
        %v376 = vpack.c.b16 %v344, %v344
        %409 = vst.msk [vmem:[%s232] sm:$0xf] %vm224, %v345
        %410 = vst.msk [vmem:[%s232 + $0x4] sm:$0xf] %vm224, %v346
        %411 = vst.msk [vmem:[%s232 + $0xc] sm:$0xf] %vm224, %v347
        %412 = vst.msk [vmem:[%s232 + $0x10] sm:$0xf] %vm224, %v348
        %413 = vst.msk [vmem:[%s232 + $0x18] sm:$0xf] %vm224, %v349
        %414 = vst.msk [vmem:[%s232 + $0x1c] sm:$0xf] %vm224, %v350
        %415 = vst.msk [vmem:[%s232 + $0x24] sm:$0xf] %vm224, %v351
        %416 = vst.msk [vmem:[%s232 + $0x28] sm:$0xf] %vm224, %v352
        %417 = vst.msk [vmem:[%s232 + $0x30] sm:$0xf] %vm224, %v353
        %418 = vst.msk [vmem:[%s232 + $0x34] sm:$0xf] %vm224, %v354
        %419 = vst.msk [vmem:[%s232 + $0x3c] sm:$0xf] %vm224, %v355
        %420 = vst.msk [vmem:[%s232 + $0x40] sm:$0xf] %vm224, %v356
        %421 = vst.msk [vmem:[%s232 + $0x48] sm:$0xf] %vm224, %v357
        %422 = vst.msk [vmem:[%s232 + $0x4c] sm:$0xf] %vm224, %v358
        %423 = vst.msk [vmem:[%s232 + $0x54] sm:$0xf] %vm224, %v359
        %424 = vst.msk [vmem:[%s232 + $0x58] sm:$0xf] %vm224, %v360
        %425 = vst.msk [vmem:[%s232 + $0x60] sm:$0xf] %vm224, %v361
        %426 = vst.msk [vmem:[%s232 + $0x64] sm:$0xf] %vm224, %v362
        %427 = vst.msk [vmem:[%s232 + $0x6c] sm:$0xf] %vm224, %v363
        %428 = vst.msk [vmem:[%s232 + $0x70] sm:$0xf] %vm224, %v364
        %429 = vst.msk [vmem:[%s232 + $0x78] sm:$0xf] %vm224, %v365
        %430 = vst.msk [vmem:[%s232 + $0x7c] sm:$0xf] %vm224, %v366
        %431 = vst.msk [vmem:[%s232 + $0x84] sm:$0xf] %vm224, %v367
        %432 = vst.msk [vmem:[%s232 + $0x88] sm:$0xf] %vm224, %v368
        %433 = vst.msk [vmem:[%s232 + $0x90] sm:$0xf] %vm224, %v369
        %434 = vst.msk [vmem:[%s232 + $0x94] sm:$0xf] %vm224, %v370
        %435 = vst.msk [vmem:[%s232 + $0x9c] sm:$0xf] %vm224, %v371
        %436 = vst.msk [vmem:[%s232 + $0xa0] sm:$0xf] %vm224, %v372
        %437 = vst.msk [vmem:[%s232 + $0xa8] sm:$0xf] %vm224, %v373
        %438 = vst.msk [vmem:[%s232 + $0xac] sm:$0xf] %vm224, %v374
        %439 = vst.msk [vmem:[%s232 + $0xb4] sm:$0xf] %vm224, %v375
        %440 = vst.msk [vmem:[%s232 + $0xb8] sm:$0xf] %vm224, %v376
        %v441 = vld [vmem:[#allocation2] sm:$0xf]
        %v442 = vld [vmem:[#allocation2 + $0x4] sm:$0xf]
        %v443 = vld [vmem:[#allocation2 + $0x8] sm:$0xf]
        %v444 = vld [vmem:[#allocation2 + $0xc] sm:$0xf]
        %v445 = vld [vmem:[#allocation2 + $0x10] sm:$0xf]
        %v446 = vld [vmem:[#allocation2 + $0x14] sm:$0xf]
        %v447 = vld [vmem:[#allocation2 + $0x18] sm:$0xf]
        %v448 = vld [vmem:[#allocation2 + $0x1c] sm:$0xf]
        %v449 = vld [vmem:[#allocation2 + $0x20] sm:$0xf]
        %v450 = vld [vmem:[#allocation2 + $0x24] sm:$0xf]
        %v451 = vld [vmem:[#allocation2 + $0x28] sm:$0xf]
        %v452 = vld [vmem:[#allocation2 + $0x2c] sm:$0xf]
        %v453 = vld [vmem:[#allocation2 + $0x30] sm:$0xf]
        %v454 = vld [vmem:[#allocation2 + $0x34] sm:$0xf]
        %v455 = vld [vmem:[#allocation2 + $0x38] sm:$0xf]
        %v456 = vld [vmem:[#allocation2 + $0x3c] sm:$0xf]
        %v457 = vld [vmem:[#allocation2 + $0x40] sm:$0xf]
        %v458 = vld [vmem:[#allocation2 + $0x44] sm:$0xf]
        %v459 = vld [vmem:[#allocation2 + $0x48] sm:$0xf]
        %v460 = vld [vmem:[#allocation2 + $0x4c] sm:$0xf]
        %v461 = vld [vmem:[#allocation2 + $0x50] sm:$0xf]
        %v462 = vld [vmem:[#allocation2 + $0x54] sm:$0xf]
        %v463 = vld [vmem:[#allocation2 + $0x58] sm:$0xf]
        %v464 = vld [vmem:[#allocation2 + $0x5c] sm:$0xf]
        %v465 = vld [vmem:[#allocation2 + $0x60] sm:$0xf]
        %v466 = vld [vmem:[#allocation2 + $0x64] sm:$0xf]
        %v467 = vld [vmem:[#allocation2 + $0x68] sm:$0xf]
        %v468 = vld [vmem:[#allocation2 + $0x6c] sm:$0xf]
        %v469 = vld [vmem:[#allocation2 + $0x70] sm:$0xf]
        %v470 = vld [vmem:[#allocation2 + $0x74] sm:$0xf]
        %v471 = vld [vmem:[#allocation2 + $0x78] sm:$0xf]
        %v472 = vld [vmem:[#allocation2 + $0x7c] sm:$0xf]
        %v473 = vld [vmem:[#allocation2 + $0x80] sm:$0xf]
        %v474 = vld [vmem:[#allocation2 + $0x84] sm:$0xf]
        %v475 = vld [vmem:[#allocation2 + $0x88] sm:$0xf]
        %v476 = vld [vmem:[#allocation2 + $0x8c] sm:$0xf]
        %v477 = vld [vmem:[#allocation2 + $0x90] sm:$0xf]
        %v478 = vld [vmem:[#allocation2 + $0x94] sm:$0xf]
        %v479 = vld [vmem:[#allocation2 + $0x98] sm:$0xf]
        %v480 = vld [vmem:[#allocation2 + $0x9c] sm:$0xf]
        %v481 = vld [vmem:[#allocation2 + $0xa0] sm:$0xf]
        %v482 = vld [vmem:[#allocation2 + $0xa4] sm:$0xf]
        %v483 = vld [vmem:[#allocation2 + $0xa8] sm:$0xf]
        %v484 = vld [vmem:[#allocation2 + $0xac] sm:$0xf]
        %v485 = vld [vmem:[#allocation2 + $0xb0] sm:$0xf]
        %v486 = vld [vmem:[#allocation2 + $0xb4] sm:$0xf]
        %v487 = vld [vmem:[#allocation2 + $0xb8] sm:$0xf]
        %v488 = vld [vmem:[#allocation2 + $0xbc] sm:$0xf]
        %v537 = vunpack.c.l.b16 %v441
        %v538 = vunpack.c.l.b16 %v442
        %v539 = vunpack.c.l.b16 %v443
        %v540 = vunpack.c.l.b16 %v444
        %v541 = vunpack.c.l.b16 %v445
        %v542 = vunpack.c.l.b16 %v446
        %v543 = vunpack.c.l.b16 %v447
        %v544 = vunpack.c.l.b16 %v448
        %v545 = vunpack.c.l.b16 %v449
        %v546 = vunpack.c.l.b16 %v450
        %v547 = vunpack.c.l.b16 %v451
        %v548 = vunpack.c.l.b16 %v452
        %v549 = vunpack.c.l.b16 %v453
        %v550 = vunpack.c.l.b16 %v454
        %v551 = vunpack.c.l.b16 %v455
        %v552 = vunpack.c.l.b16 %v456
        %v553 = vunpack.c.l.b16 %v457
        %v554 = vunpack.c.l.b16 %v458
        %v555 = vunpack.c.l.b16 %v459
        %v556 = vunpack.c.l.b16 %v460
        %v557 = vunpack.c.l.b16 %v461
        %v558 = vunpack.c.l.b16 %v462
        %v559 = vunpack.c.l.b16 %v463
        %v560 = vunpack.c.l.b16 %v464
        %v561 = vunpack.c.l.b16 %v465
        %v562 = vunpack.c.l.b16 %v466
        %v563 = vunpack.c.l.b16 %v467
        %v564 = vunpack.c.l.b16 %v468
        %v565 = vunpack.c.l.b16 %v469
        %v566 = vunpack.c.l.b16 %v470
        %v567 = vunpack.c.l.b16 %v471
        %v568 = vunpack.c.l.b16 %v472
        %v569 = vunpack.c.l.b16 %v473
        %v570 = vunpack.c.l.b16 %v474
        %v571 = vunpack.c.l.b16 %v475
        %v572 = vunpack.c.l.b16 %v476
        %v573 = vunpack.c.l.b16 %v477
        %v574 = vunpack.c.l.b16 %v478
        %v575 = vunpack.c.l.b16 %v479
        %v576 = vunpack.c.l.b16 %v480
        %v577 = vunpack.c.l.b16 %v481
        %v578 = vunpack.c.l.b16 %v482
        %v579 = vunpack.c.l.b16 %v483
        %v580 = vunpack.c.l.b16 %v484
        %v581 = vunpack.c.l.b16 %v485
        %v582 = vunpack.c.l.b16 %v486
        %v583 = vunpack.c.l.b16 %v487
        %v584 = vunpack.c.l.b16 %v488
        %v585 = vpack.c.b16 %v538, %v537
        %v586 = vpack.c.b16 %v540, %v539
        %v587 = vpack.c.b16 %v542, %v541
        %v588 = vpack.c.b16 %v544, %v543
        %v589 = vpack.c.b16 %v546, %v545
        %v590 = vpack.c.b16 %v548, %v547
        %v591 = vpack.c.b16 %v550, %v549
        %v592 = vpack.c.b16 %v552, %v551
        %v593 = vpack.c.b16 %v554, %v553
        %v594 = vpack.c.b16 %v556, %v555
        %v595 = vpack.c.b16 %v558, %v557
        %v596 = vpack.c.b16 %v560, %v559
        %v597 = vpack.c.b16 %v562, %v561
        %v598 = vpack.c.b16 %v564, %v563
        %v599 = vpack.c.b16 %v566, %v565
        %v600 = vpack.c.b16 %v568, %v567
        %v601 = vpack.c.b16 %v570, %v569
        %v602 = vpack.c.b16 %v572, %v571
        %v603 = vpack.c.b16 %v574, %v573
        %v604 = vpack.c.b16 %v576, %v575
        %v605 = vpack.c.b16 %v578, %v577
        %v606 = vpack.c.b16 %v580, %v579
        %v607 = vpack.c.b16 %v582, %v581
        %v608 = vpack.c.b16 %v584, %v583
        %vm633 = vcmask 523264
        %634 = vst.msk [vmem:[#allocation3] sm:$0xff] %vm633, %v585
        %635 = vst.msk [vmem:[#allocation3 + $0x10] sm:$0xff] %vm633, %v586
        %636 = vst.msk [vmem:[#allocation3 + $0x20] sm:$0xff] %vm633, %v587
        %637 = vst.msk [vmem:[#allocation3 + $0x30] sm:$0xff] %vm633, %v588
        %638 = vst.msk [vmem:[#allocation3 + $0x40] sm:$0xff] %vm633, %v589
        %639 = vst.msk [vmem:[#allocation3 + $0x50] sm:$0xff] %vm633, %v590
        %640 = vst.msk [vmem:[#allocation3 + $0x60] sm:$0xff] %vm633, %v591
        %641 = vst.msk [vmem:[#allocation3 + $0x70] sm:$0xff] %vm633, %v592
        %642 = vst.msk [vmem:[#allocation3 + $0x80] sm:$0xff] %vm633, %v593
        %643 = vst.msk [vmem:[#allocation3 + $0x90] sm:$0xff] %vm633, %v594
        %644 = vst.msk [vmem:[#allocation3 + $0xa0] sm:$0xff] %vm633, %v595
        %645 = vst.msk [vmem:[#allocation3 + $0xb0] sm:$0xff] %vm633, %v596
        %646 = vst.msk [vmem:[#allocation3 + $0xc0] sm:$0xff] %vm633, %v597
        %647 = vst.msk [vmem:[#allocation3 + $0xd0] sm:$0xff] %vm633, %v598
        %648 = vst.msk [vmem:[#allocation3 + $0xe0] sm:$0xff] %vm633, %v599
        %649 = vst.msk [vmem:[#allocation3 + $0xf0] sm:$0xff] %vm633, %v600
        %650 = vst.msk [vmem:[#allocation3 + $0x100] sm:$0xff] %vm633, %v601
        %651 = vst.msk [vmem:[#allocation3 + $0x110] sm:$0xff] %vm633, %v602
        %652 = vst.msk [vmem:[#allocation3 + $0x120] sm:$0xff] %vm633, %v603
        %653 = vst.msk [vmem:[#allocation3 + $0x130] sm:$0xff] %vm633, %v604
        %654 = vst.msk [vmem:[#allocation3 + $0x140] sm:$0xff] %vm633, %v605
        %655 = vst.msk [vmem:[#allocation3 + $0x150] sm:$0xff] %vm633, %v606
        %656 = vst.msk [vmem:[#allocation3 + $0x160] sm:$0xff] %vm633, %v607
        %657 = vst.msk [vmem:[#allocation3 + $0x170] sm:$0xff] %vm633, %v608
        %v658 = vld [vmem:[%s232] sm:$0xf]
        %v659 = vld [vmem:[%s232 + $0x4] sm:$0xf]
        %v660 = vld [vmem:[%s232 + $0x8] sm:$0xf]
        %v661 = vld [vmem:[%s232 + $0xc] sm:$0xf]
        %v662 = vld [vmem:[%s232 + $0x10] sm:$0xf]
        %v663 = vld [vmem:[%s232 + $0x14] sm:$0xf]
        %v664 = vld [vmem:[%s232 + $0x18] sm:$0xf]
        %v665 = vld [vmem:[%s232 + $0x1c] sm:$0xf]
        %v666 = vld [vmem:[%s232 + $0x20] sm:$0xf]
        %v667 = vld [vmem:[%s232 + $0x24] sm:$0xf]
        %v668 = vld [vmem:[%s232 + $0x28] sm:$0xf]
        %v669 = vld [vmem:[%s232 + $0x2c] sm:$0xf]
        %v670 = vld [vmem:[%s232 + $0x30] sm:$0xf]
        %v671 = vld [vmem:[%s232 + $0x34] sm:$0xf]
        %v672 = vld [vmem:[%s232 + $0x38] sm:$0xf]
        %v673 = vld [vmem:[%s232 + $0x3c] sm:$0xf]
        %v674 = vld [vmem:[%s232 + $0x40] sm:$0xf]
        %v675 = vld [vmem:[%s232 + $0x44] sm:$0xf]
        %v676 = vld [vmem:[%s232 + $0x48] sm:$0xf]
        %v677 = vld [vmem:[%s232 + $0x4c] sm:$0xf]
        %v678 = vld [vmem:[%s232 + $0x50] sm:$0xf]
        %v679 = vld [vmem:[%s232 + $0x54] sm:$0xf]
        %v680 = vld [vmem:[%s232 + $0x58] sm:$0xf]
        %v681 = vld [vmem:[%s232 + $0x5c] sm:$0xf]
        %v682 = vld [vmem:[%s232 + $0x60] sm:$0xf]
        %v683 = vld [vmem:[%s232 + $0x64] sm:$0xf]
        %v684 = vld [vmem:[%s232 + $0x68] sm:$0xf]
        %v685 = vld [vmem:[%s232 + $0x6c] sm:$0xf]
        %v686 = vld [vmem:[%s232 + $0x70] sm:$0xf]
        %v687 = vld [vmem:[%s232 + $0x74] sm:$0xf]
        %v688 = vld [vmem:[%s232 + $0x78] sm:$0xf]
        %v689 = vld [vmem:[%s232 + $0x7c] sm:$0xf]
        %v690 = vld [vmem:[%s232 + $0x80] sm:$0xf]
        %v691 = vld [vmem:[%s232 + $0x84] sm:$0xf]
        %v692 = vld [vmem:[%s232 + $0x88] sm:$0xf]
        %v693 = vld [vmem:[%s232 + $0x8c] sm:$0xf]
        %v694 = vld [vmem:[%s232 + $0x90] sm:$0xf]
        %v695 = vld [vmem:[%s232 + $0x94] sm:$0xf]
        %v696 = vld [vmem:[%s232 + $0x98] sm:$0xf]
        %v697 = vld [vmem:[%s232 + $0x9c] sm:$0xf]
        %v698 = vld [vmem:[%s232 + $0xa0] sm:$0xf]
        %v699 = vld [vmem:[%s232 + $0xa4] sm:$0xf]
        %v700 = vld [vmem:[%s232 + $0xa8] sm:$0xf]
        %v701 = vld [vmem:[%s232 + $0xac] sm:$0xf]
        %v702 = vld [vmem:[%s232 + $0xb0] sm:$0xf]
        %v703 = vld [vmem:[%s232 + $0xb4] sm:$0xf]
        %v704 = vld [vmem:[%s232 + $0xb8] sm:$0xf]
        %v705 = vld [vmem:[%s232 + $0xbc] sm:$0xf]
        %v754 = vunpack.c.l.b16 %v658
        %v755 = vunpack.c.l.b16 %v659
        %v756 = vunpack.c.l.b16 %v660
        %v757 = vunpack.c.l.b16 %v661
        %v758 = vunpack.c.l.b16 %v662
        %v759 = vunpack.c.l.b16 %v663
        %v760 = vunpack.c.l.b16 %v664
        %v761 = vunpack.c.l.b16 %v665
        %v762 = vunpack.c.l.b16 %v666
        %v763 = vunpack.c.l.b16 %v667
        %v764 = vunpack.c.l.b16 %v668
        %v765 = vunpack.c.l.b16 %v669
        %v766 = vunpack.c.l.b16 %v670
        %v767 = vunpack.c.l.b16 %v671
        %v768 = vunpack.c.l.b16 %v672
        %v769 = vunpack.c.l.b16 %v673
        %v770 = vunpack.c.l.b16 %v674
        %v771 = vunpack.c.l.b16 %v675
        %v772 = vunpack.c.l.b16 %v676
        %v773 = vunpack.c.l.b16 %v677
        %v774 = vunpack.c.l.b16 %v678
        %v775 = vunpack.c.l.b16 %v679
        %v776 = vunpack.c.l.b16 %v680
        %v777 = vunpack.c.l.b16 %v681
        %v778 = vunpack.c.l.b16 %v682
        %v779 = vunpack.c.l.b16 %v683
        %v780 = vunpack.c.l.b16 %v684
        %v781 = vunpack.c.l.b16 %v685
        %v782 = vunpack.c.l.b16 %v686
        %v783 = vunpack.c.l.b16 %v687
        %v784 = vunpack.c.l.b16 %v688
        %v785 = vunpack.c.l.b16 %v689
        %v786 = vunpack.c.l.b16 %v690
        %v787 = vunpack.c.l.b16 %v691
        %v788 = vunpack.c.l.b16 %v692
        %v789 = vunpack.c.l.b16 %v693
        %v790 = vunpack.c.l.b16 %v694
        %v791 = vunpack.c.l.b16 %v695
        %v792 = vunpack.c.l.b16 %v696
        %v793 = vunpack.c.l.b16 %v697
        %v794 = vunpack.c.l.b16 %v698
        %v795 = vunpack.c.l.b16 %v699
        %v796 = vunpack.c.l.b16 %v700
        %v797 = vunpack.c.l.b16 %v701
        %v798 = vunpack.c.l.b16 %v702
        %v799 = vunpack.c.l.b16 %v703
        %v800 = vunpack.c.l.b16 %v704
        %v801 = vunpack.c.l.b16 %v705
        %v802 = vpack.c.b16 %v755, %v754
        %v803 = vpack.c.b16 %v757, %v756
        %v804 = vpack.c.b16 %v759, %v758
        %v805 = vpack.c.b16 %v761, %v760
        %v806 = vpack.c.b16 %v763, %v762
        %v807 = vpack.c.b16 %v765, %v764
        %v808 = vpack.c.b16 %v767, %v766
        %v809 = vpack.c.b16 %v769, %v768
        %v810 = vpack.c.b16 %v771, %v770
        %v811 = vpack.c.b16 %v773, %v772
        %v812 = vpack.c.b16 %v775, %v774
        %v813 = vpack.c.b16 %v777, %v776
        %v814 = vpack.c.b16 %v779, %v778
        %v815 = vpack.c.b16 %v781, %v780
        %v816 = vpack.c.b16 %v783, %v782
        %v817 = vpack.c.b16 %v785, %v784
        %v818 = vpack.c.b16 %v787, %v786
        %v819 = vpack.c.b16 %v789, %v788
        %v820 = vpack.c.b16 %v791, %v790
        %v821 = vpack.c.b16 %v793, %v792
        %v822 = vpack.c.b16 %v795, %v794
        %v823 = vpack.c.b16 %v797, %v796
        %v824 = vpack.c.b16 %v799, %v798
        %v825 = vpack.c.b16 %v801, %v800
        %826 = vrot.lane.b32.xlu0 %v802, 64
        %v827 = vpop.permute.xlu0 %826
        %828 = vrot.lane.b32.xlu0 %v803, 64
        %v829 = vpop.permute.xlu0 %828
        %830 = vrot.lane.b32.xlu0 %v804, 64
        %v831 = vpop.permute.xlu0 %830
        %832 = vrot.lane.b32.xlu0 %v805, 64
        %v833 = vpop.permute.xlu0 %832
        %834 = vrot.lane.b32.xlu0 %v806, 64
        %v835 = vpop.permute.xlu0 %834
        %836 = vrot.lane.b32.xlu0 %v807, 64
        %v837 = vpop.permute.xlu0 %836
        %838 = vrot.lane.b32.xlu0 %v808, 64
        %v839 = vpop.permute.xlu0 %838
        %840 = vrot.lane.b32.xlu0 %v809, 64
        %v841 = vpop.permute.xlu0 %840
        %842 = vrot.lane.b32.xlu0 %v810, 64
        %v843 = vpop.permute.xlu0 %842
        %844 = vrot.lane.b32.xlu0 %v811, 64
        %v845 = vpop.permute.xlu0 %844
        %846 = vrot.lane.b32.xlu0 %v812, 64
        %v847 = vpop.permute.xlu0 %846
        %848 = vrot.lane.b32.xlu0 %v813, 64
        %v849 = vpop.permute.xlu0 %848
        %850 = vrot.lane.b32.xlu0 %v814, 64
        %v851 = vpop.permute.xlu0 %850
        %852 = vrot.lane.b32.xlu0 %v815, 64
        %v853 = vpop.permute.xlu0 %852
        %854 = vrot.lane.b32.xlu0 %v816, 64
        %v855 = vpop.permute.xlu0 %854
        %856 = vrot.lane.b32.xlu0 %v817, 64
        %v857 = vpop.permute.xlu0 %856
        %858 = vrot.lane.b32.xlu0 %v818, 64
        %v859 = vpop.permute.xlu0 %858
        %860 = vrot.lane.b32.xlu0 %v819, 64
        %v861 = vpop.permute.xlu0 %860
        %862 = vrot.lane.b32.xlu0 %v820, 64
        %v863 = vpop.permute.xlu0 %862
        %864 = vrot.lane.b32.xlu0 %v821, 64
        %v865 = vpop.permute.xlu0 %864
        %866 = vrot.lane.b32.xlu0 %v822, 64
        %v867 = vpop.permute.xlu0 %866
        %868 = vrot.lane.b32.xlu0 %v823, 64
        %v869 = vpop.permute.xlu0 %868
        %870 = vrot.lane.b32.xlu0 %v824, 64
        %v871 = vpop.permute.xlu0 %870
        %872 = vrot.lane.b32.xlu0 %v825, 64
        %v873 = vpop.permute.xlu0 %872
        %vm898 = vcmask 1048064
        %899 = vst.msk [vmem:[#allocation3] sm:$0xff] %vm898, %v827
        %900 = vst.msk [vmem:[#allocation3 + $0x10] sm:$0xff] %vm898, %v829
        %901 = vst.msk [vmem:[#allocation3 + $0x20] sm:$0xff] %vm898, %v831
        %902 = vst.msk [vmem:[#allocation3 + $0x30] sm:$0xff] %vm898, %v833
        %903 = vst.msk [vmem:[#allocation3 + $0x40] sm:$0xff] %vm898, %v835
        %904 = vst.msk [vmem:[#allocation3 + $0x50] sm:$0xff] %vm898, %v837
        %905 = vst.msk [vmem:[#allocation3 + $0x60] sm:$0xff] %vm898, %v839
        %906 = vst.msk [vmem:[#allocation3 + $0x70] sm:$0xff] %vm898, %v841
        %907 = vst.msk [vmem:[#allocation3 + $0x80] sm:$0xff] %vm898, %v843
        %908 = vst.msk [vmem:[#allocation3 + $0x90] sm:$0xff] %vm898, %v845
        %909 = vst.msk [vmem:[#allocation3 + $0xa0] sm:$0xff] %vm898, %v847
        %910 = vst.msk [vmem:[#allocation3 + $0xb0] sm:$0xff] %vm898, %v849
        %911 = vst.msk [vmem:[#allocation3 + $0xc0] sm:$0xff] %vm898, %v851
        %912 = vst.msk [vmem:[#allocation3 + $0xd0] sm:$0xff] %vm898, %v853
        %913 = vst.msk [vmem:[#allocation3 + $0xe0] sm:$0xff] %vm898, %v855
        %914 = vst.msk [vmem:[#allocation3 + $0xf0] sm:$0xff] %vm898, %v857
        %915 = vst.msk [vmem:[#allocation3 + $0x100] sm:$0xff] %vm898, %v859
        %916 = vst.msk [vmem:[#allocation3 + $0x110] sm:$0xff] %vm898, %v861
        %917 = vst.msk [vmem:[#allocation3 + $0x120] sm:$0xff] %vm898, %v863
        %918 = vst.msk [vmem:[#allocation3 + $0x130] sm:$0xff] %vm898, %v865
        %919 = vst.msk [vmem:[#allocation3 + $0x140] sm:$0xff] %vm898, %v867
        %920 = vst.msk [vmem:[#allocation3 + $0x150] sm:$0xff] %vm898, %v869
        %921 = vst.msk [vmem:[#allocation3 + $0x160] sm:$0xff] %vm898, %v871
        %922 = vst.msk [vmem:[#allocation3 + $0x170] sm:$0xff] %vm898, %v873
        %s923 = scalar_lea.vmem [#allocation2], 24
        %v924 = vld [vmem:[%s923] sm:$0xf]
        %v925 = vld [vmem:[%s923 + $0x4] sm:$0xf]
        %v926 = vld [vmem:[%s923 + $0x8] sm:$0xf]
        %v927 = vld [vmem:[%s923 + $0xc] sm:$0xf]
        %v928 = vld [vmem:[%s923 + $0x10] sm:$0xf]
        %v929 = vld [vmem:[%s923 + $0x14] sm:$0xf]
        %v930 = vld [vmem:[%s923 + $0x18] sm:$0xf]
        %v931 = vld [vmem:[%s923 + $0x1c] sm:$0xf]
        %v932 = vld [vmem:[%s923 + $0x20] sm:$0xf]
        %v933 = vld [vmem:[%s923 + $0x24] sm:$0xf]
        %v934 = vld [vmem:[%s923 + $0x28] sm:$0xf]
        %v935 = vld [vmem:[%s923 + $0x2c] sm:$0xf]
        %v936 = vld [vmem:[%s923 + $0x30] sm:$0xf]
        %v937 = vld [vmem:[%s923 + $0x34] sm:$0xf]
        %v938 = vld [vmem:[%s923 + $0x38] sm:$0xf]
        %v939 = vld [vmem:[%s923 + $0x3c] sm:$0xf]
        %v940 = vld [vmem:[%s923 + $0x40] sm:$0xf]
        %v941 = vld [vmem:[%s923 + $0x44] sm:$0xf]
        %v942 = vld [vmem:[%s923 + $0x48] sm:$0xf]
        %v943 = vld [vmem:[%s923 + $0x4c] sm:$0xf]
        %v944 = vld [vmem:[%s923 + $0x50] sm:$0xf]
        %v945 = vld [vmem:[%s923 + $0x54] sm:$0xf]
        %v946 = vld [vmem:[%s923 + $0x58] sm:$0xf]
        %v947 = vld [vmem:[%s923 + $0x5c] sm:$0xf]
        %v948 = vld [vmem:[%s923 + $0x60] sm:$0xf]
        %v949 = vld [vmem:[%s923 + $0x64] sm:$0xf]
        %v950 = vld [vmem:[%s923 + $0x68] sm:$0xf]
        %v951 = vld [vmem:[%s923 + $0x6c] sm:$0xf]
        %v952 = vld [vmem:[%s923 + $0x70] sm:$0xf]
        %v953 = vld [vmem:[%s923 + $0x74] sm:$0xf]
        %v954 = vld [vmem:[%s923 + $0x78] sm:$0xf]
        %v955 = vld [vmem:[%s923 + $0x7c] sm:$0xf]
        %v956 = vld [vmem:[%s923 + $0x80] sm:$0xf]
        %v957 = vld [vmem:[%s923 + $0x84] sm:$0xf]
        %v958 = vld [vmem:[%s923 + $0x88] sm:$0xf]
        %v959 = vld [vmem:[%s923 + $0x8c] sm:$0xf]
        %v960 = vld [vmem:[%s923 + $0x90] sm:$0xf]
        %v961 = vld [vmem:[%s923 + $0x94] sm:$0xf]
        %v962 = vld [vmem:[%s923 + $0x98] sm:$0xf]
        %v963 = vld [vmem:[%s923 + $0x9c] sm:$0xf]
        %v964 = vld [vmem:[%s923 + $0xa0] sm:$0xf]
        %v965 = vld [vmem:[%s923 + $0xa4] sm:$0xf]
        %v966 = vld [vmem:[%s923 + $0xa8] sm:$0xf]
        %v967 = vld [vmem:[%s923 + $0xac] sm:$0xf]
        %v968 = vld [vmem:[%s923 + $0xb0] sm:$0xf]
        %v969 = vld [vmem:[%s923 + $0xb4] sm:$0xf]
        %v970 = vld [vmem:[%s923 + $0xb8] sm:$0xf]
        %v971 = vld [vmem:[%s923 + $0xbc] sm:$0xf]
        %v1020 = vunpack.c.l.b16 %v924
        %v1021 = vunpack.c.l.b16 %v925
        %v1022 = vunpack.c.l.b16 %v926
        %v1023 = vunpack.c.l.b16 %v927
        %v1024 = vunpack.c.l.b16 %v928
        %v1025 = vunpack.c.l.b16 %v929
        %v1026 = vunpack.c.l.b16 %v930
        %v1027 = vunpack.c.l.b16 %v931
        %v1028 = vunpack.c.l.b16 %v932
        %v1029 = vunpack.c.l.b16 %v933
        %v1030 = vunpack.c.l.b16 %v934
        %v1031 = vunpack.c.l.b16 %v935
        %v1032 = vunpack.c.l.b16 %v936
        %v1033 = vunpack.c.l.b16 %v937
        %v1034 = vunpack.c.l.b16 %v938
        %v1035 = vunpack.c.l.b16 %v939
        %v1036 = vunpack.c.l.b16 %v940
        %v1037 = vunpack.c.l.b16 %v941
        %v1038 = vunpack.c.l.b16 %v942
        %v1039 = vunpack.c.l.b16 %v943
        %v1040 = vunpack.c.l.b16 %v944
        %v1041 = vunpack.c.l.b16 %v945
        %v1042 = vunpack.c.l.b16 %v946
        %v1043 = vunpack.c.l.b16 %v947
        %v1044 = vunpack.c.l.b16 %v948
        %v1045 = vunpack.c.l.b16 %v949
        %v1046 = vunpack.c.l.b16 %v950
        %v1047 = vunpack.c.l.b16 %v951
        %v1048 = vunpack.c.l.b16 %v952
        %v1049 = vunpack.c.l.b16 %v953
        %v1050 = vunpack.c.l.b16 %v954
        %v1051 = vunpack.c.l.b16 %v955
        %v1052 = vunpack.c.l.b16 %v956
        %v1053 = vunpack.c.l.b16 %v957
        %v1054 = vunpack.c.l.b16 %v958
        %v1055 = vunpack.c.l.b16 %v959
        %v1056 = vunpack.c.l.b16 %v960
        %v1057 = vunpack.c.l.b16 %v961
        %v1058 = vunpack.c.l.b16 %v962
        %v1059 = vunpack.c.l.b16 %v963
        %v1060 = vunpack.c.l.b16 %v964
        %v1061 = vunpack.c.l.b16 %v965
        %v1062 = vunpack.c.l.b16 %v966
        %v1063 = vunpack.c.l.b16 %v967
        %v1064 = vunpack.c.l.b16 %v968
        %v1065 = vunpack.c.l.b16 %v969
        %v1066 = vunpack.c.l.b16 %v970
        %v1067 = vunpack.c.l.b16 %v971
        %v1068 = vpack.c.b16 %v1021, %v1020
        %v1069 = vpack.c.b16 %v1023, %v1022
        %v1070 = vpack.c.b16 %v1025, %v1024
        %v1071 = vpack.c.b16 %v1027, %v1026
        %v1072 = vpack.c.b16 %v1029, %v1028
        %v1073 = vpack.c.b16 %v1031, %v1030
        %v1074 = vpack.c.b16 %v1033, %v1032
        %v1075 = vpack.c.b16 %v1035, %v1034
        %v1076 = vpack.c.b16 %v1037, %v1036
        %v1077 = vpack.c.b16 %v1039, %v1038
        %v1078 = vpack.c.b16 %v1041, %v1040
        %v1079 = vpack.c.b16 %v1043, %v1042
        %v1080 = vpack.c.b16 %v1045, %v1044
        %v1081 = vpack.c.b16 %v1047, %v1046
        %v1082 = vpack.c.b16 %v1049, %v1048
        %v1083 = vpack.c.b16 %v1051, %v1050
        %v1084 = vpack.c.b16 %v1053, %v1052
        %v1085 = vpack.c.b16 %v1055, %v1054
        %v1086 = vpack.c.b16 %v1057, %v1056
        %v1087 = vpack.c.b16 %v1059, %v1058
        %v1088 = vpack.c.b16 %v1061, %v1060
        %v1089 = vpack.c.b16 %v1063, %v1062
        %v1090 = vpack.c.b16 %v1065, %v1064
        %v1091 = vpack.c.b16 %v1067, %v1066
        %1116 = vst.msk [vmem:[#allocation3 + $0x8] sm:$0xff] %vm633, %v1068
        %1117 = vst.msk [vmem:[#allocation3 + $0x18] sm:$0xff] %vm633, %v1069
        %1118 = vst.msk [vmem:[#allocation3 + $0x28] sm:$0xff] %vm633, %v1070
        %1119 = vst.msk [vmem:[#allocation3 + $0x38] sm:$0xff] %vm633, %v1071
        %1120 = vst.msk [vmem:[#allocation3 + $0x48] sm:$0xff] %vm633, %v1072
        %1121 = vst.msk [vmem:[#allocation3 + $0x58] sm:$0xff] %vm633, %v1073
        %1122 = vst.msk [vmem:[#allocation3 + $0x68] sm:$0xff] %vm633, %v1074
        %1123 = vst.msk [vmem:[#allocation3 + $0x78] sm:$0xff] %vm633, %v1075
        %1124 = vst.msk [vmem:[#allocation3 + $0x88] sm:$0xff] %vm633, %v1076
        %1125 = vst.msk [vmem:[#allocation3 + $0x98] sm:$0xff] %vm633, %v1077
        %1126 = vst.msk [vmem:[#allocation3 + $0xa8] sm:$0xff] %vm633, %v1078
        %1127 = vst.msk [vmem:[#allocation3 + $0xb8] sm:$0xff] %vm633, %v1079
        %1128 = vst.msk [vmem:[#allocation3 + $0xc8] sm:$0xff] %vm633, %v1080
        %1129 = vst.msk [vmem:[#allocation3 + $0xd8] sm:$0xff] %vm633, %v1081
        %1130 = vst.msk [vmem:[#allocation3 + $0xe8] sm:$0xff] %vm633, %v1082
        %1131 = vst.msk [vmem:[#allocation3 + $0xf8] sm:$0xff] %vm633, %v1083
        %1132 = vst.msk [vmem:[#allocation3 + $0x108] sm:$0xff] %vm633, %v1084
        %1133 = vst.msk [vmem:[#allocation3 + $0x118] sm:$0xff] %vm633, %v1085
        %1134 = vst.msk [vmem:[#allocation3 + $0x128] sm:$0xff] %vm633, %v1086
        %1135 = vst.msk [vmem:[#allocation3 + $0x138] sm:$0xff] %vm633, %v1087
        %1136 = vst.msk [vmem:[#allocation3 + $0x148] sm:$0xff] %vm633, %v1088
        %1137 = vst.msk [vmem:[#allocation3 + $0x158] sm:$0xff] %vm633, %v1089
        %1138 = vst.msk [vmem:[#allocation3 + $0x168] sm:$0xff] %vm633, %v1090
        %1139 = vst.msk [vmem:[#allocation3 + $0x178] sm:$0xff] %vm633, %v1091
        %v1140 = vld [vmem:[#allocation3] sm:$0xff]
        %v1141 = vld [vmem:[#allocation3 + $0x8] sm:$0xff]
        %v1142 = vld [vmem:[#allocation3 + $0x10] sm:$0xff]
        %v1143 = vld [vmem:[#allocation3 + $0x18] sm:$0xff]
        %v1144 = vld [vmem:[#allocation3 + $0x20] sm:$0xff]
        %v1145 = vld [vmem:[#allocation3 + $0x28] sm:$0xff]
        %v1146 = vld [vmem:[#allocation3 + $0x30] sm:$0xff]
        %v1147 = vld [vmem:[#allocation3 + $0x38] sm:$0xff]
        %v1148 = vld [vmem:[#allocation3 + $0x40] sm:$0xff]
        %v1149 = vld [vmem:[#allocation3 + $0x48] sm:$0xff]
        %v1150 = vld [vmem:[#allocation3 + $0x50] sm:$0xff]
        %v1151 = vld [vmem:[#allocation3 + $0x58] sm:$0xff]
        %v1152 = vld [vmem:[#allocation3 + $0x60] sm:$0xff]
        %v1153 = vld [vmem:[#allocation3 + $0x68] sm:$0xff]
        %v1154 = vld [vmem:[#allocation3 + $0x70] sm:$0xff]
        %v1155 = vld [vmem:[#allocation3 + $0x78] sm:$0xff]
        %v1156 = vld [vmem:[#allocation3 + $0x80] sm:$0xff]
        %v1157 = vld [vmem:[#allocation3 + $0x88] sm:$0xff]
        %v1158 = vld [vmem:[#allocation3 + $0x90] sm:$0xff]
        %v1159 = vld [vmem:[#allocation3 + $0x98] sm:$0xff]
        %v1160 = vld [vmem:[#allocation3 + $0xa0] sm:$0xff]
        %v1161 = vld [vmem:[#allocation3 + $0xa8] sm:$0xff]
        %v1162 = vld [vmem:[#allocation3 + $0xb0] sm:$0xff]
        %v1163 = vld [vmem:[#allocation3 + $0xb8] sm:$0xff]
        %v1164 = vld [vmem:[#allocation3 + $0xc0] sm:$0xff]
        %v1165 = vld [vmem:[#allocation3 + $0xc8] sm:$0xff]
        %v1166 = vld [vmem:[#allocation3 + $0xd0] sm:$0xff]
        %v1167 = vld [vmem:[#allocation3 + $0xd8] sm:$0xff]
        %v1168 = vld [vmem:[#allocation3 + $0xe0] sm:$0xff]
        %v1169 = vld [vmem:[#allocation3 + $0xe8] sm:$0xff]
        %v1170 = vld [vmem:[#allocation3 + $0xf0] sm:$0xff]
        %v1171 = vld [vmem:[#allocation3 + $0xf8] sm:$0xff]
        %v1172 = vld [vmem:[#allocation3 + $0x100] sm:$0xff]
        %v1173 = vld [vmem:[#allocation3 + $0x108] sm:$0xff]
        %v1174 = vld [vmem:[#allocation3 + $0x110] sm:$0xff]
        %v1175 = vld [vmem:[#allocation3 + $0x118] sm:$0xff]
        %v1176 = vld [vmem:[#allocation3 + $0x120] sm:$0xff]
        %v1177 = vld [vmem:[#allocation3 + $0x128] sm:$0xff]
        %v1178 = vld [vmem:[#allocation3 + $0x130] sm:$0xff]
        %v1179 = vld [vmem:[#allocation3 + $0x138] sm:$0xff]
        %v1180 = vld [vmem:[#allocation3 + $0x140] sm:$0xff]
        %v1181 = vld [vmem:[#allocation3 + $0x148] sm:$0xff]
        %v1182 = vld [vmem:[#allocation3 + $0x150] sm:$0xff]
        %v1183 = vld [vmem:[#allocation3 + $0x158] sm:$0xff]
        %v1184 = vld [vmem:[#allocation3 + $0x160] sm:$0xff]
        %v1185 = vld [vmem:[#allocation3 + $0x168] sm:$0xff]
        %v1186 = vld [vmem:[#allocation3 + $0x170] sm:$0xff]
        %v1187 = vld [vmem:[#allocation3 + $0x178] sm:$0xff]
        %v1188 = vld [vmem:[%s1] sm:$0xff]
        %v1189 = vld [vmem:[%s1 + $0x8] sm:$0xff]
        %v1190 = vld [vmem:[%s1 + $0x10] sm:$0xff]
        %v1191 = vld [vmem:[%s1 + $0x18] sm:$0xff]
        %v1192 = vld [vmem:[%s1 + $0x20] sm:$0xff]
        %v1193 = vld [vmem:[%s1 + $0x28] sm:$0xff]
        %v1194 = vld [vmem:[%s1 + $0x30] sm:$0xff]
        %v1195 = vld [vmem:[%s1 + $0x38] sm:$0xff]
        %v1196 = vld [vmem:[%s1 + $0x40] sm:$0xff]
        %v1197 = vld [vmem:[%s1 + $0x48] sm:$0xff]
        %v1198 = vld [vmem:[%s1 + $0x50] sm:$0xff]
        %v1199 = vld [vmem:[%s1 + $0x58] sm:$0xff]
        %v1200 = vld [vmem:[%s1 + $0x60] sm:$0xff]
        %v1201 = vld [vmem:[%s1 + $0x68] sm:$0xff]
        %v1202 = vld [vmem:[%s1 + $0x70] sm:$0xff]
        %v1203 = vld [vmem:[%s1 + $0x78] sm:$0xff]
        %v1204 = vld [vmem:[%s1 + $0x80] sm:$0xff]
        %v1205 = vld [vmem:[%s1 + $0x88] sm:$0xff]
        %v1206 = vld [vmem:[%s1 + $0x90] sm:$0xff]
        %v1207 = vld [vmem:[%s1 + $0x98] sm:$0xff]
        %v1208 = vld [vmem:[%s1 + $0xa0] sm:$0xff]
        %v1209 = vld [vmem:[%s1 + $0xa8] sm:$0xff]
        %v1210 = vld [vmem:[%s1 + $0xb0] sm:$0xff]
        %v1211 = vld [vmem:[%s1 + $0xb8] sm:$0xff]
        %v1236 = vunpack.c.l.b16 %v1188
        %v1237 = vunpack.c.h.b16 %v1188
        %v1238 = vunpack.c.l.b16 %v1189
        %v1239 = vunpack.c.h.b16 %v1189
        %v1240 = vunpack.c.l.b16 %v1190
        %v1241 = vunpack.c.h.b16 %v1190
        %v1242 = vunpack.c.l.b16 %v1191
        %v1243 = vunpack.c.h.b16 %v1191
        %v1244 = vunpack.c.l.b16 %v1192
        %v1245 = vunpack.c.h.b16 %v1192
        %v1246 = vunpack.c.l.b16 %v1193
        %v1247 = vunpack.c.h.b16 %v1193
        %v1248 = vunpack.c.l.b16 %v1194
        %v1249 = vunpack.c.h.b16 %v1194
        %v1250 = vunpack.c.l.b16 %v1195
        %v1251 = vunpack.c.h.b16 %v1195
        %v1252 = vunpack.c.l.b16 %v1196
        %v1253 = vunpack.c.h.b16 %v1196
        %v1254 = vunpack.c.l.b16 %v1197
        %v1255 = vunpack.c.h.b16 %v1197
        %v1256 = vunpack.c.l.b16 %v1198
        %v1257 = vunpack.c.h.b16 %v1198
        %v1258 = vunpack.c.l.b16 %v1199
        %v1259 = vunpack.c.h.b16 %v1199
        %v1260 = vunpack.c.l.b16 %v1200
        %v1261 = vunpack.c.h.b16 %v1200
        %v1262 = vunpack.c.l.b16 %v1201
        %v1263 = vunpack.c.h.b16 %v1201
        %v1264 = vunpack.c.l.b16 %v1202
        %v1265 = vunpack.c.h.b16 %v1202
        %v1266 = vunpack.c.l.b16 %v1203
        %v1267 = vunpack.c.h.b16 %v1203
        %v1268 = vunpack.c.l.b16 %v1204
        %v1269 = vunpack.c.h.b16 %v1204
        %v1270 = vunpack.c.l.b16 %v1205
        %v1271 = vunpack.c.h.b16 %v1205
        %v1272 = vunpack.c.l.b16 %v1206
        %v1273 = vunpack.c.h.b16 %v1206
        %v1274 = vunpack.c.l.b16 %v1207
        %v1275 = vunpack.c.h.b16 %v1207
        %v1276 = vunpack.c.l.b16 %v1208
        %v1277 = vunpack.c.h.b16 %v1208
        %v1278 = vunpack.c.l.b16 %v1209
        %v1279 = vunpack.c.h.b16 %v1209
        %v1280 = vunpack.c.l.b16 %v1210
        %v1281 = vunpack.c.h.b16 %v1210
        %v1282 = vunpack.c.l.b16 %v1211
        %v1283 = vunpack.c.h.b16 %v1211
        %v1284 = vpack.c.b16 %v1238, %v1236
        %v1285 = vpack.c.b16 %v1239, %v1237
        %v1286 = vpack.c.b16 %v1242, %v1240
        %v1287 = vpack.c.b16 %v1243, %v1241
        %v1288 = vpack.c.b16 %v1246, %v1244
        %v1289 = vpack.c.b16 %v1247, %v1245
        %v1290 = vpack.c.b16 %v1250, %v1248
        %v1291 = vpack.c.b16 %v1251, %v1249
        %v1292 = vpack.c.b16 %v1254, %v1252
        %v1293 = vpack.c.b16 %v1255, %v1253
        %v1294 = vpack.c.b16 %v1258, %v1256
        %v1295 = vpack.c.b16 %v1259, %v1257
        %v1296 = vpack.c.b16 %v1262, %v1260
        %v1297 = vpack.c.b16 %v1263, %v1261
        %v1298 = vpack.c.b16 %v1266, %v1264
        %v1299 = vpack.c.b16 %v1267, %v1265
        %v1300 = vpack.c.b16 %v1270, %v1268
        %v1301 = vpack.c.b16 %v1271, %v1269
        %v1302 = vpack.c.b16 %v1274, %v1272
        %v1303 = vpack.c.b16 %v1275, %v1273
        %v1304 = vpack.c.b16 %v1278, %v1276
        %v1305 = vpack.c.b16 %v1279, %v1277
        %v1306 = vpack.c.b16 %v1282, %v1280
        %v1307 = vpack.c.b16 %v1283, %v1281
        %v1333 = vsel %vm633, %v1141, 0
        %v1336 = vsel %vm633, %v1143, 0
        %v1339 = vsel %vm633, %v1145, 0
        %v1342 = vsel %vm633, %v1147, 0
        %v1345 = vsel %vm633, %v1149, 0
        %v1348 = vsel %vm633, %v1151, 0
        %v1351 = vsel %vm633, %v1153, 0
        %v1354 = vsel %vm633, %v1155, 0
        %v1357 = vsel %vm633, %v1157, 0
        %v1360 = vsel %vm633, %v1159, 0
        %v1363 = vsel %vm633, %v1161, 0
        %v1366 = vsel %vm633, %v1163, 0
        %v1369 = vsel %vm633, %v1165, 0
        %v1372 = vsel %vm633, %v1167, 0
        %v1375 = vsel %vm633, %v1169, 0
        %v1378 = vsel %vm633, %v1171, 0
        %v1381 = vsel %vm633, %v1173, 0
        %v1384 = vsel %vm633, %v1175, 0
        %v1387 = vsel %vm633, %v1177, 0
        %v1390 = vsel %vm633, %v1179, 0
        %v1393 = vsel %vm633, %v1181, 0
        %v1396 = vsel %vm633, %v1183, 0
        %v1399 = vsel %vm633, %v1185, 0
        %v1402 = vsel %vm633, %v1187, 0
        %1404 = vmatprep.subr.bf16.mxu0 %v1285
        %1405 = vmatpush1.bf16.msra.mxu0 %v1284
        %1406 = vmatprep.subr.bf16.mxu0 %v1287
        %1407 = vmatpush1.bf16.msra.mxu0 %v1286
        %1408 = vmatprep.subr.bf16.mxu0 %v1289
        %1409 = vmatpush1.bf16.msra.mxu0 %v1288
        %1410 = vmatprep.subr.bf16.mxu0 %v1291
        %1411 = vmatpush1.bf16.msra.mxu0 %v1290
        %1412 = vmatprep.subr.bf16.mxu0 %v1293
        %1413 = vmatpush1.bf16.msra.mxu0 %v1292
        %1414 = vmatprep.subr.bf16.mxu0 %v1295
        %1415 = vmatpush1.bf16.msra.mxu0 %v1294
        %1416 = vmatprep.subr.bf16.mxu0 %v1297
        %1417 = vmatpush1.bf16.msra.mxu0 %v1296
        %1418 = vmatprep.subr.bf16.mxu0 %v1299
        %1419 = vmatpush1.bf16.msra.mxu0 %v1298
        %1420 = vmatprep.subr.bf16.mxu0 %v1301
        %1421 = vmatpush1.bf16.msra.mxu0 %v1300
        %1422 = vmatprep.subr.bf16.mxu0 %v1303
        %1423 = vmatpush1.bf16.msra.mxu0 %v1302
        %1424 = vmatprep.subr.bf16.mxu0 %v1305
        %1425 = vmatpush1.bf16.msra.mxu0 %v1304
        %1426 = vmatprep.subr.bf16.mxu0 %v1307
        %1427 = vmatpush1.bf16.msra.mxu0 %v1306
        %1428 = vmatprep.subr.bf16.mxu0 0
        %1429 = vmatpush1.bf16.msra.mxu0 0
        %1430 = vmatprep.subr.bf16.mxu0 0
        %1431 = vmatpush1.bf16.msra.mxu0 0
        %1432 = vmatprep.subr.bf16.mxu0 0
        %1433 = vmatpush1.bf16.msra.mxu0 0
        %1434 = vmatprep.subr.bf16.mxu0 0
        %1435 = vmatpush1.bf16.msra.mxu0 0
        %1436 = vmatprep.mubr.bf16.mxu0 %v1333
        %1437 = vmatmul.mubr.bf16.gmra.mrb[0].mxu0 %v1140
        %v1438 = vpop.f32.mrb[0].mxu0
        %v1439 = vadd.f32 0.0, %v1438
        %v1440 = vpop.f32.mrb[0].mxu0
        %v1441 = vadd.f32 0.0, %v1440
        %v1442 = vpop.f32.mrb[0].mxu0
        %v1443 = vadd.f32 0.0, %v1442
        %v1444 = vpop.f32.mrb[0].mxu0
        %v1445 = vadd.f32 0.0, %v1444
        %1446 = vmatprep.mubr.bf16.mxu0 %v1336
        %1447 = vmatmul.mubr.bf16.gmra.mrb[0].mxu0 %v1142
        %v1448 = vpop.f32.mrb[0].mxu0
        %v1449 = vadd.f32 0.0, %v1448
        %v1450 = vpop.f32.mrb[0].mxu0
        %v1451 = vadd.f32 0.0, %v1450
        %v1452 = vpop.f32.mrb[0].mxu0
        %v1453 = vadd.f32 0.0, %v1452
        %v1454 = vpop.f32.mrb[0].mxu0
        %v1455 = vadd.f32 0.0, %v1454
        %1456 = vmatprep.mubr.bf16.mxu0 %v1339
        %1457 = vmatmul.mubr.bf16.gmra.mrb[0].mxu0 %v1144
        %v1458 = vpop.f32.mrb[0].mxu0
        %v1459 = vadd.f32 0.0, %v1458
        %v1460 = vpop.f32.mrb[0].mxu0
        %v1461 = vadd.f32 0.0, %v1460
        %v1462 = vpop.f32.mrb[0].mxu0
        %v1463 = vadd.f32 0.0, %v1462
        %v1464 = vpop.f32.mrb[0].mxu0
        %v1465 = vadd.f32 0.0, %v1464
        %1466 = vmatprep.mubr.bf16.mxu0 %v1342
        %1467 = vmatmul.mubr.bf16.gmra.mrb[0].mxu0 %v1146
        %v1468 = vpop.f32.mrb[0].mxu0
        %v1469 = vadd.f32 0.0, %v1468
        %v1470 = vpop.f32.mrb[0].mxu0
        %v1471 = vadd.f32 0.0, %v1470
        %v1472 = vpop.f32.mrb[0].mxu0
        %v1473 = vadd.f32 0.0, %v1472
        %v1474 = vpop.f32.mrb[0].mxu0
        %v1475 = vadd.f32 0.0, %v1474
        %1476 = vmatprep.mubr.bf16.mxu0 %v1345
        %1477 = vmatmul.mubr.bf16.gmra.mrb[0].mxu0 %v1148
        %v1478 = vpop.f32.mrb[0].mxu0
        %v1479 = vadd.f32 0.0, %v1478
        %v1480 = vpop.f32.mrb[0].mxu0
        %v1481 = vadd.f32 0.0, %v1480
        %v1482 = vpop.f32.mrb[0].mxu0
        %v1483 = vadd.f32 0.0, %v1482
        %v1484 = vpop.f32.mrb[0].mxu0
        %v1485 = vadd.f32 0.0, %v1484
        %1486 = vmatprep.mubr.bf16.mxu0 %v1348
        %1487 = vmatmul.mubr.bf16.gmra.mrb[0].mxu0 %v1150
        %v1488 = vpop.f32.mrb[0].mxu0
        %v1489 = vadd.f32 0.0, %v1488
        %v1490 = vpop.f32.mrb[0].mxu0
        %v1491 = vadd.f32 0.0, %v1490
        %v1492 = vpop.f32.mrb[0].mxu0
        %v1493 = vadd.f32 0.0, %v1492
        %v1494 = vpop.f32.mrb[0].mxu0
        %v1495 = vadd.f32 0.0, %v1494
        %1496 = vmatprep.mubr.bf16.mxu0 %v1351
        %1497 = vmatmul.mubr.bf16.gmra.mrb[0].mxu0 %v1152
        %v1498 = vpop.f32.mrb[0].mxu0
        %v1499 = vadd.f32 0.0, %v1498
        %v1500 = vpop.f32.mrb[0].mxu0
        %v1501 = vadd.f32 0.0, %v1500
        %v1502 = vpop.f32.mrb[0].mxu0
        %v1503 = vadd.f32 0.0, %v1502
        %v1504 = vpop.f32.mrb[0].mxu0
        %v1505 = vadd.f32 0.0, %v1504
        %1506 = vmatprep.mubr.bf16.mxu0 %v1354
        %1507 = vmatmul.mubr.bf16.gmra.mrb[0].mxu0 %v1154
        %v1508 = vpop.f32.mrb[0].mxu0
        %v1509 = vadd.f32 0.0, %v1508
        %v1510 = vpop.f32.mrb[0].mxu0
        %v1511 = vadd.f32 0.0, %v1510
        %v1512 = vpop.f32.mrb[0].mxu0
        %v1513 = vadd.f32 0.0, %v1512
        %v1514 = vpop.f32.mrb[0].mxu0
        %v1515 = vadd.f32 0.0, %v1514
        %1516 = vmatprep.mubr.bf16.mxu0 %v1357
        %1517 = vmatmul.mubr.bf16.gmra.mrb[0].mxu0 %v1156
        %v1518 = vpop.f32.mrb[0].mxu0
        %v1519 = vadd.f32 0.0, %v1518
        %v1520 = vpop.f32.mrb[0].mxu0
        %v1521 = vadd.f32 0.0, %v1520
        %v1522 = vpop.f32.mrb[0].mxu0
        %v1523 = vadd.f32 0.0, %v1522
        %v1524 = vpop.f32.mrb[0].mxu0
        %v1525 = vadd.f32 0.0, %v1524
        %1526 = vmatprep.mubr.bf16.mxu0 %v1360
        %1527 = vmatmul.mubr.bf16.gmra.mrb[0].mxu0 %v1158
        %v1528 = vpop.f32.mrb[0].mxu0
        %v1529 = vadd.f32 0.0, %v1528
        %v1530 = vpop.f32.mrb[0].mxu0
        %v1531 = vadd.f32 0.0, %v1530
        %v1532 = vpop.f32.mrb[0].mxu0
        %v1533 = vadd.f32 0.0, %v1532
        %v1534 = vpop.f32.mrb[0].mxu0
        %v1535 = vadd.f32 0.0, %v1534
        %1536 = vmatprep.mubr.bf16.mxu0 %v1363
        %1537 = vmatmul.mubr.bf16.gmra.mrb[0].mxu0 %v1160
        %v1538 = vpop.f32.mrb[0].mxu0
        %v1539 = vadd.f32 0.0, %v1538
        %v1540 = vpop.f32.mrb[0].mxu0
        %v1541 = vadd.f32 0.0, %v1540
        %v1542 = vpop.f32.mrb[0].mxu0
        %v1543 = vadd.f32 0.0, %v1542
        %v1544 = vpop.f32.mrb[0].mxu0
        %v1545 = vadd.f32 0.0, %v1544
        %1546 = vmatprep.mubr.bf16.mxu0 %v1366
        %1547 = vmatmul.mubr.bf16.gmra.mrb[0].mxu0 %v1162
        %v1548 = vpop.f32.mrb[0].mxu0
        %v1549 = vadd.f32 0.0, %v1548
        %v1550 = vpop.f32.mrb[0].mxu0
        %v1551 = vadd.f32 0.0, %v1550
        %v1552 = vpop.f32.mrb[0].mxu0
        %v1553 = vadd.f32 0.0, %v1552
        %v1554 = vpop.f32.mrb[0].mxu0
        %v1555 = vadd.f32 0.0, %v1554
        %1556 = vmatprep.mubr.bf16.mxu0 %v1369
        %1557 = vmatmul.mubr.bf16.gmra.mrb[0].mxu0 %v1164
        %v1558 = vpop.f32.mrb[0].mxu0
        %v1559 = vadd.f32 0.0, %v1558
        %v1560 = vpop.f32.mrb[0].mxu0
        %v1561 = vadd.f32 0.0, %v1560
        %v1562 = vpop.f32.mrb[0].mxu0
        %v1563 = vadd.f32 0.0, %v1562
        %v1564 = vpop.f32.mrb[0].mxu0
        %v1565 = vadd.f32 0.0, %v1564
        %1566 = vmatprep.mubr.bf16.mxu0 %v1372
        %1567 = vmatmul.mubr.bf16.gmra.mrb[0].mxu0 %v1166
        %v1568 = vpop.f32.mrb[0].mxu0
        %v1569 = vadd.f32 0.0, %v1568
        %v1570 = vpop.f32.mrb[0].mxu0
        %v1571 = vadd.f32 0.0, %v1570
        %v1572 = vpop.f32.mrb[0].mxu0
        %v1573 = vadd.f32 0.0, %v1572
        %v1574 = vpop.f32.mrb[0].mxu0
        %v1575 = vadd.f32 0.0, %v1574
        %1576 = vmatprep.mubr.bf16.mxu0 %v1375
        %1577 = vmatmul.mubr.bf16.gmra.mrb[0].mxu0 %v1168
        %v1578 = vpop.f32.mrb[0].mxu0
        %v1579 = vadd.f32 0.0, %v1578
        %v1580 = vpop.f32.mrb[0].mxu0
        %v1581 = vadd.f32 0.0, %v1580
        %v1582 = vpop.f32.mrb[0].mxu0
        %v1583 = vadd.f32 0.0, %v1582
        %v1584 = vpop.f32.mrb[0].mxu0
        %v1585 = vadd.f32 0.0, %v1584
        %1586 = vmatprep.mubr.bf16.mxu0 %v1378
        %1587 = vmatmul.mubr.bf16.gmra.mrb[0].mxu0 %v1170
        %v1588 = vpop.f32.mrb[0].mxu0
        %v1589 = vadd.f32 0.0, %v1588
        %v1590 = vpop.f32.mrb[0].mxu0
        %v1591 = vadd.f32 0.0, %v1590
        %v1592 = vpop.f32.mrb[0].mxu0
        %v1593 = vadd.f32 0.0, %v1592
        %v1594 = vpop.f32.mrb[0].mxu0
        %v1595 = vadd.f32 0.0, %v1594
        %1596 = vmatprep.mubr.bf16.mxu0 %v1381
        %1597 = vmatmul.mubr.bf16.gmra.mrb[0].mxu0 %v1172
        %v1598 = vpop.f32.mrb[0].mxu0
        %v1599 = vadd.f32 0.0, %v1598
        %v1600 = vpop.f32.mrb[0].mxu0
        %v1601 = vadd.f32 0.0, %v1600
        %v1602 = vpop.f32.mrb[0].mxu0
        %v1603 = vadd.f32 0.0, %v1602
        %v1604 = vpop.f32.mrb[0].mxu0
        %v1605 = vadd.f32 0.0, %v1604
        %1606 = vmatprep.mubr.bf16.mxu0 %v1384
        %1607 = vmatmul.mubr.bf16.gmra.mrb[0].mxu0 %v1174
        %v1608 = vpop.f32.mrb[0].mxu0
        %v1609 = vadd.f32 0.0, %v1608
        %v1610 = vpop.f32.mrb[0].mxu0
        %v1611 = vadd.f32 0.0, %v1610
        %v1612 = vpop.f32.mrb[0].mxu0
        %v1613 = vadd.f32 0.0, %v1612
        %v1614 = vpop.f32.mrb[0].mxu0
        %v1615 = vadd.f32 0.0, %v1614
        %1616 = vmatprep.mubr.bf16.mxu0 %v1387
        %1617 = vmatmul.mubr.bf16.gmra.mrb[0].mxu0 %v1176
        %v1618 = vpop.f32.mrb[0].mxu0
        %v1619 = vadd.f32 0.0, %v1618
        %v1620 = vpop.f32.mrb[0].mxu0
        %v1621 = vadd.f32 0.0, %v1620
        %v1622 = vpop.f32.mrb[0].mxu0
        %v1623 = vadd.f32 0.0, %v1622
        %v1624 = vpop.f32.mrb[0].mxu0
        %v1625 = vadd.f32 0.0, %v1624
        %1626 = vmatprep.mubr.bf16.mxu0 %v1390
        %1627 = vmatmul.mubr.bf16.gmra.mrb[0].mxu0 %v1178
        %v1628 = vpop.f32.mrb[0].mxu0
        %v1629 = vadd.f32 0.0, %v1628
        %v1630 = vpop.f32.mrb[0].mxu0
        %v1631 = vadd.f32 0.0, %v1630
        %v1632 = vpop.f32.mrb[0].mxu0
        %v1633 = vadd.f32 0.0, %v1632
        %v1634 = vpop.f32.mrb[0].mxu0
        %v1635 = vadd.f32 0.0, %v1634
        %1636 = vmatprep.mubr.bf16.mxu0 %v1393
        %1637 = vmatmul.mubr.bf16.gmra.mrb[0].mxu0 %v1180
        %v1638 = vpop.f32.mrb[0].mxu0
        %v1639 = vadd.f32 0.0, %v1638
        %v1640 = vpop.f32.mrb[0].mxu0
        %v1641 = vadd.f32 0.0, %v1640
        %v1642 = vpop.f32.mrb[0].mxu0
        %v1643 = vadd.f32 0.0, %v1642
        %v1644 = vpop.f32.mrb[0].mxu0
        %v1645 = vadd.f32 0.0, %v1644
        %1646 = vmatprep.mubr.bf16.mxu0 %v1396
        %1647 = vmatmul.mubr.bf16.gmra.mrb[0].mxu0 %v1182
        %v1648 = vpop.f32.mrb[0].mxu0
        %v1649 = vadd.f32 0.0, %v1648
        %v1650 = vpop.f32.mrb[0].mxu0
        %v1651 = vadd.f32 0.0, %v1650
        %v1652 = vpop.f32.mrb[0].mxu0
        %v1653 = vadd.f32 0.0, %v1652
        %v1654 = vpop.f32.mrb[0].mxu0
        %v1655 = vadd.f32 0.0, %v1654
        %1656 = vmatprep.mubr.bf16.mxu0 %v1399
        %1657 = vmatmul.mubr.bf16.gmra.mrb[0].mxu0 %v1184
        %v1658 = vpop.f32.mrb[0].mxu0
        %v1659 = vadd.f32 0.0, %v1658
        %v1660 = vpop.f32.mrb[0].mxu0
        %v1661 = vadd.f32 0.0, %v1660
        %v1662 = vpop.f32.mrb[0].mxu0
        %v1663 = vadd.f32 0.0, %v1662
        %v1664 = vpop.f32.mrb[0].mxu0
        %v1665 = vadd.f32 0.0, %v1664
        %1666 = vmatprep.mubr.bf16.mxu0 %v1402
        %1667 = vmatmul.mubr.bf16.gmra.mrb[0].mxu0 %v1186
        %v1668 = vpop.f32.mrb[0].mxu0
        %v1669 = vadd.f32 0.0, %v1668
        %v1670 = vpop.f32.mrb[0].mxu0
        %v1671 = vadd.f32 0.0, %v1670
        %v1672 = vpop.f32.mrb[0].mxu0
        %v1673 = vadd.f32 0.0, %v1672
        %v1674 = vpop.f32.mrb[0].mxu0
        %v1675 = vadd.f32 0.0, %v1674
        %1676 = vdwg.mxu0
        %v1677 = vrot.slane %v1439, 7
        %v1678 = vrot.slane %v1443, 7
        %v1679 = vrot.slane %v1449, 7
        %v1680 = vrot.slane %v1453, 7
        %v1681 = vrot.slane %v1459, 7
        %v1682 = vrot.slane %v1463, 7
        %v1683 = vrot.slane %v1469, 7
        %v1684 = vrot.slane %v1473, 7
        %v1685 = vrot.slane %v1479, 7
        %v1686 = vrot.slane %v1483, 7
        %v1687 = vrot.slane %v1489, 7
        %v1688 = vrot.slane %v1493, 7
        %v1689 = vrot.slane %v1499, 7
        %v1690 = vrot.slane %v1503, 7
        %v1691 = vrot.slane %v1509, 7
        %v1692 = vrot.slane %v1513, 7
        %v1693 = vrot.slane %v1519, 7
        %v1694 = vrot.slane %v1523, 7
        %v1695 = vrot.slane %v1529, 7
        %v1696 = vrot.slane %v1533, 7
        %v1697 = vrot.slane %v1539, 7
        %v1698 = vrot.slane %v1543, 7
        %v1699 = vrot.slane %v1549, 7
        %v1700 = vrot.slane %v1553, 7
        %v1701 = vrot.slane %v1559, 7
        %v1702 = vrot.slane %v1563, 7
        %v1703 = vrot.slane %v1569, 7
        %v1704 = vrot.slane %v1573, 7
        %v1705 = vrot.slane %v1579, 7
        %v1706 = vrot.slane %v1583, 7
        %v1707 = vrot.slane %v1589, 7
        %v1708 = vrot.slane %v1593, 7
        %v1709 = vrot.slane %v1599, 7
        %v1710 = vrot.slane %v1603, 7
        %v1711 = vrot.slane %v1609, 7
        %v1712 = vrot.slane %v1613, 7
        %v1713 = vrot.slane %v1619, 7
        %v1714 = vrot.slane %v1623, 7
        %v1715 = vrot.slane %v1629, 7
        %v1716 = vrot.slane %v1633, 7
        %v1717 = vrot.slane %v1639, 7
        %v1718 = vrot.slane %v1643, 7
        %v1719 = vrot.slane %v1649, 7
        %v1720 = vrot.slane %v1653, 7
        %v1721 = vrot.slane %v1659, 7
        %v1722 = vrot.slane %v1663, 7
        %v1723 = vrot.slane %v1669, 7
        %v1724 = vrot.slane %v1673, 7
        %v1725 = vlaneseq
        %v1726 = vshrl.u32 %v1725, 7
        %vm1727 = vcmp.lt.s32.totalorder %v1726, 1
        %v1728 = vsel %vm1727, %v1722, %v1723
        %v1729 = vsel %vm1727, %v1721, %v1722
        %v1730 = vsel %vm1727, %v1719, %v1720
        %v1731 = vsel %vm1727, %v1718, %v1719
        %v1732 = vsel %vm1727, %v1716, %v1717
        %v1733 = vsel %vm1727, %v1715, %v1716
        %v1734 = vsel %vm1727, %v1713, %v1714
        %v1735 = vsel %vm1727, %v1712, %v1713
        %v1736 = vsel %vm1727, %v1710, %v1711
        %v1737 = vsel %vm1727, %v1709, %v1710
        %v1738 = vsel %vm1727, %v1707, %v1708
        %v1739 = vsel %vm1727, %v1706, %v1707
        %v1740 = vsel %vm1727, %v1704, %v1705
        %v1741 = vsel %vm1727, %v1703, %v1704
        %v1742 = vsel %vm1727, %v1701, %v1702
        %v1743 = vsel %vm1727, %v1700, %v1701
        %v1744 = vsel %vm1727, %v1698, %v1699
        %v1745 = vsel %vm1727, %v1697, %v1698
        %v1746 = vsel %vm1727, %v1695, %v1696
        %v1747 = vsel %vm1727, %v1694, %v1695
        %v1748 = vsel %vm1727, %v1692, %v1693
        %v1749 = vsel %vm1727, %v1691, %v1692
        %v1750 = vsel %vm1727, %v1689, %v1690
        %v1751 = vsel %vm1727, %v1688, %v1689
        %v1752 = vsel %vm1727, %v1686, %v1687
        %v1753 = vsel %vm1727, %v1685, %v1686
        %v1754 = vsel %vm1727, %v1683, %v1684
        %v1755 = vsel %vm1727, %v1682, %v1683
        %v1756 = vsel %vm1727, %v1680, %v1681
        %v1757 = vsel %vm1727, %v1679, %v1680
        %v1758 = vsel %vm1727, %v1677, %v1678
        %v1759 = vsel %vm1727, %v1724, %v1677
        %1792 = vrot.lane.b32.xlu0 %v1439, 64
        %v1793 = vpop.permute.xlu0 %1792
        %1794 = vrot.lane.b32.xlu0 %v1443, 64
        %v1795 = vpop.permute.xlu0 %1794
        %1796 = vrot.lane.b32.xlu0 %v1453, 64
        %v1797 = vpop.permute.xlu0 %1796
        %1798 = vrot.lane.b32.xlu0 %v1459, 64
        %v1799 = vpop.permute.xlu0 %1798
        %1800 = vrot.lane.b32.xlu0 %v1469, 64
        %v1801 = vpop.permute.xlu0 %1800
        %1802 = vrot.lane.b32.xlu0 %v1473, 64
        %v1803 = vpop.permute.xlu0 %1802
        %1804 = vrot.lane.b32.xlu0 %v1483, 64
        %v1805 = vpop.permute.xlu0 %1804
        %1806 = vrot.lane.b32.xlu0 %v1489, 64
        %v1807 = vpop.permute.xlu0 %1806
        %1808 = vrot.lane.b32.xlu0 %v1499, 64
        %v1809 = vpop.permute.xlu0 %1808
        %1810 = vrot.lane.b32.xlu0 %v1503, 64
        %v1811 = vpop.permute.xlu0 %1810
        %1812 = vrot.lane.b32.xlu0 %v1513, 64
        %v1813 = vpop.permute.xlu0 %1812
        %1814 = vrot.lane.b32.xlu0 %v1519, 64
        %v1815 = vpop.permute.xlu0 %1814
        %1816 = vrot.lane.b32.xlu0 %v1529, 64
        %v1817 = vpop.permute.xlu0 %1816
        %1818 = vrot.lane.b32.xlu0 %v1533, 64
        %v1819 = vpop.permute.xlu0 %1818
        %1820 = vrot.lane.b32.xlu0 %v1543, 64
        %v1821 = vpop.permute.xlu0 %1820
        %1822 = vrot.lane.b32.xlu0 %v1549, 64
        %v1823 = vpop.permute.xlu0 %1822
        %1824 = vrot.lane.b32.xlu0 %v1559, 64
        %v1825 = vpop.permute.xlu0 %1824
        %1826 = vrot.lane.b32.xlu0 %v1563, 64
        %v1827 = vpop.permute.xlu0 %1826
        %1828 = vrot.lane.b32.xlu0 %v1573, 64
        %v1829 = vpop.permute.xlu0 %1828
        %1830 = vrot.lane.b32.xlu0 %v1579, 64
        %v1831 = vpop.permute.xlu0 %1830
        %1832 = vrot.lane.b32.xlu0 %v1589, 64
        %v1833 = vpop.permute.xlu0 %1832
        %1834 = vrot.lane.b32.xlu0 %v1593, 64
        %v1835 = vpop.permute.xlu0 %1834
        %1836 = vrot.lane.b32.xlu0 %v1603, 64
        %v1837 = vpop.permute.xlu0 %1836
        %1838 = vrot.lane.b32.xlu0 %v1609, 64
        %v1839 = vpop.permute.xlu0 %1838
        %1840 = vrot.lane.b32.xlu0 %v1619, 64
        %v1841 = vpop.permute.xlu0 %1840
        %1842 = vrot.lane.b32.xlu0 %v1623, 64
        %v1843 = vpop.permute.xlu0 %1842
        %1844 = vrot.lane.b32.xlu0 %v1633, 64
        %v1845 = vpop.permute.xlu0 %1844
        %1846 = vrot.lane.b32.xlu0 %v1639, 64
        %v1847 = vpop.permute.xlu0 %1846
        %1848 = vrot.lane.b32.xlu0 %v1649, 64
        %v1849 = vpop.permute.xlu0 %1848
        %1850 = vrot.lane.b32.xlu0 %v1653, 64
        %v1851 = vpop.permute.xlu0 %1850
        %1852 = vrot.lane.b32.xlu0 %v1663, 64
        %v1853 = vpop.permute.xlu0 %1852
        %1854 = vrot.lane.b32.xlu0 %v1669, 64
        %v1855 = vpop.permute.xlu0 %1854
        %v1888 = vadd.f32 %v1759, %v1793
        %v1889 = vadd.f32 %v1758, %v1795
        %v1890 = vadd.f32 %v1757, %v1797
        %v1891 = vadd.f32 %v1756, %v1799
        %v1892 = vadd.f32 %v1755, %v1801
        %v1893 = vadd.f32 %v1754, %v1803
        %v1894 = vadd.f32 %v1753, %v1805
        %v1895 = vadd.f32 %v1752, %v1807
        %v1896 = vadd.f32 %v1751, %v1809
        %v1897 = vadd.f32 %v1750, %v1811
        %v1898 = vadd.f32 %v1749, %v1813
        %v1899 = vadd.f32 %v1748, %v1815
        %v1900 = vadd.f32 %v1747, %v1817
        %v1901 = vadd.f32 %v1746, %v1819
        %v1902 = vadd.f32 %v1745, %v1821
        %v1903 = vadd.f32 %v1744, %v1823
        %v1904 = vadd.f32 %v1743, %v1825
        %v1905 = vadd.f32 %v1742, %v1827
        %v1906 = vadd.f32 %v1741, %v1829
        %v1907 = vadd.f32 %v1740, %v1831
        %v1908 = vadd.f32 %v1739, %v1833
        %v1909 = vadd.f32 %v1738, %v1835
        %v1910 = vadd.f32 %v1737, %v1837
        %v1911 = vadd.f32 %v1736, %v1839
        %v1912 = vadd.f32 %v1735, %v1841
        %v1913 = vadd.f32 %v1734, %v1843
        %v1914 = vadd.f32 %v1733, %v1845
        %v1915 = vadd.f32 %v1732, %v1847
        %v1916 = vadd.f32 %v1731, %v1849
        %v1917 = vadd.f32 %v1730, %v1851
        %v1918 = vadd.f32 %v1729, %v1853
        %v1919 = vadd.f32 %v1728, %v1855
        %v1920 = vrot.slane %v1441, 1
        %v1921 = vrot.slane %v1445, 1
        %v1922 = vrot.slane %v1451, 1
        %v1923 = vrot.slane %v1455, 1
        %v1924 = vrot.slane %v1461, 1
        %v1925 = vrot.slane %v1465, 1
        %v1926 = vrot.slane %v1471, 1
        %v1927 = vrot.slane %v1475, 1
        %v1928 = vrot.slane %v1481, 1
        %v1929 = vrot.slane %v1485, 1
        %v1930 = vrot.slane %v1491, 1
        %v1931 = vrot.slane %v1495, 1
        %v1932 = vrot.slane %v1501, 1
        %v1933 = vrot.slane %v1505, 1
        %v1934 = vrot.slane %v1511, 1
        %v1935 = vrot.slane %v1515, 1
        %v1936 = vrot.slane %v1521, 1
        %v1937 = vrot.slane %v1525, 1
        %v1938 = vrot.slane %v1531, 1
        %v1939 = vrot.slane %v1535, 1
        %v1940 = vrot.slane %v1541, 1
        %v1941 = vrot.slane %v1545, 1
        %v1942 = vrot.slane %v1551, 1
        %v1943 = vrot.slane %v1555, 1
        %v1944 = vrot.slane %v1561, 1
        %v1945 = vrot.slane %v1565, 1
        %v1946 = vrot.slane %v1571, 1
        %v1947 = vrot.slane %v1575, 1
        %v1948 = vrot.slane %v1581, 1
        %v1949 = vrot.slane %v1585, 1
        %v1950 = vrot.slane %v1591, 1
        %v1951 = vrot.slane %v1595, 1
        %v1952 = vrot.slane %v1601, 1
        %v1953 = vrot.slane %v1605, 1
        %v1954 = vrot.slane %v1611, 1
        %v1955 = vrot.slane %v1615, 1
        %v1956 = vrot.slane %v1621, 1
        %v1957 = vrot.slane %v1625, 1
        %v1958 = vrot.slane %v1631, 1
        %v1959 = vrot.slane %v1635, 1
        %v1960 = vrot.slane %v1641, 1
        %v1961 = vrot.slane %v1645, 1
        %v1962 = vrot.slane %v1651, 1
        %v1963 = vrot.slane %v1655, 1
        %v1964 = vrot.slane %v1661, 1
        %v1965 = vrot.slane %v1665, 1
        %v1966 = vrot.slane %v1671, 1
        %v1967 = vrot.slane %v1675, 1
        %vm1968 = vcmp.lt.s32.totalorder %v1726, 7
        %v1969 = vsel %vm1968, %v1966, %v1967
        %v1970 = vsel %vm1968, %v1965, %v1966
        %v1971 = vsel %vm1968, %v1963, %v1964
        %v1972 = vsel %vm1968, %v1962, %v1963
        %v1973 = vsel %vm1968, %v1960, %v1961
        %v1974 = vsel %vm1968, %v1959, %v1960
        %v1975 = vsel %vm1968, %v1957, %v1958
        %v1976 = vsel %vm1968, %v1956, %v1957
        %v1977 = vsel %vm1968, %v1954, %v1955
        %v1978 = vsel %vm1968, %v1953, %v1954
        %v1979 = vsel %vm1968, %v1951, %v1952
        %v1980 = vsel %vm1968, %v1950, %v1951
        %v1981 = vsel %vm1968, %v1948, %v1949
        %v1982 = vsel %vm1968, %v1947, %v1948
        %v1983 = vsel %vm1968, %v1945, %v1946
        %v1984 = vsel %vm1968, %v1944, %v1945
        %v1985 = vsel %vm1968, %v1942, %v1943
        %v1986 = vsel %vm1968, %v1941, %v1942
        %v1987 = vsel %vm1968, %v1939, %v1940
        %v1988 = vsel %vm1968, %v1938, %v1939
        %v1989 = vsel %vm1968, %v1936, %v1937
        %v1990 = vsel %vm1968, %v1935, %v1936
        %v1991 = vsel %vm1968, %v1933, %v1934
        %v1992 = vsel %vm1968, %v1932, %v1933
        %v1993 = vsel %vm1968, %v1930, %v1931
        %v1994 = vsel %vm1968, %v1929, %v1930
        %v1995 = vsel %vm1968, %v1927, %v1928
        %v1996 = vsel %vm1968, %v1926, %v1927
        %v1997 = vsel %vm1968, %v1924, %v1925
        %v1998 = vsel %vm1968, %v1923, %v1924
        %v1999 = vsel %vm1968, %v1921, %v1922
        %v2000 = vsel %vm1968, %v1920, %v1921
        %v2001 = vadd.f32 %v1888, %v2000
        %v2002 = vadd.f32 %v1889, %v1999
        %v2003 = vadd.f32 %v1890, %v1998
        %v2004 = vadd.f32 %v1891, %v1997
        %v2005 = vadd.f32 %v1892, %v1996
        %v2006 = vadd.f32 %v1893, %v1995
        %v2007 = vadd.f32 %v1894, %v1994
        %v2008 = vadd.f32 %v1895, %v1993
        %v2009 = vadd.f32 %v1896, %v1992
        %v2010 = vadd.f32 %v1897, %v1991
        %v2011 = vadd.f32 %v1898, %v1990
        %v2012 = vadd.f32 %v1899, %v1989
        %v2013 = vadd.f32 %v1900, %v1988
        %v2014 = vadd.f32 %v1901, %v1987
        %v2015 = vadd.f32 %v1902, %v1986
        %v2016 = vadd.f32 %v1903, %v1985
        %v2017 = vadd.f32 %v1904, %v1984
        %v2018 = vadd.f32 %v1905, %v1983
        %v2019 = vadd.f32 %v1906, %v1982
        %v2020 = vadd.f32 %v1907, %v1981
        %v2021 = vadd.f32 %v1908, %v1980
        %v2022 = vadd.f32 %v1909, %v1979
        %v2023 = vadd.f32 %v1910, %v1978
        %v2024 = vadd.f32 %v1911, %v1977
        %v2025 = vadd.f32 %v1912, %v1976
        %v2026 = vadd.f32 %v1913, %v1975
        %v2027 = vadd.f32 %v1914, %v1974
        %v2028 = vadd.f32 %v1915, %v1973
        %v2029 = vadd.f32 %v1916, %v1972
        %v2030 = vadd.f32 %v1917, %v1971
        %v2031 = vadd.f32 %v1918, %v1970
        %v2032 = vadd.f32 %v1919, %v1969
        %v2033 = vld [vmem:[%s2] sm:$0x1]
        %v2035 = vlaneseq
        %v2036 = vshrl.u32 %v2035, 7
        %v2037 = vsub.s32 0, %v2036
        %v2038 = vrot.slane %v2033, %v2037
        %v2040 = vadd.f32 %v2001, %v2038
        %v2041 = vadd.f32 %v2002, %v2038
        %v2042 = vadd.f32 %v2003, %v2038
        %v2043 = vadd.f32 %v2004, %v2038
        %v2044 = vadd.f32 %v2005, %v2038
        %v2045 = vadd.f32 %v2006, %v2038
        %v2046 = vadd.f32 %v2007, %v2038
        %v2047 = vadd.f32 %v2008, %v2038
        %v2048 = vadd.f32 %v2009, %v2038
        %v2049 = vadd.f32 %v2010, %v2038
        %v2050 = vadd.f32 %v2011, %v2038
        %v2051 = vadd.f32 %v2012, %v2038
        %v2052 = vadd.f32 %v2013, %v2038
        %v2053 = vadd.f32 %v2014, %v2038
        %v2054 = vadd.f32 %v2015, %v2038
        %v2055 = vadd.f32 %v2016, %v2038
        %v2056 = vadd.f32 %v2017, %v2038
        %v2057 = vadd.f32 %v2018, %v2038
        %v2058 = vadd.f32 %v2019, %v2038
        %v2059 = vadd.f32 %v2020, %v2038
        %v2060 = vadd.f32 %v2021, %v2038
        %v2061 = vadd.f32 %v2022, %v2038
        %v2062 = vadd.f32 %v2023, %v2038
        %v2063 = vadd.f32 %v2024, %v2038
        %v2064 = vadd.f32 %v2025, %v2038
        %v2065 = vadd.f32 %v2026, %v2038
        %v2066 = vadd.f32 %v2027, %v2038
        %v2067 = vadd.f32 %v2028, %v2038
        %v2068 = vadd.f32 %v2029, %v2038
        %v2069 = vadd.f32 %v2030, %v2038
        %v2070 = vadd.f32 %v2031, %v2038
        %v2071 = vadd.f32 %v2032, %v2038
        %v2072 = vmax.f32 %v2040, 0.0
        %v2073 = vmax.f32 %v2041, 0.0
        %v2074 = vmax.f32 %v2042, 0.0
        %v2075 = vmax.f32 %v2043, 0.0
        %v2076 = vmax.f32 %v2044, 0.0
        %v2077 = vmax.f32 %v2045, 0.0
        %v2078 = vmax.f32 %v2046, 0.0
        %v2079 = vmax.f32 %v2047, 0.0
        %v2080 = vmax.f32 %v2048, 0.0
        %v2081 = vmax.f32 %v2049, 0.0
        %v2082 = vmax.f32 %v2050, 0.0
        %v2083 = vmax.f32 %v2051, 0.0
        %v2084 = vmax.f32 %v2052, 0.0
        %v2085 = vmax.f32 %v2053, 0.0
        %v2086 = vmax.f32 %v2054, 0.0
        %v2087 = vmax.f32 %v2055, 0.0
        %v2088 = vmax.f32 %v2056, 0.0
        %v2089 = vmax.f32 %v2057, 0.0
        %v2090 = vmax.f32 %v2058, 0.0
        %v2091 = vmax.f32 %v2059, 0.0
        %v2092 = vmax.f32 %v2060, 0.0
        %v2093 = vmax.f32 %v2061, 0.0
        %v2094 = vmax.f32 %v2062, 0.0
        %v2095 = vmax.f32 %v2063, 0.0
        %v2096 = vmax.f32 %v2064, 0.0
        %v2097 = vmax.f32 %v2065, 0.0
        %v2098 = vmax.f32 %v2066, 0.0
        %v2099 = vmax.f32 %v2067, 0.0
        %v2100 = vmax.f32 %v2068, 0.0
        %v2101 = vmax.f32 %v2069, 0.0
        %v2102 = vmax.f32 %v2070, 0.0
        %v2103 = vmax.f32 %v2071, 0.0
        %v2104 = vpack.c.bf16 %v2073, %v2072
        %v2105 = vpack.c.bf16 %v2075, %v2074
        %v2106 = vpack.c.bf16 %v2077, %v2076
        %v2107 = vpack.c.bf16 %v2079, %v2078
        %v2108 = vpack.c.bf16 %v2081, %v2080
        %v2109 = vpack.c.bf16 %v2083, %v2082
        %v2110 = vpack.c.bf16 %v2085, %v2084
        %v2111 = vpack.c.bf16 %v2087, %v2086
        %v2112 = vpack.c.bf16 %v2089, %v2088
        %v2113 = vpack.c.bf16 %v2091, %v2090
        %v2114 = vpack.c.bf16 %v2093, %v2092
        %v2115 = vpack.c.bf16 %v2095, %v2094
        %v2116 = vpack.c.bf16 %v2097, %v2096
        %v2117 = vpack.c.bf16 %v2099, %v2098
        %v2118 = vpack.c.bf16 %v2101, %v2100
        %v2119 = vpack.c.bf16 %v2103, %v2102
        %v2136 = vunpack.c.l.b16 %v2104
        %v2137 = vunpack.c.h.b16 %v2104
        %v2138 = vunpack.c.l.b16 %v2105
        %v2139 = vunpack.c.h.b16 %v2105
        %v2140 = vunpack.c.l.b16 %v2106
        %v2141 = vunpack.c.h.b16 %v2106
        %v2142 = vunpack.c.l.b16 %v2107
        %v2143 = vunpack.c.h.b16 %v2107
        %v2144 = vunpack.c.l.b16 %v2108
        %v2145 = vunpack.c.h.b16 %v2108
        %v2146 = vunpack.c.l.b16 %v2109
        %v2147 = vunpack.c.h.b16 %v2109
        %v2148 = vunpack.c.l.b16 %v2110
        %v2149 = vunpack.c.h.b16 %v2110
        %v2150 = vunpack.c.l.b16 %v2111
        %v2151 = vunpack.c.h.b16 %v2111
        %v2152 = vunpack.c.l.b16 %v2112
        %v2153 = vunpack.c.h.b16 %v2112
        %v2154 = vunpack.c.l.b16 %v2113
        %v2155 = vunpack.c.h.b16 %v2113
        %v2156 = vunpack.c.l.b16 %v2114
        %v2157 = vunpack.c.h.b16 %v2114
        %v2158 = vunpack.c.l.b16 %v2115
        %v2159 = vunpack.c.h.b16 %v2115
        %v2160 = vunpack.c.l.b16 %v2116
        %v2161 = vunpack.c.h.b16 %v2116
        %v2162 = vunpack.c.l.b16 %v2117
        %v2163 = vunpack.c.h.b16 %v2117
        %v2164 = vunpack.c.l.b16 %v2118
        %v2165 = vunpack.c.h.b16 %v2118
        %v2166 = vunpack.c.l.b16 %v2119
        %v2167 = vunpack.c.h.b16 %v2119
        %v2168 = vpack.c.b16 %v2136, %v2136
        %v2169 = vpack.c.b16 %v2137, %v2137
        %v2170 = vpack.c.b16 %v2138, %v2138
        %v2171 = vpack.c.b16 %v2139, %v2139
        %v2172 = vpack.c.b16 %v2140, %v2140
        %v2173 = vpack.c.b16 %v2141, %v2141
        %v2174 = vpack.c.b16 %v2142, %v2142
        %v2175 = vpack.c.b16 %v2143, %v2143
        %v2176 = vpack.c.b16 %v2144, %v2144
        %v2177 = vpack.c.b16 %v2145, %v2145
        %v2178 = vpack.c.b16 %v2146, %v2146
        %v2179 = vpack.c.b16 %v2147, %v2147
        %v2180 = vpack.c.b16 %v2148, %v2148
        %v2181 = vpack.c.b16 %v2149, %v2149
        %v2182 = vpack.c.b16 %v2150, %v2150
        %v2183 = vpack.c.b16 %v2151, %v2151
        %v2184 = vpack.c.b16 %v2152, %v2152
        %v2185 = vpack.c.b16 %v2153, %v2153
        %v2186 = vpack.c.b16 %v2154, %v2154
        %v2187 = vpack.c.b16 %v2155, %v2155
        %v2188 = vpack.c.b16 %v2156, %v2156
        %v2189 = vpack.c.b16 %v2157, %v2157
        %v2190 = vpack.c.b16 %v2158, %v2158
        %v2191 = vpack.c.b16 %v2159, %v2159
        %v2192 = vpack.c.b16 %v2160, %v2160
        %v2193 = vpack.c.b16 %v2161, %v2161
        %v2194 = vpack.c.b16 %v2162, %v2162
        %v2195 = vpack.c.b16 %v2163, %v2163
        %v2196 = vpack.c.b16 %v2164, %v2164
        %v2197 = vpack.c.b16 %v2165, %v2165
        %v2198 = vpack.c.b16 %v2166, %v2166
        %v2199 = vpack.c.b16 %v2167, %v2167
        %2232 = vst.msk [vmem:[%s232] sm:$0xf] %vm224, %v2168
        %2233 = vst.msk [vmem:[%s232 + $0x4] sm:$0xf] %vm224, %v2169
        %2234 = vst.msk [vmem:[%s232 + $0xc] sm:$0xf] %vm224, %v2170
        %2235 = vst.msk [vmem:[%s232 + $0x10] sm:$0xf] %vm224, %v2171
        %2236 = vst.msk [vmem:[%s232 + $0x18] sm:$0xf] %vm224, %v2172
        %2237 = vst.msk [vmem:[%s232 + $0x1c] sm:$0xf] %vm224, %v2173
        %2238 = vst.msk [vmem:[%s232 + $0x24] sm:$0xf] %vm224, %v2174
        %2239 = vst.msk [vmem:[%s232 + $0x28] sm:$0xf] %vm224, %v2175
        %2240 = vst.msk [vmem:[%s232 + $0x30] sm:$0xf] %vm224, %v2176
        %2241 = vst.msk [vmem:[%s232 + $0x34] sm:$0xf] %vm224, %v2177
        %2242 = vst.msk [vmem:[%s232 + $0x3c] sm:$0xf] %vm224, %v2178
        %2243 = vst.msk [vmem:[%s232 + $0x40] sm:$0xf] %vm224, %v2179
        %2244 = vst.msk [vmem:[%s232 + $0x48] sm:$0xf] %vm224, %v2180
        %2245 = vst.msk [vmem:[%s232 + $0x4c] sm:$0xf] %vm224, %v2181
        %2246 = vst.msk [vmem:[%s232 + $0x54] sm:$0xf] %vm224, %v2182
        %2247 = vst.msk [vmem:[%s232 + $0x58] sm:$0xf] %vm224, %v2183
        %2248 = vst.msk [vmem:[%s232 + $0x60] sm:$0xf] %vm224, %v2184
        %2249 = vst.msk [vmem:[%s232 + $0x64] sm:$0xf] %vm224, %v2185
        %2250 = vst.msk [vmem:[%s232 + $0x6c] sm:$0xf] %vm224, %v2186
        %2251 = vst.msk [vmem:[%s232 + $0x70] sm:$0xf] %vm224, %v2187
        %2252 = vst.msk [vmem:[%s232 + $0x78] sm:$0xf] %vm224, %v2188
        %2253 = vst.msk [vmem:[%s232 + $0x7c] sm:$0xf] %vm224, %v2189
        %2254 = vst.msk [vmem:[%s232 + $0x84] sm:$0xf] %vm224, %v2190
        %2255 = vst.msk [vmem:[%s232 + $0x88] sm:$0xf] %vm224, %v2191
        %2256 = vst.msk [vmem:[%s232 + $0x90] sm:$0xf] %vm224, %v2192
        %2257 = vst.msk [vmem:[%s232 + $0x94] sm:$0xf] %vm224, %v2193
        %2258 = vst.msk [vmem:[%s232 + $0x9c] sm:$0xf] %vm224, %v2194
        %2259 = vst.msk [vmem:[%s232 + $0xa0] sm:$0xf] %vm224, %v2195
        %2260 = vst.msk [vmem:[%s232 + $0xa8] sm:$0xf] %vm224, %v2196
        %2261 = vst.msk [vmem:[%s232 + $0xac] sm:$0xf] %vm224, %v2197
        %2262 = vst.msk [vmem:[%s232 + $0xb4] sm:$0xf] %vm224, %v2198
        %2263 = vst.msk [vmem:[%s232 + $0xb8] sm:$0xf] %vm224, %v2199
        %v2264 = vld [vmem:[#allocation2] sm:$0xf]
        %v2265 = vld [vmem:[#allocation2 + $0x4] sm:$0xf]
        %v2266 = vld [vmem:[#allocation2 + $0x8] sm:$0xf]
        %v2267 = vld [vmem:[#allocation2 + $0xc] sm:$0xf]
        %v2268 = vld [vmem:[#allocation2 + $0x10] sm:$0xf]
        %v2269 = vld [vmem:[#allocation2 + $0x14] sm:$0xf]
        %v2270 = vld [vmem:[#allocation2 + $0x18] sm:$0xf]
        %v2271 = vld [vmem:[#allocation2 + $0x1c] sm:$0xf]
        %v2272 = vld [vmem:[#allocation2 + $0x20] sm:$0xf]
        %v2273 = vld [vmem:[#allocation2 + $0x24] sm:$0xf]
        %v2274 = vld [vmem:[#allocation2 + $0x28] sm:$0xf]
        %v2275 = vld [vmem:[#allocation2 + $0x2c] sm:$0xf]
        %v2276 = vld [vmem:[#allocation2 + $0x30] sm:$0xf]
        %v2277 = vld [vmem:[#allocation2 + $0x34] sm:$0xf]
        %v2278 = vld [vmem:[#allocation2 + $0x38] sm:$0xf]
        %v2279 = vld [vmem:[#allocation2 + $0x3c] sm:$0xf]
        %v2280 = vld [vmem:[#allocation2 + $0x40] sm:$0xf]
        %v2281 = vld [vmem:[#allocation2 + $0x44] sm:$0xf]
        %v2282 = vld [vmem:[#allocation2 + $0x48] sm:$0xf]
        %v2283 = vld [vmem:[#allocation2 + $0x4c] sm:$0xf]
        %v2284 = vld [vmem:[#allocation2 + $0x50] sm:$0xf]
        %v2285 = vld [vmem:[#allocation2 + $0x54] sm:$0xf]
        %v2286 = vld [vmem:[#allocation2 + $0x58] sm:$0xf]
        %v2287 = vld [vmem:[#allocation2 + $0x5c] sm:$0xf]
        %v2288 = vld [vmem:[#allocation2 + $0x60] sm:$0xf]
        %v2289 = vld [vmem:[#allocation2 + $0x64] sm:$0xf]
        %v2290 = vld [vmem:[#allocation2 + $0x68] sm:$0xf]
        %v2291 = vld [vmem:[#allocation2 + $0x6c] sm:$0xf]
        %v2292 = vld [vmem:[#allocation2 + $0x70] sm:$0xf]
        %v2293 = vld [vmem:[#allocation2 + $0x74] sm:$0xf]
        %v2294 = vld [vmem:[#allocation2 + $0x78] sm:$0xf]
        %v2295 = vld [vmem:[#allocation2 + $0x7c] sm:$0xf]
        %v2296 = vld [vmem:[#allocation2 + $0x80] sm:$0xf]
        %v2297 = vld [vmem:[#allocation2 + $0x84] sm:$0xf]
        %v2298 = vld [vmem:[#allocation2 + $0x88] sm:$0xf]
        %v2299 = vld [vmem:[#allocation2 + $0x8c] sm:$0xf]
        %v2300 = vld [vmem:[#allocation2 + $0x90] sm:$0xf]
        %v2301 = vld [vmem:[#allocation2 + $0x94] sm:$0xf]
        %v2302 = vld [vmem:[#allocation2 + $0x98] sm:$0xf]
        %v2303 = vld [vmem:[#allocation2 + $0x9c] sm:$0xf]
        %v2304 = vld [vmem:[#allocation2 + $0xa0] sm:$0xf]
        %v2305 = vld [vmem:[#allocation2 + $0xa4] sm:$0xf]
        %v2306 = vld [vmem:[#allocation2 + $0xa8] sm:$0xf]
        %v2307 = vld [vmem:[#allocation2 + $0xac] sm:$0xf]
        %v2308 = vld [vmem:[#allocation2 + $0xb0] sm:$0xf]
        %v2309 = vld [vmem:[#allocation2 + $0xb4] sm:$0xf]
        %v2310 = vld [vmem:[#allocation2 + $0xb8] sm:$0xf]
        %v2311 = vld [vmem:[#allocation2 + $0xbc] sm:$0xf]
        %v2360 = vunpack.c.l.b16 %v2264
        %v2361 = vunpack.c.l.b16 %v2265
        %v2362 = vunpack.c.l.b16 %v2266
        %v2363 = vunpack.c.l.b16 %v2267
        %v2364 = vunpack.c.l.b16 %v2268
        %v2365 = vunpack.c.l.b16 %v2269
        %v2366 = vunpack.c.l.b16 %v2270
        %v2367 = vunpack.c.l.b16 %v2271
        %v2368 = vunpack.c.l.b16 %v2272
        %v2369 = vunpack.c.l.b16 %v2273
        %v2370 = vunpack.c.l.b16 %v2274
        %v2371 = vunpack.c.l.b16 %v2275
        %v2372 = vunpack.c.l.b16 %v2276
        %v2373 = vunpack.c.l.b16 %v2277
        %v2374 = vunpack.c.l.b16 %v2278
        %v2375 = vunpack.c.l.b16 %v2279
        %v2376 = vunpack.c.l.b16 %v2280
        %v2377 = vunpack.c.l.b16 %v2281
        %v2378 = vunpack.c.l.b16 %v2282
        %v2379 = vunpack.c.l.b16 %v2283
        %v2380 = vunpack.c.l.b16 %v2284
        %v2381 = vunpack.c.l.b16 %v2285
        %v2382 = vunpack.c.l.b16 %v2286
        %v2383 = vunpack.c.l.b16 %v2287
        %v2384 = vunpack.c.l.b16 %v2288
        %v2385 = vunpack.c.l.b16 %v2289
        %v2386 = vunpack.c.l.b16 %v2290
        %v2387 = vunpack.c.l.b16 %v2291
        %v2388 = vunpack.c.l.b16 %v2292
        %v2389 = vunpack.c.l.b16 %v2293
        %v2390 = vunpack.c.l.b16 %v2294
        %v2391 = vunpack.c.l.b16 %v2295
        %v2392 = vunpack.c.l.b16 %v2296
        %v2393 = vunpack.c.l.b16 %v2297
        %v2394 = vunpack.c.l.b16 %v2298
        %v2395 = vunpack.c.l.b16 %v2299
        %v2396 = vunpack.c.l.b16 %v2300
        %v2397 = vunpack.c.l.b16 %v2301
        %v2398 = vunpack.c.l.b16 %v2302
        %v2399 = vunpack.c.l.b16 %v2303
        %v2400 = vunpack.c.l.b16 %v2304
        %v2401 = vunpack.c.l.b16 %v2305
        %v2402 = vunpack.c.l.b16 %v2306
        %v2403 = vunpack.c.l.b16 %v2307
        %v2404 = vunpack.c.l.b16 %v2308
        %v2405 = vunpack.c.l.b16 %v2309
        %v2406 = vunpack.c.l.b16 %v2310
        %v2407 = vunpack.c.l.b16 %v2311
        %v2408 = vpack.c.b16 %v2361, %v2360
        %v2409 = vpack.c.b16 %v2363, %v2362
        %v2410 = vpack.c.b16 %v2365, %v2364
        %v2411 = vpack.c.b16 %v2367, %v2366
        %v2412 = vpack.c.b16 %v2369, %v2368
        %v2413 = vpack.c.b16 %v2371, %v2370
        %v2414 = vpack.c.b16 %v2373, %v2372
        %v2415 = vpack.c.b16 %v2375, %v2374
        %v2416 = vpack.c.b16 %v2377, %v2376
        %v2417 = vpack.c.b16 %v2379, %v2378
        %v2418 = vpack.c.b16 %v2381, %v2380
        %v2419 = vpack.c.b16 %v2383, %v2382
        %v2420 = vpack.c.b16 %v2385, %v2384
        %v2421 = vpack.c.b16 %v2387, %v2386
        %v2422 = vpack.c.b16 %v2389, %v2388
        %v2423 = vpack.c.b16 %v2391, %v2390
        %v2424 = vpack.c.b16 %v2393, %v2392
        %v2425 = vpack.c.b16 %v2395, %v2394
        %v2426 = vpack.c.b16 %v2397, %v2396
        %v2427 = vpack.c.b16 %v2399, %v2398
        %v2428 = vpack.c.b16 %v2401, %v2400
        %v2429 = vpack.c.b16 %v2403, %v2402
        %v2430 = vpack.c.b16 %v2405, %v2404
        %v2431 = vpack.c.b16 %v2407, %v2406
        %2456 = vst.msk [vmem:[#allocation3] sm:$0xff] %vm633, %v2408
        %2457 = vst.msk [vmem:[#allocation3 + $0x10] sm:$0xff] %vm633, %v2409
        %2458 = vst.msk [vmem:[#allocation3 + $0x20] sm:$0xff] %vm633, %v2410
        %2459 = vst.msk [vmem:[#allocation3 + $0x30] sm:$0xff] %vm633, %v2411
        %2460 = vst.msk [vmem:[#allocation3 + $0x40] sm:$0xff] %vm633, %v2412
        %2461 = vst.msk [vmem:[#allocation3 + $0x50] sm:$0xff] %vm633, %v2413
        %2462 = vst.msk [vmem:[#allocation3 + $0x60] sm:$0xff] %vm633, %v2414
        %2463 = vst.msk [vmem:[#allocation3 + $0x70] sm:$0xff] %vm633, %v2415
        %2464 = vst.msk [vmem:[#allocation3 + $0x80] sm:$0xff] %vm633, %v2416
        %2465 = vst.msk [vmem:[#allocation3 + $0x90] sm:$0xff] %vm633, %v2417
        %2466 = vst.msk [vmem:[#allocation3 + $0xa0] sm:$0xff] %vm633, %v2418
        %2467 = vst.msk [vmem:[#allocation3 + $0xb0] sm:$0xff] %vm633, %v2419
        %2468 = vst.msk [vmem:[#allocation3 + $0xc0] sm:$0xff] %vm633, %v2420
        %2469 = vst.msk [vmem:[#allocation3 + $0xd0] sm:$0xff] %vm633, %v2421
        %2470 = vst.msk [vmem:[#allocation3 + $0xe0] sm:$0xff] %vm633, %v2422
        %2471 = vst.msk [vmem:[#allocation3 + $0xf0] sm:$0xff] %vm633, %v2423
        %2472 = vst.msk [vmem:[#allocation3 + $0x100] sm:$0xff] %vm633, %v2424
        %2473 = vst.msk [vmem:[#allocation3 + $0x110] sm:$0xff] %vm633, %v2425
        %2474 = vst.msk [vmem:[#allocation3 + $0x120] sm:$0xff] %vm633, %v2426
        %2475 = vst.msk [vmem:[#allocation3 + $0x130] sm:$0xff] %vm633, %v2427
        %2476 = vst.msk [vmem:[#allocation3 + $0x140] sm:$0xff] %vm633, %v2428
        %2477 = vst.msk [vmem:[#allocation3 + $0x150] sm:$0xff] %vm633, %v2429
        %2478 = vst.msk [vmem:[#allocation3 + $0x160] sm:$0xff] %vm633, %v2430
        %2479 = vst.msk [vmem:[#allocation3 + $0x170] sm:$0xff] %vm633, %v2431
        %v2480 = vld [vmem:[%s232] sm:$0xf]
        %v2481 = vld [vmem:[%s232 + $0x4] sm:$0xf]
        %v2482 = vld [vmem:[%s232 + $0x8] sm:$0xf]
        %v2483 = vld [vmem:[%s232 + $0xc] sm:$0xf]
        %v2484 = vld [vmem:[%s232 + $0x10] sm:$0xf]
        %v2485 = vld [vmem:[%s232 + $0x14] sm:$0xf]
        %v2486 = vld [vmem:[%s232 + $0x18] sm:$0xf]
        %v2487 = vld [vmem:[%s232 + $0x1c] sm:$0xf]
        %v2488 = vld [vmem:[%s232 + $0x20] sm:$0xf]
        %v2489 = vld [vmem:[%s232 + $0x24] sm:$0xf]
        %v2490 = vld [vmem:[%s232 + $0x28] sm:$0xf]
        %v2491 = vld [vmem:[%s232 + $0x2c] sm:$0xf]
        %v2492 = vld [vmem:[%s232 + $0x30] sm:$0xf]
        %v2493 = vld [vmem:[%s232 + $0x34] sm:$0xf]
        %v2494 = vld [vmem:[%s232 + $0x38] sm:$0xf]
        %v2495 = vld [vmem:[%s232 + $0x3c] sm:$0xf]
        %v2496 = vld [vmem:[%s232 + $0x40] sm:$0xf]
        %v2497 = vld [vmem:[%s232 + $0x44] sm:$0xf]
        %v2498 = vld [vmem:[%s232 + $0x48] sm:$0xf]
        %v2499 = vld [vmem:[%s232 + $0x4c] sm:$0xf]
        %v2500 = vld [vmem:[%s232 + $0x50] sm:$0xf]
        %v2501 = vld [vmem:[%s232 + $0x54] sm:$0xf]
        %v2502 = vld [vmem:[%s232 + $0x58] sm:$0xf]
        %v2503 = vld [vmem:[%s232 + $0x5c] sm:$0xf]
        %v2504 = vld [vmem:[%s232 + $0x60] sm:$0xf]
        %v2505 = vld [vmem:[%s232 + $0x64] sm:$0xf]
        %v2506 = vld [vmem:[%s232 + $0x68] sm:$0xf]
        %v2507 = vld [vmem:[%s232 + $0x6c] sm:$0xf]
        %v2508 = vld [vmem:[%s232 + $0x70] sm:$0xf]
        %v2509 = vld [vmem:[%s232 + $0x74] sm:$0xf]
        %v2510 = vld [vmem:[%s232 + $0x78] sm:$0xf]
        %v2511 = vld [vmem:[%s232 + $0x7c] sm:$0xf]
        %v2512 = vld [vmem:[%s232 + $0x80] sm:$0xf]
        %v2513 = vld [vmem:[%s232 + $0x84] sm:$0xf]
        %v2514 = vld [vmem:[%s232 + $0x88] sm:$0xf]
        %v2515 = vld [vmem:[%s232 + $0x8c] sm:$0xf]
        %v2516 = vld [vmem:[%s232 + $0x90] sm:$0xf]
        %v2517 = vld [vmem:[%s232 + $0x94] sm:$0xf]
        %v2518 = vld [vmem:[%s232 + $0x98] sm:$0xf]
        %v2519 = vld [vmem:[%s232 + $0x9c] sm:$0xf]
        %v2520 = vld [vmem:[%s232 + $0xa0] sm:$0xf]
        %v2521 = vld [vmem:[%s232 + $0xa4] sm:$0xf]
        %v2522 = vld [vmem:[%s232 + $0xa8] sm:$0xf]
        %v2523 = vld [vmem:[%s232 + $0xac] sm:$0xf]
        %v2524 = vld [vmem:[%s232 + $0xb0] sm:$0xf]
        %v2525 = vld [vmem:[%s232 + $0xb4] sm:$0xf]
        %v2526 = vld [vmem:[%s232 + $0xb8] sm:$0xf]
        %v2527 = vld [vmem:[%s232 + $0xbc] sm:$0xf]
        %v2576 = vunpack.c.l.b16 %v2480
        %v2577 = vunpack.c.l.b16 %v2481
        %v2578 = vunpack.c.l.b16 %v2482
        %v2579 = vunpack.c.l.b16 %v2483
        %v2580 = vunpack.c.l.b16 %v2484
        %v2581 = vunpack.c.l.b16 %v2485
        %v2582 = vunpack.c.l.b16 %v2486
        %v2583 = vunpack.c.l.b16 %v2487
        %v2584 = vunpack.c.l.b16 %v2488
        %v2585 = vunpack.c.l.b16 %v2489
        %v2586 = vunpack.c.l.b16 %v2490
        %v2587 = vunpack.c.l.b16 %v2491
        %v2588 = vunpack.c.l.b16 %v2492
        %v2589 = vunpack.c.l.b16 %v2493
        %v2590 = vunpack.c.l.b16 %v2494
        %v2591 = vunpack.c.l.b16 %v2495
        %v2592 = vunpack.c.l.b16 %v2496
        %v2593 = vunpack.c.l.b16 %v2497
        %v2594 = vunpack.c.l.b16 %v2498
        %v2595 = vunpack.c.l.b16 %v2499
        %v2596 = vunpack.c.l.b16 %v2500
        %v2597 = vunpack.c.l.b16 %v2501
        %v2598 = vunpack.c.l.b16 %v2502
        %v2599 = vunpack.c.l.b16 %v2503
        %v2600 = vunpack.c.l.b16 %v2504
        %v2601 = vunpack.c.l.b16 %v2505
        %v2602 = vunpack.c.l.b16 %v2506
        %v2603 = vunpack.c.l.b16 %v2507
        %v2604 = vunpack.c.l.b16 %v2508
        %v2605 = vunpack.c.l.b16 %v2509
        %v2606 = vunpack.c.l.b16 %v2510
        %v2607 = vunpack.c.l.b16 %v2511
        %v2608 = vunpack.c.l.b16 %v2512
        %v2609 = vunpack.c.l.b16 %v2513
        %v2610 = vunpack.c.l.b16 %v2514
        %v2611 = vunpack.c.l.b16 %v2515
        %v2612 = vunpack.c.l.b16 %v2516
        %v2613 = vunpack.c.l.b16 %v2517
        %v2614 = vunpack.c.l.b16 %v2518
        %v2615 = vunpack.c.l.b16 %v2519
        %v2616 = vunpack.c.l.b16 %v2520
        %v2617 = vunpack.c.l.b16 %v2521
        %v2618 = vunpack.c.l.b16 %v2522
        %v2619 = vunpack.c.l.b16 %v2523
        %v2620 = vunpack.c.l.b16 %v2524
        %v2621 = vunpack.c.l.b16 %v2525
        %v2622 = vunpack.c.l.b16 %v2526
        %v2623 = vunpack.c.l.b16 %v2527
        %v2624 = vpack.c.b16 %v2577, %v2576
        %v2625 = vpack.c.b16 %v2579, %v2578
        %v2626 = vpack.c.b16 %v2581, %v2580
        %v2627 = vpack.c.b16 %v2583, %v2582
        %v2628 = vpack.c.b16 %v2585, %v2584
        %v2629 = vpack.c.b16 %v2587, %v2586
        %v2630 = vpack.c.b16 %v2589, %v2588
        %v2631 = vpack.c.b16 %v2591, %v2590
        %v2632 = vpack.c.b16 %v2593, %v2592
        %v2633 = vpack.c.b16 %v2595, %v2594
        %v2634 = vpack.c.b16 %v2597, %v2596
        %v2635 = vpack.c.b16 %v2599, %v2598
        %v2636 = vpack.c.b16 %v2601, %v2600
        %v2637 = vpack.c.b16 %v2603, %v2602
        %v2638 = vpack.c.b16 %v2605, %v2604
        %v2639 = vpack.c.b16 %v2607, %v2606
        %v2640 = vpack.c.b16 %v2609, %v2608
        %v2641 = vpack.c.b16 %v2611, %v2610
        %v2642 = vpack.c.b16 %v2613, %v2612
        %v2643 = vpack.c.b16 %v2615, %v2614
        %v2644 = vpack.c.b16 %v2617, %v2616
        %v2645 = vpack.c.b16 %v2619, %v2618
        %v2646 = vpack.c.b16 %v2621, %v2620
        %v2647 = vpack.c.b16 %v2623, %v2622
        %2648 = vrot.lane.b32.xlu0 %v2624, 64
        %v2649 = vpop.permute.xlu0 %2648
        %2650 = vrot.lane.b32.xlu0 %v2625, 64
        %v2651 = vpop.permute.xlu0 %2650
        %2652 = vrot.lane.b32.xlu0 %v2626, 64
        %v2653 = vpop.permute.xlu0 %2652
        %2654 = vrot.lane.b32.xlu0 %v2627, 64
        %v2655 = vpop.permute.xlu0 %2654
        %2656 = vrot.lane.b32.xlu0 %v2628, 64
        %v2657 = vpop.permute.xlu0 %2656
        %2658 = vrot.lane.b32.xlu0 %v2629, 64
        %v2659 = vpop.permute.xlu0 %2658
        %2660 = vrot.lane.b32.xlu0 %v2630, 64
        %v2661 = vpop.permute.xlu0 %2660
        %2662 = vrot.lane.b32.xlu0 %v2631, 64
        %v2663 = vpop.permute.xlu0 %2662
        %2664 = vrot.lane.b32.xlu0 %v2632, 64
        %v2665 = vpop.permute.xlu0 %2664
        %2666 = vrot.lane.b32.xlu0 %v2633, 64
        %v2667 = vpop.permute.xlu0 %2666
        %2668 = vrot.lane.b32.xlu0 %v2634, 64
        %v2669 = vpop.permute.xlu0 %2668
        %2670 = vrot.lane.b32.xlu0 %v2635, 64
        %v2671 = vpop.permute.xlu0 %2670
        %2672 = vrot.lane.b32.xlu0 %v2636, 64
        %v2673 = vpop.permute.xlu0 %2672
        %2674 = vrot.lane.b32.xlu0 %v2637, 64
        %v2675 = vpop.permute.xlu0 %2674
        %2676 = vrot.lane.b32.xlu0 %v2638, 64
        %v2677 = vpop.permute.xlu0 %2676
        %2678 = vrot.lane.b32.xlu0 %v2639, 64
        %v2679 = vpop.permute.xlu0 %2678
        %2680 = vrot.lane.b32.xlu0 %v2640, 64
        %v2681 = vpop.permute.xlu0 %2680
        %2682 = vrot.lane.b32.xlu0 %v2641, 64
        %v2683 = vpop.permute.xlu0 %2682
        %2684 = vrot.lane.b32.xlu0 %v2642, 64
        %v2685 = vpop.permute.xlu0 %2684
        %2686 = vrot.lane.b32.xlu0 %v2643, 64
        %v2687 = vpop.permute.xlu0 %2686
        %2688 = vrot.lane.b32.xlu0 %v2644, 64
        %v2689 = vpop.permute.xlu0 %2688
        %2690 = vrot.lane.b32.xlu0 %v2645, 64
        %v2691 = vpop.permute.xlu0 %2690
        %2692 = vrot.lane.b32.xlu0 %v2646, 64
        %v2693 = vpop.permute.xlu0 %2692
        %2694 = vrot.lane.b32.xlu0 %v2647, 64
        %v2695 = vpop.permute.xlu0 %2694
        %2720 = vst.msk [vmem:[#allocation3] sm:$0xff] %vm898, %v2649
        %2721 = vst.msk [vmem:[#allocation3 + $0x10] sm:$0xff] %vm898, %v2651
        %2722 = vst.msk [vmem:[#allocation3 + $0x20] sm:$0xff] %vm898, %v2653
        %2723 = vst.msk [vmem:[#allocation3 + $0x30] sm:$0xff] %vm898, %v2655
        %2724 = vst.msk [vmem:[#allocation3 + $0x40] sm:$0xff] %vm898, %v2657
        %2725 = vst.msk [vmem:[#allocation3 + $0x50] sm:$0xff] %vm898, %v2659
        %2726 = vst.msk [vmem:[#allocation3 + $0x60] sm:$0xff] %vm898, %v2661
        %2727 = vst.msk [vmem:[#allocation3 + $0x70] sm:$0xff] %vm898, %v2663
        %2728 = vst.msk [vmem:[#allocation3 + $0x80] sm:$0xff] %vm898, %v2665
        %2729 = vst.msk [vmem:[#allocation3 + $0x90] sm:$0xff] %vm898, %v2667
        %2730 = vst.msk [vmem:[#allocation3 + $0xa0] sm:$0xff] %vm898, %v2669
        %2731 = vst.msk [vmem:[#allocation3 + $0xb0] sm:$0xff] %vm898, %v2671
        %2732 = vst.msk [vmem:[#allocation3 + $0xc0] sm:$0xff] %vm898, %v2673
        %2733 = vst.msk [vmem:[#allocation3 + $0xd0] sm:$0xff] %vm898, %v2675
        %2734 = vst.msk [vmem:[#allocation3 + $0xe0] sm:$0xff] %vm898, %v2677
        %2735 = vst.msk [vmem:[#allocation3 + $0xf0] sm:$0xff] %vm898, %v2679
        %2736 = vst.msk [vmem:[#allocation3 + $0x100] sm:$0xff] %vm898, %v2681
        %2737 = vst.msk [vmem:[#allocation3 + $0x110] sm:$0xff] %vm898, %v2683
        %2738 = vst.msk [vmem:[#allocation3 + $0x120] sm:$0xff] %vm898, %v2685
        %2739 = vst.msk [vmem:[#allocation3 + $0x130] sm:$0xff] %vm898, %v2687
        %2740 = vst.msk [vmem:[#allocation3 + $0x140] sm:$0xff] %vm898, %v2689
        %2741 = vst.msk [vmem:[#allocation3 + $0x150] sm:$0xff] %vm898, %v2691
        %2742 = vst.msk [vmem:[#allocation3 + $0x160] sm:$0xff] %vm898, %v2693
        %2743 = vst.msk [vmem:[#allocation3 + $0x170] sm:$0xff] %vm898, %v2695
        %v2744 = vld [vmem:[%s923] sm:$0xf]
        %v2745 = vld [vmem:[%s923 + $0x4] sm:$0xf]
        %v2746 = vld [vmem:[%s923 + $0x8] sm:$0xf]
        %v2747 = vld [vmem:[%s923 + $0xc] sm:$0xf]
        %v2748 = vld [vmem:[%s923 + $0x10] sm:$0xf]
        %v2749 = vld [vmem:[%s923 + $0x14] sm:$0xf]
        %v2750 = vld [vmem:[%s923 + $0x18] sm:$0xf]
        %v2751 = vld [vmem:[%s923 + $0x1c] sm:$0xf]
        %v2752 = vld [vmem:[%s923 + $0x20] sm:$0xf]
        %v2753 = vld [vmem:[%s923 + $0x24] sm:$0xf]
        %v2754 = vld [vmem:[%s923 + $0x28] sm:$0xf]
        %v2755 = vld [vmem:[%s923 + $0x2c] sm:$0xf]
        %v2756 = vld [vmem:[%s923 + $0x30] sm:$0xf]
        %v2757 = vld [vmem:[%s923 + $0x34] sm:$0xf]
        %v2758 = vld [vmem:[%s923 + $0x38] sm:$0xf]
        %v2759 = vld [vmem:[%s923 + $0x3c] sm:$0xf]
        %v2760 = vld [vmem:[%s923 + $0x40] sm:$0xf]
        %v2761 = vld [vmem:[%s923 + $0x44] sm:$0xf]
        %v2762 = vld [vmem:[%s923 + $0x48] sm:$0xf]
        %v2763 = vld [vmem:[%s923 + $0x4c] sm:$0xf]
        %v2764 = vld [vmem:[%s923 + $0x50] sm:$0xf]
        %v2765 = vld [vmem:[%s923 + $0x54] sm:$0xf]
        %v2766 = vld [vmem:[%s923 + $0x58] sm:$0xf]
        %v2767 = vld [vmem:[%s923 + $0x5c] sm:$0xf]
        %v2768 = vld [vmem:[%s923 + $0x60] sm:$0xf]
        %v2769 = vld [vmem:[%s923 + $0x64] sm:$0xf]
        %v2770 = vld [vmem:[%s923 + $0x68] sm:$0xf]
        %v2771 = vld [vmem:[%s923 + $0x6c] sm:$0xf]
        %v2772 = vld [vmem:[%s923 + $0x70] sm:$0xf]
        %v2773 = vld [vmem:[%s923 + $0x74] sm:$0xf]
        %v2774 = vld [vmem:[%s923 + $0x78] sm:$0xf]
        %v2775 = vld [vmem:[%s923 + $0x7c] sm:$0xf]
        %v2776 = vld [vmem:[%s923 + $0x80] sm:$0xf]
        %v2777 = vld [vmem:[%s923 + $0x84] sm:$0xf]
        %v2778 = vld [vmem:[%s923 + $0x88] sm:$0xf]
        %v2779 = vld [vmem:[%s923 + $0x8c] sm:$0xf]
        %v2780 = vld [vmem:[%s923 + $0x90] sm:$0xf]
        %v2781 = vld [vmem:[%s923 + $0x94] sm:$0xf]
        %v2782 = vld [vmem:[%s923 + $0x98] sm:$0xf]
        %v2783 = vld [vmem:[%s923 + $0x9c] sm:$0xf]
        %v2784 = vld [vmem:[%s923 + $0xa0] sm:$0xf]
        %v2785 = vld [vmem:[%s923 + $0xa4] sm:$0xf]
        %v2786 = vld [vmem:[%s923 + $0xa8] sm:$0xf]
        %v2787 = vld [vmem:[%s923 + $0xac] sm:$0xf]
        %v2788 = vld [vmem:[%s923 + $0xb0] sm:$0xf]
        %v2789 = vld [vmem:[%s923 + $0xb4] sm:$0xf]
        %v2790 = vld [vmem:[%s923 + $0xb8] sm:$0xf]
        %v2791 = vld [vmem:[%s923 + $0xbc] sm:$0xf]
        %v2840 = vunpack.c.l.b16 %v2744
        %v2841 = vunpack.c.l.b16 %v2745
        %v2842 = vunpack.c.l.b16 %v2746
        %v2843 = vunpack.c.l.b16 %v2747
        %v2844 = vunpack.c.l.b16 %v2748
        %v2845 = vunpack.c.l.b16 %v2749
        %v2846 = vunpack.c.l.b16 %v2750
        %v2847 = vunpack.c.l.b16 %v2751
        %v2848 = vunpack.c.l.b16 %v2752
        %v2849 = vunpack.c.l.b16 %v2753
        %v2850 = vunpack.c.l.b16 %v2754
        %v2851 = vunpack.c.l.b16 %v2755
        %v2852 = vunpack.c.l.b16 %v2756
        %v2853 = vunpack.c.l.b16 %v2757
        %v2854 = vunpack.c.l.b16 %v2758
        %v2855 = vunpack.c.l.b16 %v2759
        %v2856 = vunpack.c.l.b16 %v2760
        %v2857 = vunpack.c.l.b16 %v2761
        %v2858 = vunpack.c.l.b16 %v2762
        %v2859 = vunpack.c.l.b16 %v2763
        %v2860 = vunpack.c.l.b16 %v2764
        %v2861 = vunpack.c.l.b16 %v2765
        %v2862 = vunpack.c.l.b16 %v2766
        %v2863 = vunpack.c.l.b16 %v2767
        %v2864 = vunpack.c.l.b16 %v2768
        %v2865 = vunpack.c.l.b16 %v2769
        %v2866 = vunpack.c.l.b16 %v2770
        %v2867 = vunpack.c.l.b16 %v2771
        %v2868 = vunpack.c.l.b16 %v2772
        %v2869 = vunpack.c.l.b16 %v2773
        %v2870 = vunpack.c.l.b16 %v2774
        %v2871 = vunpack.c.l.b16 %v2775
        %v2872 = vunpack.c.l.b16 %v2776
        %v2873 = vunpack.c.l.b16 %v2777
        %v2874 = vunpack.c.l.b16 %v2778
        %v2875 = vunpack.c.l.b16 %v2779
        %v2876 = vunpack.c.l.b16 %v2780
        %v2877 = vunpack.c.l.b16 %v2781
        %v2878 = vunpack.c.l.b16 %v2782
        %v2879 = vunpack.c.l.b16 %v2783
        %v2880 = vunpack.c.l.b16 %v2784
        %v2881 = vunpack.c.l.b16 %v2785
        %v2882 = vunpack.c.l.b16 %v2786
        %v2883 = vunpack.c.l.b16 %v2787
        %v2884 = vunpack.c.l.b16 %v2788
        %v2885 = vunpack.c.l.b16 %v2789
        %v2886 = vunpack.c.l.b16 %v2790
        %v2887 = vunpack.c.l.b16 %v2791
        %v2888 = vpack.c.b16 %v2841, %v2840
        %v2889 = vpack.c.b16 %v2843, %v2842
        %v2890 = vpack.c.b16 %v2845, %v2844
        %v2891 = vpack.c.b16 %v2847, %v2846
        %v2892 = vpack.c.b16 %v2849, %v2848
        %v2893 = vpack.c.b16 %v2851, %v2850
        %v2894 = vpack.c.b16 %v2853, %v2852
        %v2895 = vpack.c.b16 %v2855, %v2854
        %v2896 = vpack.c.b16 %v2857, %v2856
        %v2897 = vpack.c.b16 %v2859, %v2858
        %v2898 = vpack.c.b16 %v2861, %v2860
        %v2899 = vpack.c.b16 %v2863, %v2862
        %v2900 = vpack.c.b16 %v2865, %v2864
        %v2901 = vpack.c.b16 %v2867, %v2866
        %v2902 = vpack.c.b16 %v2869, %v2868
        %v2903 = vpack.c.b16 %v2871, %v2870
        %v2904 = vpack.c.b16 %v2873, %v2872
        %v2905 = vpack.c.b16 %v2875, %v2874
        %v2906 = vpack.c.b16 %v2877, %v2876
        %v2907 = vpack.c.b16 %v2879, %v2878
        %v2908 = vpack.c.b16 %v2881, %v2880
        %v2909 = vpack.c.b16 %v2883, %v2882
        %v2910 = vpack.c.b16 %v2885, %v2884
        %v2911 = vpack.c.b16 %v2887, %v2886
        %2936 = vst.msk [vmem:[#allocation3 + $0x8] sm:$0xff] %vm633, %v2888
        %2937 = vst.msk [vmem:[#allocation3 + $0x18] sm:$0xff] %vm633, %v2889
        %2938 = vst.msk [vmem:[#allocation3 + $0x28] sm:$0xff] %vm633, %v2890
        %2939 = vst.msk [vmem:[#allocation3 + $0x38] sm:$0xff] %vm633, %v2891
        %2940 = vst.msk [vmem:[#allocation3 + $0x48] sm:$0xff] %vm633, %v2892
        %2941 = vst.msk [vmem:[#allocation3 + $0x58] sm:$0xff] %vm633, %v2893
        %2942 = vst.msk [vmem:[#allocation3 + $0x68] sm:$0xff] %vm633, %v2894
        %2943 = vst.msk [vmem:[#allocation3 + $0x78] sm:$0xff] %vm633, %v2895
        %2944 = vst.msk [vmem:[#allocation3 + $0x88] sm:$0xff] %vm633, %v2896
        %2945 = vst.msk [vmem:[#allocation3 + $0x98] sm:$0xff] %vm633, %v2897
        %2946 = vst.msk [vmem:[#allocation3 + $0xa8] sm:$0xff] %vm633, %v2898
        %2947 = vst.msk [vmem:[#allocation3 + $0xb8] sm:$0xff] %vm633, %v2899
        %2948 = vst.msk [vmem:[#allocation3 + $0xc8] sm:$0xff] %vm633, %v2900
        %2949 = vst.msk [vmem:[#allocation3 + $0xd8] sm:$0xff] %vm633, %v2901
        %2950 = vst.msk [vmem:[#allocation3 + $0xe8] sm:$0xff] %vm633, %v2902
        %2951 = vst.msk [vmem:[#allocation3 + $0xf8] sm:$0xff] %vm633, %v2903
        %2952 = vst.msk [vmem:[#allocation3 + $0x108] sm:$0xff] %vm633, %v2904
        %2953 = vst.msk [vmem:[#allocation3 + $0x118] sm:$0xff] %vm633, %v2905
        %2954 = vst.msk [vmem:[#allocation3 + $0x128] sm:$0xff] %vm633, %v2906
        %2955 = vst.msk [vmem:[#allocation3 + $0x138] sm:$0xff] %vm633, %v2907
        %2956 = vst.msk [vmem:[#allocation3 + $0x148] sm:$0xff] %vm633, %v2908
        %2957 = vst.msk [vmem:[#allocation3 + $0x158] sm:$0xff] %vm633, %v2909
        %2958 = vst.msk [vmem:[#allocation3 + $0x168] sm:$0xff] %vm633, %v2910
        %2959 = vst.msk [vmem:[#allocation3 + $0x178] sm:$0xff] %vm633, %v2911
        %v2960 = vld [vmem:[#allocation3] sm:$0xff]
        %v2961 = vld [vmem:[#allocation3 + $0x8] sm:$0xff]
        %v2962 = vld [vmem:[#allocation3 + $0x10] sm:$0xff]
        %v2963 = vld [vmem:[#allocation3 + $0x18] sm:$0xff]
        %v2964 = vld [vmem:[#allocation3 + $0x20] sm:$0xff]
        %v2965 = vld [vmem:[#allocation3 + $0x28] sm:$0xff]
        %v2966 = vld [vmem:[#allocation3 + $0x30] sm:$0xff]
        %v2967 = vld [vmem:[#allocation3 + $0x38] sm:$0xff]
        %v2968 = vld [vmem:[#allocation3 + $0x40] sm:$0xff]
        %v2969 = vld [vmem:[#allocation3 + $0x48] sm:$0xff]
        %v2970 = vld [vmem:[#allocation3 + $0x50] sm:$0xff]
        %v2971 = vld [vmem:[#allocation3 + $0x58] sm:$0xff]
        %v2972 = vld [vmem:[#allocation3 + $0x60] sm:$0xff]
        %v2973 = vld [vmem:[#allocation3 + $0x68] sm:$0xff]
        %v2974 = vld [vmem:[#allocation3 + $0x70] sm:$0xff]
        %v2975 = vld [vmem:[#allocation3 + $0x78] sm:$0xff]
        %v2976 = vld [vmem:[#allocation3 + $0x80] sm:$0xff]
        %v2977 = vld [vmem:[#allocation3 + $0x88] sm:$0xff]
        %v2978 = vld [vmem:[#allocation3 + $0x90] sm:$0xff]
        %v2979 = vld [vmem:[#allocation3 + $0x98] sm:$0xff]
        %v2980 = vld [vmem:[#allocation3 + $0xa0] sm:$0xff]
        %v2981 = vld [vmem:[#allocation3 + $0xa8] sm:$0xff]
        %v2982 = vld [vmem:[#allocation3 + $0xb0] sm:$0xff]
        %v2983 = vld [vmem:[#allocation3 + $0xb8] sm:$0xff]
        %v2984 = vld [vmem:[#allocation3 + $0xc0] sm:$0xff]
        %v2985 = vld [vmem:[#allocation3 + $0xc8] sm:$0xff]
        %v2986 = vld [vmem:[#allocation3 + $0xd0] sm:$0xff]
        %v2987 = vld [vmem:[#allocation3 + $0xd8] sm:$0xff]
        %v2988 = vld [vmem:[#allocation3 + $0xe0] sm:$0xff]
        %v2989 = vld [vmem:[#allocation3 + $0xe8] sm:$0xff]
        %v2990 = vld [vmem:[#allocation3 + $0xf0] sm:$0xff]
        %v2991 = vld [vmem:[#allocation3 + $0xf8] sm:$0xff]
        %v2992 = vld [vmem:[#allocation3 + $0x100] sm:$0xff]
        %v2993 = vld [vmem:[#allocation3 + $0x108] sm:$0xff]
        %v2994 = vld [vmem:[#allocation3 + $0x110] sm:$0xff]
        %v2995 = vld [vmem:[#allocation3 + $0x118] sm:$0xff]
        %v2996 = vld [vmem:[#allocation3 + $0x120] sm:$0xff]
        %v2997 = vld [vmem:[#allocation3 + $0x128] sm:$0xff]
        %v2998 = vld [vmem:[#allocation3 + $0x130] sm:$0xff]
        %v2999 = vld [vmem:[#allocation3 + $0x138] sm:$0xff]
        %v3000 = vld [vmem:[#allocation3 + $0x140] sm:$0xff]
        %v3001 = vld [vmem:[#allocation3 + $0x148] sm:$0xff]
        %v3002 = vld [vmem:[#allocation3 + $0x150] sm:$0xff]
        %v3003 = vld [vmem:[#allocation3 + $0x158] sm:$0xff]
        %v3004 = vld [vmem:[#allocation3 + $0x160] sm:$0xff]
        %v3005 = vld [vmem:[#allocation3 + $0x168] sm:$0xff]
        %v3006 = vld [vmem:[#allocation3 + $0x170] sm:$0xff]
        %v3007 = vld [vmem:[#allocation3 + $0x178] sm:$0xff]
        %v3008 = vld [vmem:[%s3] sm:$0xff]
        %v3009 = vld [vmem:[%s3 + $0x8] sm:$0xff]
        %v3010 = vld [vmem:[%s3 + $0x10] sm:$0xff]
        %v3011 = vld [vmem:[%s3 + $0x18] sm:$0xff]
        %v3012 = vld [vmem:[%s3 + $0x20] sm:$0xff]
        %v3013 = vld [vmem:[%s3 + $0x28] sm:$0xff]
        %v3014 = vld [vmem:[%s3 + $0x30] sm:$0xff]
        %v3015 = vld [vmem:[%s3 + $0x38] sm:$0xff]
        %v3016 = vld [vmem:[%s3 + $0x40] sm:$0xff]
        %v3017 = vld [vmem:[%s3 + $0x48] sm:$0xff]
        %v3018 = vld [vmem:[%s3 + $0x50] sm:$0xff]
        %v3019 = vld [vmem:[%s3 + $0x58] sm:$0xff]
        %v3020 = vld [vmem:[%s3 + $0x60] sm:$0xff]
        %v3021 = vld [vmem:[%s3 + $0x68] sm:$0xff]
        %v3022 = vld [vmem:[%s3 + $0x70] sm:$0xff]
        %v3023 = vld [vmem:[%s3 + $0x78] sm:$0xff]
        %v3024 = vld [vmem:[%s3 + $0x80] sm:$0xff]
        %v3025 = vld [vmem:[%s3 + $0x88] sm:$0xff]
        %v3026 = vld [vmem:[%s3 + $0x90] sm:$0xff]
        %v3027 = vld [vmem:[%s3 + $0x98] sm:$0xff]
        %v3028 = vld [vmem:[%s3 + $0xa0] sm:$0xff]
        %v3029 = vld [vmem:[%s3 + $0xa8] sm:$0xff]
        %v3030 = vld [vmem:[%s3 + $0xb0] sm:$0xff]
        %v3031 = vld [vmem:[%s3 + $0xb8] sm:$0xff]
        %v3056 = vunpack.c.l.b16 %v3008
        %v3057 = vunpack.c.h.b16 %v3008
        %v3058 = vunpack.c.l.b16 %v3009
        %v3059 = vunpack.c.h.b16 %v3009
        %v3060 = vunpack.c.l.b16 %v3010
        %v3061 = vunpack.c.h.b16 %v3010
        %v3062 = vunpack.c.l.b16 %v3011
        %v3063 = vunpack.c.h.b16 %v3011
        %v3064 = vunpack.c.l.b16 %v3012
        %v3065 = vunpack.c.h.b16 %v3012
        %v3066 = vunpack.c.l.b16 %v3013
        %v3067 = vunpack.c.h.b16 %v3013
        %v3068 = vunpack.c.l.b16 %v3014
        %v3069 = vunpack.c.h.b16 %v3014
        %v3070 = vunpack.c.l.b16 %v3015
        %v3071 = vunpack.c.h.b16 %v3015
        %v3072 = vunpack.c.l.b16 %v3016
        %v3073 = vunpack.c.h.b16 %v3016
        %v3074 = vunpack.c.l.b16 %v3017
        %v3075 = vunpack.c.h.b16 %v3017
        %v3076 = vunpack.c.l.b16 %v3018
        %v3077 = vunpack.c.h.b16 %v3018
        %v3078 = vunpack.c.l.b16 %v3019
        %v3079 = vunpack.c.h.b16 %v3019
        %v3080 = vunpack.c.l.b16 %v3020
        %v3081 = vunpack.c.h.b16 %v3020
        %v3082 = vunpack.c.l.b16 %v3021
        %v3083 = vunpack.c.h.b16 %v3021
        %v3084 = vunpack.c.l.b16 %v3022
        %v3085 = vunpack.c.h.b16 %v3022
        %v3086 = vunpack.c.l.b16 %v3023
        %v3087 = vunpack.c.h.b16 %v3023
        %v3088 = vunpack.c.l.b16 %v3024
        %v3089 = vunpack.c.h.b16 %v3024
        %v3090 = vunpack.c.l.b16 %v3025
        %v3091 = vunpack.c.h.b16 %v3025
        %v3092 = vunpack.c.l.b16 %v3026
        %v3093 = vunpack.c.h.b16 %v3026
        %v3094 = vunpack.c.l.b16 %v3027
        %v3095 = vunpack.c.h.b16 %v3027
        %v3096 = vunpack.c.l.b16 %v3028
        %v3097 = vunpack.c.h.b16 %v3028
        %v3098 = vunpack.c.l.b16 %v3029
        %v3099 = vunpack.c.h.b16 %v3029
        %v3100 = vunpack.c.l.b16 %v3030
        %v3101 = vunpack.c.h.b16 %v3030
        %v3102 = vunpack.c.l.b16 %v3031
        %v3103 = vunpack.c.h.b16 %v3031
        %v3104 = vpack.c.b16 %v3058, %v3056
        %v3105 = vpack.c.b16 %v3059, %v3057
        %v3106 = vpack.c.b16 %v3062, %v3060
        %v3107 = vpack.c.b16 %v3063, %v3061
        %v3108 = vpack.c.b16 %v3066, %v3064
        %v3109 = vpack.c.b16 %v3067, %v3065
        %v3110 = vpack.c.b16 %v3070, %v3068
        %v3111 = vpack.c.b16 %v3071, %v3069
        %v3112 = vpack.c.b16 %v3074, %v3072
        %v3113 = vpack.c.b16 %v3075, %v3073
        %v3114 = vpack.c.b16 %v3078, %v3076
        %v3115 = vpack.c.b16 %v3079, %v3077
        %v3116 = vpack.c.b16 %v3082, %v3080
        %v3117 = vpack.c.b16 %v3083, %v3081
        %v3118 = vpack.c.b16 %v3086, %v3084
        %v3119 = vpack.c.b16 %v3087, %v3085
        %v3120 = vpack.c.b16 %v3090, %v3088
        %v3121 = vpack.c.b16 %v3091, %v3089
        %v3122 = vpack.c.b16 %v3094, %v3092
        %v3123 = vpack.c.b16 %v3095, %v3093
        %v3124 = vpack.c.b16 %v3098, %v3096
        %v3125 = vpack.c.b16 %v3099, %v3097
        %v3126 = vpack.c.b16 %v3102, %v3100
        %v3127 = vpack.c.b16 %v3103, %v3101
        %v3153 = vsel %vm633, %v2961, 0
        %v3156 = vsel %vm633, %v2963, 0
        %v3159 = vsel %vm633, %v2965, 0
        %v3162 = vsel %vm633, %v2967, 0
        %v3165 = vsel %vm633, %v2969, 0
        %v3168 = vsel %vm633, %v2971, 0
        %v3171 = vsel %vm633, %v2973, 0
        %v3174 = vsel %vm633, %v2975, 0
        %v3177 = vsel %vm633, %v2977, 0
        %v3180 = vsel %vm633, %v2979, 0
        %v3183 = vsel %vm633, %v2981, 0
        %v3186 = vsel %vm633, %v2983, 0
        %v3189 = vsel %vm633, %v2985, 0
        %v3192 = vsel %vm633, %v2987, 0
        %v3195 = vsel %vm633, %v2989, 0
        %v3198 = vsel %vm633, %v2991, 0
        %v3201 = vsel %vm633, %v2993, 0
        %v3204 = vsel %vm633, %v2995, 0
        %v3207 = vsel %vm633, %v2997, 0
        %v3210 = vsel %vm633, %v2999, 0
        %v3213 = vsel %vm633, %v3001, 0
        %v3216 = vsel %vm633, %v3003, 0
        %v3219 = vsel %vm633, %v3005, 0
        %v3222 = vsel %vm633, %v3007, 0
        %3224 = vmatprep.subr.bf16.mxu0 %v3105
        %3225 = vmatpush1.bf16.msra.mxu0 %v3104
        %3226 = vmatprep.subr.bf16.mxu0 %v3107
        %3227 = vmatpush1.bf16.msra.mxu0 %v3106
        %3228 = vmatprep.subr.bf16.mxu0 %v3109
        %3229 = vmatpush1.bf16.msra.mxu0 %v3108
        %3230 = vmatprep.subr.bf16.mxu0 %v3111
        %3231 = vmatpush1.bf16.msra.mxu0 %v3110
        %3232 = vmatprep.subr.bf16.mxu0 %v3113
        %3233 = vmatpush1.bf16.msra.mxu0 %v3112
        %3234 = vmatprep.subr.bf16.mxu0 %v3115
        %3235 = vmatpush1.bf16.msra.mxu0 %v3114
        %3236 = vmatprep.subr.bf16.mxu0 %v3117
        %3237 = vmatpush1.bf16.msra.mxu0 %v3116
        %3238 = vmatprep.subr.bf16.mxu0 %v3119
        %3239 = vmatpush1.bf16.msra.mxu0 %v3118
        %3240 = vmatprep.subr.bf16.mxu0 %v3121
        %3241 = vmatpush1.bf16.msra.mxu0 %v3120
        %3242 = vmatprep.subr.bf16.mxu0 %v3123
        %3243 = vmatpush1.bf16.msra.mxu0 %v3122
        %3244 = vmatprep.subr.bf16.mxu0 %v3125
        %3245 = vmatpush1.bf16.msra.mxu0 %v3124
        %3246 = vmatprep.subr.bf16.mxu0 %v3127
        %3247 = vmatpush1.bf16.msra.mxu0 %v3126
        %3248 = vmatprep.subr.bf16.mxu0 0
        %3249 = vmatpush1.bf16.msra.mxu0 0
        %3250 = vmatprep.subr.bf16.mxu0 0
        %3251 = vmatpush1.bf16.msra.mxu0 0
        %3252 = vmatprep.subr.bf16.mxu0 0
        %3253 = vmatpush1.bf16.msra.mxu0 0
        %3254 = vmatprep.subr.bf16.mxu0 0
        %3255 = vmatpush1.bf16.msra.mxu0 0
        %3256 = vmatprep.mubr.bf16.mxu0 %v3153
        %3257 = vmatmul.mubr.bf16.gmra.mrb[0].mxu0 %v2960
        %v3258 = vpop.f32.mrb[0].mxu0
        %v3259 = vadd.f32 0.0, %v3258
        %v3260 = vpop.f32.mrb[0].mxu0
        %v3261 = vadd.f32 0.0, %v3260
        %v3262 = vpop.f32.mrb[0].mxu0
        %v3263 = vadd.f32 0.0, %v3262
        %v3264 = vpop.f32.mrb[0].mxu0
        %v3265 = vadd.f32 0.0, %v3264
        %3266 = vmatprep.mubr.bf16.mxu0 %v3156
        %3267 = vmatmul.mubr.bf16.gmra.mrb[0].mxu0 %v2962
        %v3268 = vpop.f32.mrb[0].mxu0
        %v3269 = vadd.f32 0.0, %v3268
        %v3270 = vpop.f32.mrb[0].mxu0
        %v3271 = vadd.f32 0.0, %v3270
        %v3272 = vpop.f32.mrb[0].mxu0
        %v3273 = vadd.f32 0.0, %v3272
        %v3274 = vpop.f32.mrb[0].mxu0
        %v3275 = vadd.f32 0.0, %v3274
        %3276 = vmatprep.mubr.bf16.mxu0 %v3159
        %3277 = vmatmul.mubr.bf16.gmra.mrb[0].mxu0 %v2964
        %v3278 = vpop.f32.mrb[0].mxu0
        %v3279 = vadd.f32 0.0, %v3278
        %v3280 = vpop.f32.mrb[0].mxu0
        %v3281 = vadd.f32 0.0, %v3280
        %v3282 = vpop.f32.mrb[0].mxu0
        %v3283 = vadd.f32 0.0, %v3282
        %v3284 = vpop.f32.mrb[0].mxu0
        %v3285 = vadd.f32 0.0, %v3284
        %3286 = vmatprep.mubr.bf16.mxu0 %v3162
        %3287 = vmatmul.mubr.bf16.gmra.mrb[0].mxu0 %v2966
        %v3288 = vpop.f32.mrb[0].mxu0
        %v3289 = vadd.f32 0.0, %v3288
        %v3290 = vpop.f32.mrb[0].mxu0
        %v3291 = vadd.f32 0.0, %v3290
        %v3292 = vpop.f32.mrb[0].mxu0
        %v3293 = vadd.f32 0.0, %v3292
        %v3294 = vpop.f32.mrb[0].mxu0
        %v3295 = vadd.f32 0.0, %v3294
        %3296 = vmatprep.mubr.bf16.mxu0 %v3165
        %3297 = vmatmul.mubr.bf16.gmra.mrb[0].mxu0 %v2968
        %v3298 = vpop.f32.mrb[0].mxu0
        %v3299 = vadd.f32 0.0, %v3298
        %v3300 = vpop.f32.mrb[0].mxu0
        %v3301 = vadd.f32 0.0, %v3300
        %v3302 = vpop.f32.mrb[0].mxu0
        %v3303 = vadd.f32 0.0, %v3302
        %v3304 = vpop.f32.mrb[0].mxu0
        %v3305 = vadd.f32 0.0, %v3304
        %3306 = vmatprep.mubr.bf16.mxu0 %v3168
        %3307 = vmatmul.mubr.bf16.gmra.mrb[0].mxu0 %v2970
        %v3308 = vpop.f32.mrb[0].mxu0
        %v3309 = vadd.f32 0.0, %v3308
        %v3310 = vpop.f32.mrb[0].mxu0
        %v3311 = vadd.f32 0.0, %v3310
        %v3312 = vpop.f32.mrb[0].mxu0
        %v3313 = vadd.f32 0.0, %v3312
        %v3314 = vpop.f32.mrb[0].mxu0
        %v3315 = vadd.f32 0.0, %v3314
        %3316 = vmatprep.mubr.bf16.mxu0 %v3171
        %3317 = vmatmul.mubr.bf16.gmra.mrb[0].mxu0 %v2972
        %v3318 = vpop.f32.mrb[0].mxu0
        %v3319 = vadd.f32 0.0, %v3318
        %v3320 = vpop.f32.mrb[0].mxu0
        %v3321 = vadd.f32 0.0, %v3320
        %v3322 = vpop.f32.mrb[0].mxu0
        %v3323 = vadd.f32 0.0, %v3322
        %v3324 = vpop.f32.mrb[0].mxu0
        %v3325 = vadd.f32 0.0, %v3324
        %3326 = vmatprep.mubr.bf16.mxu0 %v3174
        %3327 = vmatmul.mubr.bf16.gmra.mrb[0].mxu0 %v2974
        %v3328 = vpop.f32.mrb[0].mxu0
        %v3329 = vadd.f32 0.0, %v3328
        %v3330 = vpop.f32.mrb[0].mxu0
        %v3331 = vadd.f32 0.0, %v3330
        %v3332 = vpop.f32.mrb[0].mxu0
        %v3333 = vadd.f32 0.0, %v3332
        %v3334 = vpop.f32.mrb[0].mxu0
        %v3335 = vadd.f32 0.0, %v3334
        %3336 = vmatprep.mubr.bf16.mxu0 %v3177
        %3337 = vmatmul.mubr.bf16.gmra.mrb[0].mxu0 %v2976
        %v3338 = vpop.f32.mrb[0].mxu0
        %v3339 = vadd.f32 0.0, %v3338
        %v3340 = vpop.f32.mrb[0].mxu0
        %v3341 = vadd.f32 0.0, %v3340
        %v3342 = vpop.f32.mrb[0].mxu0
        %v3343 = vadd.f32 0.0, %v3342
        %v3344 = vpop.f32.mrb[0].mxu0
        %v3345 = vadd.f32 0.0, %v3344
        %3346 = vmatprep.mubr.bf16.mxu0 %v3180
        %3347 = vmatmul.mubr.bf16.gmra.mrb[0].mxu0 %v2978
        %v3348 = vpop.f32.mrb[0].mxu0
        %v3349 = vadd.f32 0.0, %v3348
        %v3350 = vpop.f32.mrb[0].mxu0
        %v3351 = vadd.f32 0.0, %v3350
        %v3352 = vpop.f32.mrb[0].mxu0
        %v3353 = vadd.f32 0.0, %v3352
        %v3354 = vpop.f32.mrb[0].mxu0
        %v3355 = vadd.f32 0.0, %v3354
        %3356 = vmatprep.mubr.bf16.mxu0 %v3183
        %3357 = vmatmul.mubr.bf16.gmra.mrb[0].mxu0 %v2980
        %v3358 = vpop.f32.mrb[0].mxu0
        %v3359 = vadd.f32 0.0, %v3358
        %v3360 = vpop.f32.mrb[0].mxu0
        %v3361 = vadd.f32 0.0, %v3360
        %v3362 = vpop.f32.mrb[0].mxu0
        %v3363 = vadd.f32 0.0, %v3362
        %v3364 = vpop.f32.mrb[0].mxu0
        %v3365 = vadd.f32 0.0, %v3364
        %3366 = vmatprep.mubr.bf16.mxu0 %v3186
        %3367 = vmatmul.mubr.bf16.gmra.mrb[0].mxu0 %v2982
        %v3368 = vpop.f32.mrb[0].mxu0
        %v3369 = vadd.f32 0.0, %v3368
        %v3370 = vpop.f32.mrb[0].mxu0
        %v3371 = vadd.f32 0.0, %v3370
        %v3372 = vpop.f32.mrb[0].mxu0
        %v3373 = vadd.f32 0.0, %v3372
        %v3374 = vpop.f32.mrb[0].mxu0
        %v3375 = vadd.f32 0.0, %v3374
        %3376 = vmatprep.mubr.bf16.mxu0 %v3189
        %3377 = vmatmul.mubr.bf16.gmra.mrb[0].mxu0 %v2984
        %v3378 = vpop.f32.mrb[0].mxu0
        %v3379 = vadd.f32 0.0, %v3378
        %v3380 = vpop.f32.mrb[0].mxu0
        %v3381 = vadd.f32 0.0, %v3380
        %v3382 = vpop.f32.mrb[0].mxu0
        %v3383 = vadd.f32 0.0, %v3382
        %v3384 = vpop.f32.mrb[0].mxu0
        %v3385 = vadd.f32 0.0, %v3384
        %3386 = vmatprep.mubr.bf16.mxu0 %v3192
        %3387 = vmatmul.mubr.bf16.gmra.mrb[0].mxu0 %v2986
        %v3388 = vpop.f32.mrb[0].mxu0
        %v3389 = vadd.f32 0.0, %v3388
        %v3390 = vpop.f32.mrb[0].mxu0
        %v3391 = vadd.f32 0.0, %v3390
        %v3392 = vpop.f32.mrb[0].mxu0
        %v3393 = vadd.f32 0.0, %v3392
        %v3394 = vpop.f32.mrb[0].mxu0
        %v3395 = vadd.f32 0.0, %v3394
        %3396 = vmatprep.mubr.bf16.mxu0 %v3195
        %3397 = vmatmul.mubr.bf16.gmra.mrb[0].mxu0 %v2988
        %v3398 = vpop.f32.mrb[0].mxu0
        %v3399 = vadd.f32 0.0, %v3398
        %v3400 = vpop.f32.mrb[0].mxu0
        %v3401 = vadd.f32 0.0, %v3400
        %v3402 = vpop.f32.mrb[0].mxu0
        %v3403 = vadd.f32 0.0, %v3402
        %v3404 = vpop.f32.mrb[0].mxu0
        %v3405 = vadd.f32 0.0, %v3404
        %3406 = vmatprep.mubr.bf16.mxu0 %v3198
        %3407 = vmatmul.mubr.bf16.gmra.mrb[0].mxu0 %v2990
        %v3408 = vpop.f32.mrb[0].mxu0
        %v3409 = vadd.f32 0.0, %v3408
        %v3410 = vpop.f32.mrb[0].mxu0
        %v3411 = vadd.f32 0.0, %v3410
        %v3412 = vpop.f32.mrb[0].mxu0
        %v3413 = vadd.f32 0.0, %v3412
        %v3414 = vpop.f32.mrb[0].mxu0
        %v3415 = vadd.f32 0.0, %v3414
        %3416 = vmatprep.mubr.bf16.mxu0 %v3201
        %3417 = vmatmul.mubr.bf16.gmra.mrb[0].mxu0 %v2992
        %v3418 = vpop.f32.mrb[0].mxu0
        %v3419 = vadd.f32 0.0, %v3418
        %v3420 = vpop.f32.mrb[0].mxu0
        %v3421 = vadd.f32 0.0, %v3420
        %v3422 = vpop.f32.mrb[0].mxu0
        %v3423 = vadd.f32 0.0, %v3422
        %v3424 = vpop.f32.mrb[0].mxu0
        %v3425 = vadd.f32 0.0, %v3424
        %3426 = vmatprep.mubr.bf16.mxu0 %v3204
        %3427 = vmatmul.mubr.bf16.gmra.mrb[0].mxu0 %v2994
        %v3428 = vpop.f32.mrb[0].mxu0
        %v3429 = vadd.f32 0.0, %v3428
        %v3430 = vpop.f32.mrb[0].mxu0
        %v3431 = vadd.f32 0.0, %v3430
        %v3432 = vpop.f32.mrb[0].mxu0
        %v3433 = vadd.f32 0.0, %v3432
        %v3434 = vpop.f32.mrb[0].mxu0
        %v3435 = vadd.f32 0.0, %v3434
        %3436 = vmatprep.mubr.bf16.mxu0 %v3207
        %3437 = vmatmul.mubr.bf16.gmra.mrb[0].mxu0 %v2996
        %v3438 = vpop.f32.mrb[0].mxu0
        %v3439 = vadd.f32 0.0, %v3438
        %v3440 = vpop.f32.mrb[0].mxu0
        %v3441 = vadd.f32 0.0, %v3440
        %v3442 = vpop.f32.mrb[0].mxu0
        %v3443 = vadd.f32 0.0, %v3442
        %v3444 = vpop.f32.mrb[0].mxu0
        %v3445 = vadd.f32 0.0, %v3444
        %3446 = vmatprep.mubr.bf16.mxu0 %v3210
        %3447 = vmatmul.mubr.bf16.gmra.mrb[0].mxu0 %v2998
        %v3448 = vpop.f32.mrb[0].mxu0
        %v3449 = vadd.f32 0.0, %v3448
        %v3450 = vpop.f32.mrb[0].mxu0
        %v3451 = vadd.f32 0.0, %v3450
        %v3452 = vpop.f32.mrb[0].mxu0
        %v3453 = vadd.f32 0.0, %v3452
        %v3454 = vpop.f32.mrb[0].mxu0
        %v3455 = vadd.f32 0.0, %v3454
        %3456 = vmatprep.mubr.bf16.mxu0 %v3213
        %3457 = vmatmul.mubr.bf16.gmra.mrb[0].mxu0 %v3000
        %v3458 = vpop.f32.mrb[0].mxu0
        %v3459 = vadd.f32 0.0, %v3458
        %v3460 = vpop.f32.mrb[0].mxu0
        %v3461 = vadd.f32 0.0, %v3460
        %v3462 = vpop.f32.mrb[0].mxu0
        %v3463 = vadd.f32 0.0, %v3462
        %v3464 = vpop.f32.mrb[0].mxu0
        %v3465 = vadd.f32 0.0, %v3464
        %3466 = vmatprep.mubr.bf16.mxu0 %v3216
        %3467 = vmatmul.mubr.bf16.gmra.mrb[0].mxu0 %v3002
        %v3468 = vpop.f32.mrb[0].mxu0
        %v3469 = vadd.f32 0.0, %v3468
        %v3470 = vpop.f32.mrb[0].mxu0
        %v3471 = vadd.f32 0.0, %v3470
        %v3472 = vpop.f32.mrb[0].mxu0
        %v3473 = vadd.f32 0.0, %v3472
        %v3474 = vpop.f32.mrb[0].mxu0
        %v3475 = vadd.f32 0.0, %v3474
        %3476 = vmatprep.mubr.bf16.mxu0 %v3219
        %3477 = vmatmul.mubr.bf16.gmra.mrb[0].mxu0 %v3004
        %v3478 = vpop.f32.mrb[0].mxu0
        %v3479 = vadd.f32 0.0, %v3478
        %v3480 = vpop.f32.mrb[0].mxu0
        %v3481 = vadd.f32 0.0, %v3480
        %v3482 = vpop.f32.mrb[0].mxu0
        %v3483 = vadd.f32 0.0, %v3482
        %v3484 = vpop.f32.mrb[0].mxu0
        %v3485 = vadd.f32 0.0, %v3484
        %3486 = vmatprep.mubr.bf16.mxu0 %v3222
        %3487 = vmatmul.mubr.bf16.gmra.mrb[0].mxu0 %v3006
        %v3488 = vpop.f32.mrb[0].mxu0
        %v3489 = vadd.f32 0.0, %v3488
        %v3490 = vpop.f32.mrb[0].mxu0
        %v3491 = vadd.f32 0.0, %v3490
        %v3492 = vpop.f32.mrb[0].mxu0
        %v3493 = vadd.f32 0.0, %v3492
        %v3494 = vpop.f32.mrb[0].mxu0
        %v3495 = vadd.f32 0.0, %v3494
        %3496 = vdwg.mxu0
        %v3497 = vrot.slane %v3259, 7
        %v3498 = vrot.slane %v3263, 7
        %v3499 = vrot.slane %v3269, 7
        %v3500 = vrot.slane %v3273, 7
        %v3501 = vrot.slane %v3279, 7
        %v3502 = vrot.slane %v3283, 7
        %v3503 = vrot.slane %v3289, 7
        %v3504 = vrot.slane %v3293, 7
        %v3505 = vrot.slane %v3299, 7
        %v3506 = vrot.slane %v3303, 7
        %v3507 = vrot.slane %v3309, 7
        %v3508 = vrot.slane %v3313, 7
        %v3509 = vrot.slane %v3319, 7
        %v3510 = vrot.slane %v3323, 7
        %v3511 = vrot.slane %v3329, 7
        %v3512 = vrot.slane %v3333, 7
        %v3513 = vrot.slane %v3339, 7
        %v3514 = vrot.slane %v3343, 7
        %v3515 = vrot.slane %v3349, 7
        %v3516 = vrot.slane %v3353, 7
        %v3517 = vrot.slane %v3359, 7
        %v3518 = vrot.slane %v3363, 7
        %v3519 = vrot.slane %v3369, 7
        %v3520 = vrot.slane %v3373, 7
        %v3521 = vrot.slane %v3379, 7
        %v3522 = vrot.slane %v3383, 7
        %v3523 = vrot.slane %v3389, 7
        %v3524 = vrot.slane %v3393, 7
        %v3525 = vrot.slane %v3399, 7
        %v3526 = vrot.slane %v3403, 7
        %v3527 = vrot.slane %v3409, 7
        %v3528 = vrot.slane %v3413, 7
        %v3529 = vrot.slane %v3419, 7
        %v3530 = vrot.slane %v3423, 7
        %v3531 = vrot.slane %v3429, 7
        %v3532 = vrot.slane %v3433, 7
        %v3533 = vrot.slane %v3439, 7
        %v3534 = vrot.slane %v3443, 7
        %v3535 = vrot.slane %v3449, 7
        %v3536 = vrot.slane %v3453, 7
        %v3537 = vrot.slane %v3459, 7
        %v3538 = vrot.slane %v3463, 7
        %v3539 = vrot.slane %v3469, 7
        %v3540 = vrot.slane %v3473, 7
        %v3541 = vrot.slane %v3479, 7
        %v3542 = vrot.slane %v3483, 7
        %v3543 = vrot.slane %v3489, 7
        %v3544 = vrot.slane %v3493, 7
        %v3545 = vsel %vm1727, %v3542, %v3543
        %v3546 = vsel %vm1727, %v3541, %v3542
        %v3547 = vsel %vm1727, %v3539, %v3540
        %v3548 = vsel %vm1727, %v3538, %v3539
        %v3549 = vsel %vm1727, %v3536, %v3537
        %v3550 = vsel %vm1727, %v3535, %v3536
        %v3551 = vsel %vm1727, %v3533, %v3534
        %v3552 = vsel %vm1727, %v3532, %v3533
        %v3553 = vsel %vm1727, %v3530, %v3531
        %v3554 = vsel %vm1727, %v3529, %v3530
        %v3555 = vsel %vm1727, %v3527, %v3528
        %v3556 = vsel %vm1727, %v3526, %v3527
        %v3557 = vsel %vm1727, %v3524, %v3525
        %v3558 = vsel %vm1727, %v3523, %v3524
        %v3559 = vsel %vm1727, %v3521, %v3522
        %v3560 = vsel %vm1727, %v3520, %v3521
        %v3561 = vsel %vm1727, %v3518, %v3519
        %v3562 = vsel %vm1727, %v3517, %v3518
        %v3563 = vsel %vm1727, %v3515, %v3516
        %v3564 = vsel %vm1727, %v3514, %v3515
        %v3565 = vsel %vm1727, %v3512, %v3513
        %v3566 = vsel %vm1727, %v3511, %v3512
        %v3567 = vsel %vm1727, %v3509, %v3510
        %v3568 = vsel %vm1727, %v3508, %v3509
        %v3569 = vsel %vm1727, %v3506, %v3507
        %v3570 = vsel %vm1727, %v3505, %v3506
        %v3571 = vsel %vm1727, %v3503, %v3504
        %v3572 = vsel %vm1727, %v3502, %v3503
        %v3573 = vsel %vm1727, %v3500, %v3501
        %v3574 = vsel %vm1727, %v3499, %v3500
        %v3575 = vsel %vm1727, %v3497, %v3498
        %v3576 = vsel %vm1727, %v3544, %v3497
        %3609 = vrot.lane.b32.xlu0 %v3259, 64
        %v3610 = vpop.permute.xlu0 %3609
        %3611 = vrot.lane.b32.xlu0 %v3263, 64
        %v3612 = vpop.permute.xlu0 %3611
        %3613 = vrot.lane.b32.xlu0 %v3273, 64
        %v3614 = vpop.permute.xlu0 %3613
        %3615 = vrot.lane.b32.xlu0 %v3279, 64
        %v3616 = vpop.permute.xlu0 %3615
        %3617 = vrot.lane.b32.xlu0 %v3289, 64
        %v3618 = vpop.permute.xlu0 %3617
        %3619 = vrot.lane.b32.xlu0 %v3293, 64
        %v3620 = vpop.permute.xlu0 %3619
        %3621 = vrot.lane.b32.xlu0 %v3303, 64
        %v3622 = vpop.permute.xlu0 %3621
        %3623 = vrot.lane.b32.xlu0 %v3309, 64
        %v3624 = vpop.permute.xlu0 %3623
        %3625 = vrot.lane.b32.xlu0 %v3319, 64
        %v3626 = vpop.permute.xlu0 %3625
        %3627 = vrot.lane.b32.xlu0 %v3323, 64
        %v3628 = vpop.permute.xlu0 %3627
        %3629 = vrot.lane.b32.xlu0 %v3333, 64
        %v3630 = vpop.permute.xlu0 %3629
        %3631 = vrot.lane.b32.xlu0 %v3339, 64
        %v3632 = vpop.permute.xlu0 %3631
        %3633 = vrot.lane.b32.xlu0 %v3349, 64
        %v3634 = vpop.permute.xlu0 %3633
        %3635 = vrot.lane.b32.xlu0 %v3353, 64
        %v3636 = vpop.permute.xlu0 %3635
        %3637 = vrot.lane.b32.xlu0 %v3363, 64
        %v3638 = vpop.permute.xlu0 %3637
        %3639 = vrot.lane.b32.xlu0 %v3369, 64
        %v3640 = vpop.permute.xlu0 %3639
        %3641 = vrot.lane.b32.xlu0 %v3379, 64
        %v3642 = vpop.permute.xlu0 %3641
        %3643 = vrot.lane.b32.xlu0 %v3383, 64
        %v3644 = vpop.permute.xlu0 %3643
        %3645 = vrot.lane.b32.xlu0 %v3393, 64
        %v3646 = vpop.permute.xlu0 %3645
        %3647 = vrot.lane.b32.xlu0 %v3399, 64
        %v3648 = vpop.permute.xlu0 %3647
        %3649 = vrot.lane.b32.xlu0 %v3409, 64
        %v3650 = vpop.permute.xlu0 %3649
        %3651 = vrot.lane.b32.xlu0 %v3413, 64
        %v3652 = vpop.permute.xlu0 %3651
        %3653 = vrot.lane.b32.xlu0 %v3423, 64
        %v3654 = vpop.permute.xlu0 %3653
        %3655 = vrot.lane.b32.xlu0 %v3429, 64
        %v3656 = vpop.permute.xlu0 %3655
        %3657 = vrot.lane.b32.xlu0 %v3439, 64
        %v3658 = vpop.permute.xlu0 %3657
        %3659 = vrot.lane.b32.xlu0 %v3443, 64
        %v3660 = vpop.permute.xlu0 %3659
        %3661 = vrot.lane.b32.xlu0 %v3453, 64
        %v3662 = vpop.permute.xlu0 %3661
        %3663 = vrot.lane.b32.xlu0 %v3459, 64
        %v3664 = vpop.permute.xlu0 %3663
        %3665 = vrot.lane.b32.xlu0 %v3469, 64
        %v3666 = vpop.permute.xlu0 %3665
        %3667 = vrot.lane.b32.xlu0 %v3473, 64
        %v3668 = vpop.permute.xlu0 %3667
        %3669 = vrot.lane.b32.xlu0 %v3483, 64
        %v3670 = vpop.permute.xlu0 %3669
        %3671 = vrot.lane.b32.xlu0 %v3489, 64
        %v3672 = vpop.permute.xlu0 %3671
        %v3705 = vadd.f32 %v3576, %v3610
        %v3706 = vadd.f32 %v3575, %v3612
        %v3707 = vadd.f32 %v3574, %v3614
        %v3708 = vadd.f32 %v3573, %v3616
        %v3709 = vadd.f32 %v3572, %v3618
        %v3710 = vadd.f32 %v3571, %v3620
        %v3711 = vadd.f32 %v3570, %v3622
        %v3712 = vadd.f32 %v3569, %v3624
        %v3713 = vadd.f32 %v3568, %v3626
        %v3714 = vadd.f32 %v3567, %v3628
        %v3715 = vadd.f32 %v3566, %v3630
        %v3716 = vadd.f32 %v3565, %v3632
        %v3717 = vadd.f32 %v3564, %v3634
        %v3718 = vadd.f32 %v3563, %v3636
        %v3719 = vadd.f32 %v3562, %v3638
        %v3720 = vadd.f32 %v3561, %v3640
        %v3721 = vadd.f32 %v3560, %v3642
        %v3722 = vadd.f32 %v3559, %v3644
        %v3723 = vadd.f32 %v3558, %v3646
        %v3724 = vadd.f32 %v3557, %v3648
        %v3725 = vadd.f32 %v3556, %v3650
        %v3726 = vadd.f32 %v3555, %v3652
        %v3727 = vadd.f32 %v3554, %v3654
        %v3728 = vadd.f32 %v3553, %v3656
        %v3729 = vadd.f32 %v3552, %v3658
        %v3730 = vadd.f32 %v3551, %v3660
        %v3731 = vadd.f32 %v3550, %v3662
        %v3732 = vadd.f32 %v3549, %v3664
        %v3733 = vadd.f32 %v3548, %v3666
        %v3734 = vadd.f32 %v3547, %v3668
        %v3735 = vadd.f32 %v3546, %v3670
        %v3736 = vadd.f32 %v3545, %v3672
        %v3737 = vrot.slane %v3261, 1
        %v3738 = vrot.slane %v3265, 1
        %v3739 = vrot.slane %v3271, 1
        %v3740 = vrot.slane %v3275, 1
        %v3741 = vrot.slane %v3281, 1
        %v3742 = vrot.slane %v3285, 1
        %v3743 = vrot.slane %v3291, 1
        %v3744 = vrot.slane %v3295, 1
        %v3745 = vrot.slane %v3301, 1
        %v3746 = vrot.slane %v3305, 1
        %v3747 = vrot.slane %v3311, 1
        %v3748 = vrot.slane %v3315, 1
        %v3749 = vrot.slane %v3321, 1
        %v3750 = vrot.slane %v3325, 1
        %v3751 = vrot.slane %v3331, 1
        %v3752 = vrot.slane %v3335, 1
        %v3753 = vrot.slane %v3341, 1
        %v3754 = vrot.slane %v3345, 1
        %v3755 = vrot.slane %v3351, 1
        %v3756 = vrot.slane %v3355, 1
        %v3757 = vrot.slane %v3361, 1
        %v3758 = vrot.slane %v3365, 1
        %v3759 = vrot.slane %v3371, 1
        %v3760 = vrot.slane %v3375, 1
        %v3761 = vrot.slane %v3381, 1
        %v3762 = vrot.slane %v3385, 1
        %v3763 = vrot.slane %v3391, 1
        %v3764 = vrot.slane %v3395, 1
        %v3765 = vrot.slane %v3401, 1
        %v3766 = vrot.slane %v3405, 1
        %v3767 = vrot.slane %v3411, 1
        %v3768 = vrot.slane %v3415, 1
        %v3769 = vrot.slane %v3421, 1
        %v3770 = vrot.slane %v3425, 1
        %v3771 = vrot.slane %v3431, 1
        %v3772 = vrot.slane %v3435, 1
        %v3773 = vrot.slane %v3441, 1
        %v3774 = vrot.slane %v3445, 1
        %v3775 = vrot.slane %v3451, 1
        %v3776 = vrot.slane %v3455, 1
        %v3777 = vrot.slane %v3461, 1
        %v3778 = vrot.slane %v3465, 1
        %v3779 = vrot.slane %v3471, 1
        %v3780 = vrot.slane %v3475, 1
        %v3781 = vrot.slane %v3481, 1
        %v3782 = vrot.slane %v3485, 1
        %v3783 = vrot.slane %v3491, 1
        %v3784 = vrot.slane %v3495, 1
        %v3785 = vsel %vm1968, %v3783, %v3784
        %v3786 = vsel %vm1968, %v3782, %v3783
        %v3787 = vsel %vm1968, %v3780, %v3781
        %v3788 = vsel %vm1968, %v3779, %v3780
        %v3789 = vsel %vm1968, %v3777, %v3778
        %v3790 = vsel %vm1968, %v3776, %v3777
        %v3791 = vsel %vm1968, %v3774, %v3775
        %v3792 = vsel %vm1968, %v3773, %v3774
        %v3793 = vsel %vm1968, %v3771, %v3772
        %v3794 = vsel %vm1968, %v3770, %v3771
        %v3795 = vsel %vm1968, %v3768, %v3769
        %v3796 = vsel %vm1968, %v3767, %v3768
        %v3797 = vsel %vm1968, %v3765, %v3766
        %v3798 = vsel %vm1968, %v3764, %v3765
        %v3799 = vsel %vm1968, %v3762, %v3763
        %v3800 = vsel %vm1968, %v3761, %v3762
        %v3801 = vsel %vm1968, %v3759, %v3760
        %v3802 = vsel %vm1968, %v3758, %v3759
        %v3803 = vsel %vm1968, %v3756, %v3757
        %v3804 = vsel %vm1968, %v3755, %v3756
        %v3805 = vsel %vm1968, %v3753, %v3754
        %v3806 = vsel %vm1968, %v3752, %v3753
        %v3807 = vsel %vm1968, %v3750, %v3751
        %v3808 = vsel %vm1968, %v3749, %v3750
        %v3809 = vsel %vm1968, %v3747, %v3748
        %v3810 = vsel %vm1968, %v3746, %v3747
        %v3811 = vsel %vm1968, %v3744, %v3745
        %v3812 = vsel %vm1968, %v3743, %v3744
        %v3813 = vsel %vm1968, %v3741, %v3742
        %v3814 = vsel %vm1968, %v3740, %v3741
        %v3815 = vsel %vm1968, %v3738, %v3739
        %v3816 = vsel %vm1968, %v3737, %v3738
        %v3817 = vadd.f32 %v3705, %v3816
        %v3818 = vadd.f32 %v3706, %v3815
        %v3819 = vadd.f32 %v3707, %v3814
        %v3820 = vadd.f32 %v3708, %v3813
        %v3821 = vadd.f32 %v3709, %v3812
        %v3822 = vadd.f32 %v3710, %v3811
        %v3823 = vadd.f32 %v3711, %v3810
        %v3824 = vadd.f32 %v3712, %v3809
        %v3825 = vadd.f32 %v3713, %v3808
        %v3826 = vadd.f32 %v3714, %v3807
        %v3827 = vadd.f32 %v3715, %v3806
        %v3828 = vadd.f32 %v3716, %v3805
        %v3829 = vadd.f32 %v3717, %v3804
        %v3830 = vadd.f32 %v3718, %v3803
        %v3831 = vadd.f32 %v3719, %v3802
        %v3832 = vadd.f32 %v3720, %v3801
        %v3833 = vadd.f32 %v3721, %v3800
        %v3834 = vadd.f32 %v3722, %v3799
        %v3835 = vadd.f32 %v3723, %v3798
        %v3836 = vadd.f32 %v3724, %v3797
        %v3837 = vadd.f32 %v3725, %v3796
        %v3838 = vadd.f32 %v3726, %v3795
        %v3839 = vadd.f32 %v3727, %v3794
        %v3840 = vadd.f32 %v3728, %v3793
        %v3841 = vadd.f32 %v3729, %v3792
        %v3842 = vadd.f32 %v3730, %v3791
        %v3843 = vadd.f32 %v3731, %v3790
        %v3844 = vadd.f32 %v3732, %v3789
        %v3845 = vadd.f32 %v3733, %v3788
        %v3846 = vadd.f32 %v3734, %v3787
        %v3847 = vadd.f32 %v3735, %v3786
        %v3848 = vadd.f32 %v3736, %v3785
        %v3849 = vld [vmem:[%s4] sm:$0x1]
        %v3851 = vlaneseq
        %v3852 = vshrl.u32 %v3851, 7
        %v3853 = vsub.s32 0, %v3852
        %v3854 = vrot.slane %v3849, %v3853
        %v3856 = vadd.f32 %v3817, %v3854
        %v3857 = vadd.f32 %v3818, %v3854
        %v3858 = vadd.f32 %v3819, %v3854
        %v3859 = vadd.f32 %v3820, %v3854
        %v3860 = vadd.f32 %v3821, %v3854
        %v3861 = vadd.f32 %v3822, %v3854
        %v3862 = vadd.f32 %v3823, %v3854
        %v3863 = vadd.f32 %v3824, %v3854
        %v3864 = vadd.f32 %v3825, %v3854
        %v3865 = vadd.f32 %v3826, %v3854
        %v3866 = vadd.f32 %v3827, %v3854
        %v3867 = vadd.f32 %v3828, %v3854
        %v3868 = vadd.f32 %v3829, %v3854
        %v3869 = vadd.f32 %v3830, %v3854
        %v3870 = vadd.f32 %v3831, %v3854
        %v3871 = vadd.f32 %v3832, %v3854
        %v3872 = vadd.f32 %v3833, %v3854
        %v3873 = vadd.f32 %v3834, %v3854
        %v3874 = vadd.f32 %v3835, %v3854
        %v3875 = vadd.f32 %v3836, %v3854
        %v3876 = vadd.f32 %v3837, %v3854
        %v3877 = vadd.f32 %v3838, %v3854
        %v3878 = vadd.f32 %v3839, %v3854
        %v3879 = vadd.f32 %v3840, %v3854
        %v3880 = vadd.f32 %v3841, %v3854
        %v3881 = vadd.f32 %v3842, %v3854
        %v3882 = vadd.f32 %v3843, %v3854
        %v3883 = vadd.f32 %v3844, %v3854
        %v3884 = vadd.f32 %v3845, %v3854
        %v3885 = vadd.f32 %v3846, %v3854
        %v3886 = vadd.f32 %v3847, %v3854
        %v3887 = vadd.f32 %v3848, %v3854
        %v3888 = vld [vmem:[%s222] sm:$0xff]
        %v3889 = vld [vmem:[%s222 + $0x8] sm:$0xff]
        %v3890 = vld [vmem:[%s222 + $0x10] sm:$0xff]
        %v3891 = vld [vmem:[%s222 + $0x18] sm:$0xff]
        %v3892 = vld [vmem:[%s222 + $0x20] sm:$0xff]
        %v3893 = vld [vmem:[%s222 + $0x28] sm:$0xff]
        %v3894 = vld [vmem:[%s222 + $0x30] sm:$0xff]
        %v3895 = vld [vmem:[%s222 + $0x38] sm:$0xff]
        %v3896 = vld [vmem:[%s222 + $0x40] sm:$0xff]
        %v3897 = vld [vmem:[%s222 + $0x48] sm:$0xff]
        %v3898 = vld [vmem:[%s222 + $0x50] sm:$0xff]
        %v3899 = vld [vmem:[%s222 + $0x58] sm:$0xff]
        %v3900 = vld [vmem:[%s222 + $0x60] sm:$0xff]
        %v3901 = vld [vmem:[%s222 + $0x68] sm:$0xff]
        %v3902 = vld [vmem:[%s222 + $0x70] sm:$0xff]
        %v3903 = vld [vmem:[%s222 + $0x78] sm:$0xff]
        %v3904 = vld [vmem:[%s222 + $0x80] sm:$0xff]
        %v3905 = vld [vmem:[%s222 + $0x88] sm:$0xff]
        %v3906 = vld [vmem:[%s222 + $0x90] sm:$0xff]
        %v3907 = vld [vmem:[%s222 + $0x98] sm:$0xff]
        %v3908 = vld [vmem:[%s222 + $0xa0] sm:$0xff]
        %v3909 = vld [vmem:[%s222 + $0xa8] sm:$0xff]
        %v3910 = vld [vmem:[%s222 + $0xb0] sm:$0xff]
        %v3911 = vld [vmem:[%s222 + $0xb8] sm:$0xff]
        %v3912 = vld [vmem:[%s222 + $0xc0] sm:$0xff]
        %v3913 = vld [vmem:[%s222 + $0xc8] sm:$0xff]
        %v3914 = vld [vmem:[%s222 + $0xd0] sm:$0xff]
        %v3915 = vld [vmem:[%s222 + $0xd8] sm:$0xff]
        %v3916 = vld [vmem:[%s222 + $0xe0] sm:$0xff]
        %v3917 = vld [vmem:[%s222 + $0xe8] sm:$0xff]
        %v3918 = vld [vmem:[%s222 + $0xf0] sm:$0xff]
        %v3919 = vld [vmem:[%s222 + $0xf8] sm:$0xff]
        %v3920 = vadd.f32 %v3856, %v3888
        %v3921 = vadd.f32 %v3857, %v3889
        %v3922 = vadd.f32 %v3858, %v3890
        %v3923 = vadd.f32 %v3859, %v3891
        %v3924 = vadd.f32 %v3860, %v3892
        %v3925 = vadd.f32 %v3861, %v3893
        %v3926 = vadd.f32 %v3862, %v3894
        %v3927 = vadd.f32 %v3863, %v3895
        %v3928 = vadd.f32 %v3864, %v3896
        %v3929 = vadd.f32 %v3865, %v3897
        %v3930 = vadd.f32 %v3866, %v3898
        %v3931 = vadd.f32 %v3867, %v3899
        %v3932 = vadd.f32 %v3868, %v3900
        %v3933 = vadd.f32 %v3869, %v3901
        %v3934 = vadd.f32 %v3870, %v3902
        %v3935 = vadd.f32 %v3871, %v3903
        %v3936 = vadd.f32 %v3872, %v3904
        %v3937 = vadd.f32 %v3873, %v3905
        %v3938 = vadd.f32 %v3874, %v3906
        %v3939 = vadd.f32 %v3875, %v3907
        %v3940 = vadd.f32 %v3876, %v3908
        %v3941 = vadd.f32 %v3877, %v3909
        %v3942 = vadd.f32 %v3878, %v3910
        %v3943 = vadd.f32 %v3879, %v3911
        %v3944 = vadd.f32 %v3880, %v3912
        %v3945 = vadd.f32 %v3881, %v3913
        %v3946 = vadd.f32 %v3882, %v3914
        %v3947 = vadd.f32 %v3883, %v3915
        %v3948 = vadd.f32 %v3884, %v3916
        %v3949 = vadd.f32 %v3885, %v3917
        %v3950 = vadd.f32 %v3886, %v3918
        %v3951 = vadd.f32 %v3887, %v3919
        %3952 = vst.msk [vmem:[%s217] sm:$0xff] %vm633, %v3920
        %3953 = vst.msk [vmem:[%s217 + $0x8] sm:$0xff] %vm633, %v3921
        %3954 = vst.msk [vmem:[%s217 + $0x10] sm:$0xff] %vm633, %v3922
        %3955 = vst.msk [vmem:[%s217 + $0x18] sm:$0xff] %vm633, %v3923
        %3956 = vst.msk [vmem:[%s217 + $0x20] sm:$0xff] %vm633, %v3924
        %3957 = vst.msk [vmem:[%s217 + $0x28] sm:$0xff] %vm633, %v3925
        %3958 = vst.msk [vmem:[%s217 + $0x30] sm:$0xff] %vm633, %v3926
        %3959 = vst.msk [vmem:[%s217 + $0x38] sm:$0xff] %vm633, %v3927
        %3960 = vst.msk [vmem:[%s217 + $0x40] sm:$0xff] %vm633, %v3928
        %3961 = vst.msk [vmem:[%s217 + $0x48] sm:$0xff] %vm633, %v3929
        %3962 = vst.msk [vmem:[%s217 + $0x50] sm:$0xff] %vm633, %v3930
        %3963 = vst.msk [vmem:[%s217 + $0x58] sm:$0xff] %vm633, %v3931
        %3964 = vst.msk [vmem:[%s217 + $0x60] sm:$0xff] %vm633, %v3932
        %3965 = vst.msk [vmem:[%s217 + $0x68] sm:$0xff] %vm633, %v3933
        %3966 = vst.msk [vmem:[%s217 + $0x70] sm:$0xff] %vm633, %v3934
        %3967 = vst.msk [vmem:[%s217 + $0x78] sm:$0xff] %vm633, %v3935
        %3968 = vst.msk [vmem:[%s217 + $0x80] sm:$0xff] %vm633, %v3936
        %3969 = vst.msk [vmem:[%s217 + $0x88] sm:$0xff] %vm633, %v3937
        %3970 = vst.msk [vmem:[%s217 + $0x90] sm:$0xff] %vm633, %v3938
        %3971 = vst.msk [vmem:[%s217 + $0x98] sm:$0xff] %vm633, %v3939
        %3972 = vst.msk [vmem:[%s217 + $0xa0] sm:$0xff] %vm633, %v3940
        %3973 = vst.msk [vmem:[%s217 + $0xa8] sm:$0xff] %vm633, %v3941
        %3974 = vst.msk [vmem:[%s217 + $0xb0] sm:$0xff] %vm633, %v3942
        %3975 = vst.msk [vmem:[%s217 + $0xb8] sm:$0xff] %vm633, %v3943
        %3976 = vst.msk [vmem:[%s217 + $0xc0] sm:$0xff] %vm633, %v3944
        %3977 = vst.msk [vmem:[%s217 + $0xc8] sm:$0xff] %vm633, %v3945
        %3978 = vst.msk [vmem:[%s217 + $0xd0] sm:$0xff] %vm633, %v3946
        %3979 = vst.msk [vmem:[%s217 + $0xd8] sm:$0xff] %vm633, %v3947
        %3980 = vst.msk [vmem:[%s217 + $0xe0] sm:$0xff] %vm633, %v3948
        %3981 = vst.msk [vmem:[%s217 + $0xe8] sm:$0xff] %vm633, %v3949
        %3982 = vst.msk [vmem:[%s217 + $0xf0] sm:$0xff] %vm633, %v3950
        %3983 = vst.msk [vmem:[%s217 + $0xf8] sm:$0xff] %vm633, %v3951
        %s3984 = sand.u32 %s137, 1
        %s3985 = scalar_lea.sflag [#allocation5], %s3984
        %s3986 = sand.u32 %s137, 1
        %s3987 = smul.addr %s3986, 256
        %s3988 = scalar_lea.vmem [#allocation4], %s3987
        // Predicated region
        $region41: #{resblock_forward.1} parent=39 // pred_check
          %p3989 = pneg %p147
        $region42: #{resblock_forward.1} parent=39 // pred_check_branch
          %3991 = sbr.rel (%p3989) target = $region44
        $region43: #{resblock_forward.1} parent=39 // pred_region
          %s3993 = ssub.s32 4096, 4096
          %3994 = vsyncadd %s3985, %s3993
          %s3995 = smul.addr %s19, 32
          %s3996 = smul.addr %s3995, 128
          %s3997 = scalar_lea.hbm %s5, %s3996
          %s3998 = sshll.u32 %s3988, 4
          %s3999 = int_to_ptr.vmem [resolvable:$true] %s3998
          %4004 = dma.vmem_to_hbm [thread:$0]  %s3999, 4096, %s3997, %s3985, 128, 128, 8
        $region44: #{resblock_forward.1} parent=39 // pred_fallthru
          _
      $region40: #{resblock_forward.1} parent=5 // pred_fallthru
        _
      %p4005 = scmp.le.s32.totalorder 2, %s14
      // Predicated region
      $region45: #{resblock_forward.1} parent=5 // pred_check
        %p4006 = pneg %p4005
      $region46: #{resblock_forward.1} parent=5 // pred_check_branch
        %4008 = sbr.rel (%p4006) target = $region48
      $region47: #{resblock_forward.1} parent=5 // pred_region
        %s4009 = ssub.s32 %s14, 2
        // Predicated region
        $region49: #{resblock_forward.1} parent=47 // pred_check
          %p4010 = pneg %p153
        $region50: #{resblock_forward.1} parent=47 // pred_check_branch
          %4012 = sbr.rel (%p4010) target = $region52
        $region51: #{resblock_forward.1} parent=47 // pred_region
          %s4013 = sand.u32 %s138, 1
          %s4014 = scalar_lea.sflag [#allocation5], %s4013
          %s4015 = sand.u32 %s138, 1
          %s4016 = smul.addr %s4015, 256
          %s4017 = scalar_lea.vmem [#allocation4], %s4016
          %4018 = dma.done %s4014, 4096
        $region52: #{resblock_forward.1} parent=47 // pred_fallthru
          _
      $region48: #{resblock_forward.1} parent=5 // pred_fallthru
        _
    $region6: #{resblock_forward.1} parent=1 // loop_footer
      %s18 = sadd.s32 1, %s14
    $region7: #{resblock_forward.1} parent=1 // loop_footer_branch
      %13 = sbr.rel target = $region3
    $region8: #{resblock_forward.1} parent=1 // loop_exit
      _
    %4019 = vsyncpa [#allocation5], 1
    %s4020 = scalar_lea.sflag [#allocation5], 1
    %4021 = vsyncpa %s4020, 1

</llo_original>
